<compile_context>
chip_gen: v6e
topology: v6e:2x2x1
jax: 0.10.0
libtpu: 0.0.40
codegen_flags: <defaults>
</compile_context>

<pallas_src>
import jax
import jax.numpy as jnp
from jax import lax
from jax.experimental import pallas as pl
from jax.experimental.pallas import tpu as pltpu


_COL0 = 8   # slab column where image column 0 lives (sublane-tile aligned offset)


def _make_kernel(TH, W, C, n_hblk, hg):
    """Kernel for one (batch, row-block) grid step.

    Slab column layout (both slabs): cols [COL0, COL0+W) hold image columns
    0..W-1; cols COL0-1 and COL0+W are the zero SAME-padding columns for the
    following conv; cols [0, COL0-1) are unused.  COL0 == 8 keeps every slab
    store sublane-tile aligned while the +-1 dx tap reads are cheap offset loads.
    """
    COL0 = _COL0
    n_side = 2 // hg          # halo input blocks per side (1 if hg==2, 2 if hg==1)
    P1 = (TH + 2) * W         # pixels of the halo-extended hidden tile
    P2 = TH * W               # pixels of the output tile

    def kernel(*args):
        it = iter(args)
        xcore_ref = next(it)
        top_refs = [next(it) for _ in range(n_side)]
        bot_refs = [next(it) for _ in range(n_side)]
        w1_ref = next(it)
        b1_ref = next(it)
        w2_ref = next(it)
        b2_ref = next(it)
        out_ref = next(it)
        xpad_ref = next(it)
        mid_ref = next(it)

        h = pl.program_id(1)
        cdt = xpad_ref.dtype          # compute dtype (slabs / MXU operands)
        mdt = mid_ref.dtype

        # ---- stage the input row-block (+2-row halo) into the slab ------------
        # Row offsets are leading-dim offsets (free); column offset COL0 is
        # sublane-tile aligned, so these are unmasked full-tile stores.  Only the
        # two 1-column SAME-padding borders are (re)zeroed each step.
        xpad_ref[:, COL0 - 1:COL0, :] = jnp.zeros((TH + 4, 1, C), cdt)
        xpad_ref[:, COL0 + W:COL0 + W + 1, :] = jnp.zeros((TH + 4, 1, C), cdt)
        mid_ref[:, COL0 - 1:COL0, :] = jnp.zeros((TH + 2, 1, C), mdt)
        mid_ref[:, COL0 + W:COL0 + W + 1, :] = jnp.zeros((TH + 2, 1, C), mdt)

        xpad_ref[2:TH + 2, COL0:COL0 + W, :] = xcore_ref[0].astype(cdt)

        @pl.when(h > 0)
        def _():
            for i in range(n_side):
                xpad_ref[i * hg:(i + 1) * hg, COL0:COL0 + W, :] = (
                    top_refs[i][0].astype(cdt))

        @pl.when(h == 0)
        def _():
            xpad_ref[0:2, COL0:COL0 + W, :] = jnp.zeros((2, W, C), cdt)

        @pl.when(h < n_hblk - 1)
        def _():
            for i in range(n_side):
                xpad_ref[TH + 2 + i * hg:TH + 2 + (i + 1) * hg,
                         COL0:COL0 + W, :] = bot_refs[i][0].astype(cdt)

        @pl.when(h == n_hblk - 1)
        def _():
            xpad_ref[TH + 2:TH + 4, COL0:COL0 + W, :] = jnp.zeros((2, W, C), cdt)

        # ---- conv1: 3 tap-grouped MXU matmuls (K = 3C), f32 accumulation ------
        acc1 = None
        for dy in range(3):
            taps = [
                xpad_ref[dy:dy + TH + 2, COL0 - 1 + dx:COL0 - 1 + dx + W, :]
                .reshape(P1, C)
                for dx in range(3)
            ]
            patch = jnp.concatenate(taps, axis=1)                 # (P1, 3C)
            d = jnp.dot(patch, w1_ref[dy], preferred_element_type=jnp.float32)
            acc1 = d if acc1 is None else acc1 + d
        hid = jnp.maximum(acc1 + b1_ref[...], 0.0)                # f32 bias + ReLU
        mid_ref[:, COL0:COL0 + W, :] = hid.reshape(TH + 2, W, C).astype(mdt)

        # hidden rows that fall outside the image are conv2 SAME padding -> zero
        @pl.when(h == 0)
        def _():
            mid_ref[0:1, COL0:COL0 + W, :] = jnp.zeros((1, W, C), mdt)

        @pl.when(h == n_hblk - 1)
        def _():
            mid_ref[TH + 1:TH + 2, COL0:COL0 + W, :] = jnp.zeros((1, W, C), mdt)

        # ---- conv2: 3 tap-grouped matmuls + bias + residual + ReLU ------------
        acc2 = None
        for dy in range(3):
            taps = [
                mid_ref[dy:dy + TH, COL0 - 1 + dx:COL0 - 1 + dx + W, :]
                .reshape(P2, C)
                for dx in range(3)
            ]
            patch = jnp.concatenate(taps, axis=1)                 # (P2, 3C)
            d = jnp.dot(patch, w2_ref[dy], preferred_element_type=jnp.float32)
            acc2 = d if acc2 is None else acc2 + d
        residual = xcore_ref[0].reshape(P2, C).astype(jnp.float32)
        out = jnp.maximum(acc2 + b2_ref[...] + residual, 0.0)
        # TODO(synk): for C << 128 present a lane-dense (TH, W*C) output block;
        # needs a Mosaic-safe trailing-dim merge of the (TH, W, C) value.
        out_ref[0] = out.reshape(TH, W, C).astype(out_ref.dtype)

    return kernel


def _vmem_caps():
    """Generation-aware (tile-selection budget, scoped vmem_limit_bytes)."""
    cap = 64 * 1024 * 1024
    try:
        info = pltpu.get_tpu_info()
        cap = int(getattr(info, "vmem_capacity_bytes", cap)) or cap
    except Exception:
        pass
    if cap >= 100 * 1024 * 1024:          # v5e / v6e: 128 MiB physical VMEM
        return 24 * 1024 * 1024, 88 * 1024 * 1024
    # v7x-class: 64 MiB physical -> leave headroom for double-buffered I/O
    return 16 * 1024 * 1024, 44 * 1024 * 1024


def _estimate_vmem(th, W, C, comp_bytes, x_bytes):
    slab_w = W + _COL0 + 1
    slabs = ((th + 4) + (th + 2)) * slab_w * C * comp_bytes     # input + hidden slab
    accs = ((th + 2) + th) * W * C * 4                          # f32 accumulators
    patch = (th + 2) * W * 3 * C * max(comp_bytes, 4)           # one dy-group patch
    io = 2 * ((th + 4) * W * C * x_bytes + th * W * C * x_bytes)  # dbl-buffered I/O
    wts = 2 * (2 * 9 * C * C * comp_bytes + 2 * 2 * C * 4)
    return slabs + accs + patch + io + wts


def _pick_row_tile(N, H, W, C, comp_bytes, x_bytes, budget):
    divs = [d for d in range(1, H + 1) if H % d == 0]
    fit = [d for d in divs
           if _estimate_vmem(d, W, C, comp_bytes, x_bytes) <= budget]
    if not fit:
        # Nothing fits the budget: smallest tile, never TH = H (old fallback
        # could blow past VMEM on v7x exactly where tiling matters most).
        return min(divs)
    # Prefer even tiles (merged 2-row halo DMAs) and, when it costs nothing,
    # keep at least 2 grid steps so both v7x TensorCores get work (largest
    # fitting tile also keeps M = TH*W large for the MXU).
    for cond in (lambda d: d % 2 == 0 and N * (H // d) >= 2,
                 lambda d: d % 2 == 0,
                 lambda d: True):
        cands = [d for d in fit if cond(d)]
        if cands:
            return max(cands)
    return max(fit)


def residual_block(x_nchw, w1_hwio, b1, w2_hwio, b2, *, row_tile=None,
                   compute_dtype=None):
    """ResidualBlock forward: relu(conv2(relu(conv1(x))) + x).

    x_nchw: (N, C, H, W) as in the PyTorch module; weights in HWIO layout
    (== torch OIHW transposed (2, 3, 1, 0)).
    """
    N, C, H, W = x_nchw.shape
    if compute_dtype is None:
        # MXU-bound shapes default to bf16 operands (f32 accumulation + f32
        # bias/ReLU/residual epilogue, incl. on v5e); tiny C stays f32.
        compute_dtype = jnp.bfloat16 if C >= 64 else jnp.float32
    comp_bytes = jnp.dtype(compute_dtype).itemsize
    x = jnp.transpose(x_nchw, (0, 2, 3, 1))          # NHWC; no HBM spatial padding
    x_bytes = jnp.dtype(x.dtype).itemsize

    budget, vmem_limit = _vmem_caps()
    TH = row_tile
    if TH is None or TH < 1 or H % TH != 0:
        TH = _pick_row_tile(N, H, W, C, comp_bytes, x_bytes, budget)
    n_hblk = H // TH
    hg = 2 if (TH % 2 == 0 and H % 2 == 0) else 1    # merged 2-row halo DMAs
    n_side = 2 // hg

    # per-dy-row weight groups: (3, 3*C, C), row index = dx*C + ci
    w1g = w1_hwio.reshape(3, 3 * C, C).astype(compute_dtype)
    w2g = w2_hwio.reshape(3, 3 * C, C).astype(compute_dtype)
    b1r = b1.reshape(1, C).astype(jnp.float32)
    b2r = b2.reshape(1, C).astype(jnp.float32)

    kernel = _make_kernel(TH, W, C, n_hblk, hg)

    def core_map(n, h):
        return (n, h, 0, 0)

    THb = TH // hg
    Hb = H // hg
    if hg == 2:
        halo_specs = [
            pl.BlockSpec((1, 2, W, C),
                         lambda n, h: (n, jnp.maximum(h * THb - 1, 0), 0, 0)),
            pl.BlockSpec((1, 2, W, C),
                         lambda n, h: (n, jnp.minimum((h + 1) * THb, Hb - 1), 0, 0)),
        ]
    else:
        halo_specs = [
            pl.BlockSpec((1, 1, W, C),
                         lambda n, h: (n, jnp.maximum(h * TH - 2, 0), 0, 0)),
            pl.BlockSpec((1, 1, W, C),
                         lambda n, h: (n, jnp.maximum(h * TH - 1, 0), 0, 0)),
            pl.BlockSpec((1, 1, W, C),
                         lambda n, h: (n, jnp.minimum((h + 1) * TH, H - 1), 0, 0)),
            pl.BlockSpec((1, 1, W, C),
                         lambda n, h: (n, jnp.minimum((h + 1) * TH + 1, H - 1), 0, 0)),
        ]

    # TODO(synk): single-buffer the constant weight/bias blocks via
    # pipeline_mode=pl.Buffered(1) once validated on this jax version.
    const2 = lambda n, h: (0, 0)
    const3 = lambda n, h: (0, 0, 0)
    in_specs = (
        [pl.BlockSpec((1, TH, W, C), core_map)]
        + halo_specs
        + [pl.BlockSpec((3, 3 * C, C), const3),
           pl.BlockSpec((1, C), const2),
           pl.BlockSpec((3, 3 * C, C), const3),
           pl.BlockSpec((1, C), const2)]
    )

    slab_w = W + _COL0 + 1
    grid_spec = pltpu.PrefetchScalarGridSpec(
        num_scalar_prefetch=0,
        grid=(N, n_hblk),
        in_specs=in_specs,
        out_specs=pl.BlockSpec((1, TH, W, C), core_map),
        scratch_shapes=[
            pltpu.VMEM((TH + 4, slab_w, C), compute_dtype),   # input + halo slab
            pltpu.VMEM((TH + 2, slab_w, C), compute_dtype),   # hidden (conv1) slab
        ],
    )

    out_nhwc = pl.pallas_call(
        kernel,
        out_shape=jax.ShapeDtypeStruct((N, H, W, C), x.dtype),
        grid_spec=grid_spec,
        compiler_params=pltpu.CompilerParams(
            # batch and row-block steps are fully independent -> megacore-shardable
            dimension_semantics=("parallel", "parallel"),
            vmem_limit_bytes=vmem_limit,
        ),
    )(x, *([x] * (2 * n_side)), w1g, b1r, w2g, b2r)

    return jnp.transpose(out_nhwc, (0, 3, 1, 2))                 # back to NCHW


def residual_block_ref(x_nchw, w1_hwio, b1, w2_hwio, b2):
    """Pure-JAX reference (matches torch.nn.Conv2d semantics)."""
    x = jnp.transpose(x_nchw, (0, 2, 3, 1))
    dn = ('NHWC', 'HWIO', 'NHWC')
    h = lax.conv_general_dilated(x, w1_hwio, (1, 1), 'SAME',
                                 dimension_numbers=dn) + b1
    h = jnp.maximum(h, 0.0)
    o = lax.conv_general_dilated(h, w2_hwio, (1, 1), 'SAME',
                                 dimension_numbers=dn) + b2
    o = jnp.maximum(o + x, 0.0)
    return jnp.transpose(o, (0, 3, 1, 2))


if __name__ == "__main__":
    N, C, H, W = 2, 4, 16, 16
    key = jax.random.PRNGKey(0)
    kx, k1, kb1, k2, kb2 = jax.random.split(key, 5)

    x = jax.random.normal(kx, (N, C, H, W), jnp.float32)
    # synthetic params directly in HWIO layout (== torch OIHW transposed (2,3,1,0))
    w1 = jax.random.normal(k1, (3, 3, C, C), jnp.float32) * 0.1
    b1 = jax.random.normal(kb1, (C,), jnp.float32) * 0.1
    w2 = jax.random.normal(k2, (3, 3, C, C), jnp.float32) * 0.1
    b2 = jax.random.normal(kb2, (C,), jnp.float32) * 0.1

    ref = jax.block_until_ready(residual_block_ref(x, w1, b1, w2, b2))

    # 1) f32, explicit row tiling (2 row-blocks -> exercises both halo paths)
    out = jax.block_until_ready(residual_block(x, w1, b1, w2, b2, row_tile=8))
    assert out.shape == (N, C, H, W)
    if not jnp.allclose(out, ref, atol=1e-4, rtol=1e-4):
        raise AssertionError("f32 tiled kernel does not match reference")

    # 2) f32, default (auto tile) path
    out1 = jax.block_until_ready(residual_block(x, w1, b1, w2, b2))
    if not jnp.allclose(out1, ref, atol=1e-4, rtol=1e-4):
        raise AssertionError("f32 default kernel does not match reference")

    # 3) bf16 MXU operands (v5e/v6e/v7x fast path), f32 accumulation/epilogue
    out2 = jax.block_until_ready(
        residual_block(x, w1, b1, w2, b2, row_tile=8,
                       compute_dtype=jnp.bfloat16))
    if not jnp.allclose(out2, ref, atol=1e-1, rtol=1e-1):
        raise AssertionError("bf16 kernel does not match reference")

    print("KERNEL_OK")
</pallas_src>

<mosaic_0001>
module attributes {stable_mosaic.version = 11 : i64} {
  func.func @kernel(%arg0: i32, %arg1: i32, %arg2: memref<1x8x16x4xf32, #tpu.memory_space<vmem>>, %arg3: memref<1x2x16x4xf32, #tpu.memory_space<vmem>>, %arg4: memref<1x2x16x4xf32, #tpu.memory_space<vmem>>, %arg5: memref<3x12x4xf32, #tpu.memory_space<vmem>>, %arg6: memref<1x4xf32, #tpu.memory_space<vmem>>, %arg7: memref<3x12x4xf32, #tpu.memory_space<vmem>>, %arg8: memref<1x4xf32, #tpu.memory_space<vmem>>, %arg9: memref<1x8x16x4xf32, #tpu.memory_space<vmem>>, %arg10: memref<12x25x4xf32, #tpu.memory_space<vmem>>, %arg11: memref<10x25x4xf32, #tpu.memory_space<vmem>>) attributes {dimension_semantics = [#tpu.dimension_semantics<parallel>, #tpu.dimension_semantics<parallel>], iteration_bounds = array<i64: 2, 2>, scalar_prefetch = 0 : i64, scratch_operands = 2 : i64, tpu.core_type = #tpu.core_type<tc>, window_params = [{transform_indices = @transform_0, window_bounds = array<i64: 1, 8, 16, 4>}, {transform_indices = @transform_1, window_bounds = array<i64: 1, 2, 16, 4>}, {transform_indices = @transform_2, window_bounds = array<i64: 1, 2, 16, 4>}, {pipeline_mode = #tpu.pipeline_mode<synchronous>, transform_indices = @transform_3, window_bounds = array<i64: 3, 12, 4>}, {pipeline_mode = #tpu.pipeline_mode<synchronous>, transform_indices = @transform_4, window_bounds = array<i64: 1, 4>}, {pipeline_mode = #tpu.pipeline_mode<synchronous>, transform_indices = @transform_5, window_bounds = array<i64: 3, 12, 4>}, {pipeline_mode = #tpu.pipeline_mode<synchronous>, transform_indices = @transform_6, window_bounds = array<i64: 1, 4>}, {transform_indices = @transform_7, window_bounds = array<i64: 1, 8, 16, 4>}]} {
    %cst = arith.constant 0.000000e+00 : f32
    %0 = vector.broadcast %cst : f32 to vector<12x1x4xf32>
    %c0 = arith.constant 0 : index
    %c7 = arith.constant 7 : index
    %c0_0 = arith.constant 0 : index
    %1 = vector.load %arg10[%c0, %c7, %c0_0] : memref<12x25x4xf32, #tpu.memory_space<vmem>>, vector<12x1x4xf32>
    tpu.vector_store %arg10[%c0, %c7, %c0_0], %0 {strides = array<i32>} : memref<12x25x4xf32, #tpu.memory_space<vmem>>, vector<12x1x4xf32>,
    %cst_1 = arith.constant 0.000000e+00 : f32
    %2 = vector.broadcast %cst_1 : f32 to vector<12x1x4xf32>
    %c0_2 = arith.constant 0 : index
    %c24 = arith.constant 24 : index
    %c0_3 = arith.constant 0 : index
    %3 = vector.load %arg10[%c0_2, %c24, %c0_3] : memref<12x25x4xf32, #tpu.memory_space<vmem>>, vector<12x1x4xf32>
    tpu.vector_store %arg10[%c0_2, %c24, %c0_3], %2 {strides = array<i32>} : memref<12x25x4xf32, #tpu.memory_space<vmem>>, vector<12x1x4xf32>,
    %cst_4 = arith.constant 0.000000e+00 : f32
    %4 = vector.broadcast %cst_4 : f32 to vector<10x1x4xf32>
    %c0_5 = arith.constant 0 : index
    %c7_6 = arith.constant 7 : index
    %c0_7 = arith.constant 0 : index
    %5 = vector.load %arg11[%c0_5, %c7_6, %c0_7] : memref<10x25x4xf32, #tpu.memory_space<vmem>>, vector<10x1x4xf32>
    tpu.vector_store %arg11[%c0_5, %c7_6, %c0_7], %4 {strides = array<i32>} : memref<10x25x4xf32, #tpu.memory_space<vmem>>, vector<10x1x4xf32>,
    %cst_8 = arith.constant 0.000000e+00 : f32
    %6 = vector.broadcast %cst_8 : f32 to vector<10x1x4xf32>
    %c0_9 = arith.constant 0 : index
    %c24_10 = arith.constant 24 : index
    %c0_11 = arith.constant 0 : index
    %7 = vector.load %arg11[%c0_9, %c24_10, %c0_11] : memref<10x25x4xf32, #tpu.memory_space<vmem>>, vector<10x1x4xf32>
    tpu.vector_store %arg11[%c0_9, %c24_10, %c0_11], %6 {strides = array<i32>} : memref<10x25x4xf32, #tpu.memory_space<vmem>>, vector<10x1x4xf32>,
    %c0_12 = arith.constant 0 : index
    %c0_13 = arith.constant 0 : index
    %c0_14 = arith.constant 0 : index
    %c0_15 = arith.constant 0 : index
    %8 = vector.load %arg2[%c0_12, %c0_13, %c0_14, %c0_15] : memref<1x8x16x4xf32, #tpu.memory_space<vmem>>, vector<1x8x16x4xf32>
    %9 = vector.shape_cast %8 : vector<1x8x16x4xf32> to vector<8x16x4xf32>
    %c2 = arith.constant 2 : index
    %c8 = arith.constant 8 : index
    %c0_16 = arith.constant 0 : index
    %10 = vector.load %arg10[%c2, %c8, %c0_16] : memref<12x25x4xf32, #tpu.memory_space<vmem>>, vector<8x16x4xf32>
    tpu.vector_store %arg10[%c2, %c8, %c0_16], %9 {strides = array<i32>} : memref<12x25x4xf32, #tpu.memory_space<vmem>>, vector<8x16x4xf32>,
    %c0_i32 = arith.constant 0 : i32
    %11 = arith.cmpi sgt, %arg1, %c0_i32 : i32
    %12 = arith.extui %11 : i1 to i32
    %c0_i32_17 = arith.constant 0 : i32
    %13 = arith.cmpi ne, %12, %c0_i32_17 : i32
    scf.if %13 {
      %c0_120 = arith.constant 0 : index
      %c0_121 = arith.constant 0 : index
      %c0_122 = arith.constant 0 : index
      %c0_123 = arith.constant 0 : index
      %113 = vector.load %arg3[%c0_120, %c0_121, %c0_122, %c0_123] : memref<1x2x16x4xf32, #tpu.memory_space<vmem>>, vector<1x2x16x4xf32>
      %114 = vector.shape_cast %113 : vector<1x2x16x4xf32> to vector<2x16x4xf32>
      %c0_124 = arith.constant 0 : index
      %c8_125 = arith.constant 8 : index
      %c0_126 = arith.constant 0 : index
      %115 = vector.load %arg10[%c0_124, %c8_125, %c0_126] : memref<12x25x4xf32, #tpu.memory_space<vmem>>, vector<2x16x4xf32>
      tpu.vector_store %arg10[%c0_124, %c8_125, %c0_126], %114 {strides = array<i32>} : memref<12x25x4xf32, #tpu.memory_space<vmem>>, vector<2x16x4xf32>,
    } else {
    }
    %c0_i32_18 = arith.constant 0 : i32
    %14 = arith.cmpi eq, %arg1, %c0_i32_18 : i32
    %15 = arith.extui %14 : i1 to i32
    %c0_i32_19 = arith.constant 0 : i32
    %16 = arith.cmpi ne, %15, %c0_i32_19 : i32
    scf.if %16 {
      %cst_120 = arith.constant 0.000000e+00 : f32
      %113 = vector.broadcast %cst_120 : f32 to vector<2x16x4xf32>
      %c0_121 = arith.constant 0 : index
      %c8_122 = arith.constant 8 : index
      %c0_123 = arith.constant 0 : index
      %114 = vector.load %arg10[%c0_121, %c8_122, %c0_123] : memref<12x25x4xf32, #tpu.memory_space<vmem>>, vector<2x16x4xf32>
      tpu.vector_store %arg10[%c0_121, %c8_122, %c0_123], %113 {strides = array<i32>} : memref<12x25x4xf32, #tpu.memory_space<vmem>>, vector<2x16x4xf32>,
    } else {
    }
    %c1_i32 = arith.constant 1 : i32
    %17 = arith.cmpi slt, %arg1, %c1_i32 : i32
    %18 = arith.extui %17 : i1 to i32
    %c0_i32_20 = arith.constant 0 : i32
    %19 = arith.cmpi ne, %18, %c0_i32_20 : i32
    scf.if %19 {
      %c0_120 = arith.constant 0 : index
      %c0_121 = arith.constant 0 : index
      %c0_122 = arith.constant 0 : index
      %c0_123 = arith.constant 0 : index
      %113 = vector.load %arg4[%c0_120, %c0_121, %c0_122, %c0_123] : memref<1x2x16x4xf32, #tpu.memory_space<vmem>>, vector<1x2x16x4xf32>
      %114 = vector.shape_cast %113 : vector<1x2x16x4xf32> to vector<2x16x4xf32>
      %c10 = arith.constant 10 : index
      %c8_124 = arith.constant 8 : index
      %c0_125 = arith.constant 0 : index
      %115 = vector.load %arg10[%c10, %c8_124, %c0_125] : memref<12x25x4xf32, #tpu.memory_space<vmem>>, vector<2x16x4xf32>
      tpu.vector_store %arg10[%c10, %c8_124, %c0_125], %114 {strides = array<i32>} : memref<12x25x4xf32, #tpu.memory_space<vmem>>, vector<2x16x4xf32>,
    } else {
    }
    %c1_i32_21 = arith.constant 1 : i32
    %20 = arith.cmpi eq, %arg1, %c1_i32_21 : i32
    %21 = arith.extui %20 : i1 to i32
    %c0_i32_22 = arith.constant 0 : i32
    %22 = arith.cmpi ne, %21, %c0_i32_22 : i32
    scf.if %22 {
      %cst_120 = arith.constant 0.000000e+00 : f32
      %113 = vector.broadcast %cst_120 : f32 to vector<2x16x4xf32>
      %c10 = arith.constant 10 : index
      %c8_121 = arith.constant 8 : index
      %c0_122 = arith.constant 0 : index
      %114 = vector.load %arg10[%c10, %c8_121, %c0_122] : memref<12x25x4xf32, #tpu.memory_space<vmem>>, vector<2x16x4xf32>
      tpu.vector_store %arg10[%c10, %c8_121, %c0_122], %113 {strides = array<i32>} : memref<12x25x4xf32, #tpu.memory_space<vmem>>, vector<2x16x4xf32>,
    } else {
    }
    %c0_23 = arith.constant 0 : index
    %c7_24 = arith.constant 7 : index
    %c0_25 = arith.constant 0 : index
    %23 = vector.load %arg10[%c0_23, %c7_24, %c0_25] : memref<12x25x4xf32, #tpu.memory_space<vmem>>, vector<10x16x4xf32>
    %24 = vector.shape_cast %23 : vector<10x16x4xf32> to vector<160x4xf32>
    %c0_26 = arith.constant 0 : index
    %c8_27 = arith.constant 8 : index
    %c0_28 = arith.constant 0 : index
    %25 = vector.load %arg10[%c0_26, %c8_27, %c0_28] : memref<12x25x4xf32, #tpu.memory_space<vmem>>, vector<10x16x4xf32>
    %26 = vector.shape_cast %25 : vector<10x16x4xf32> to vector<160x4xf32>
    %c0_29 = arith.constant 0 : index
    %c9 = arith.constant 9 : index
    %c0_30 = arith.constant 0 : index
    %27 = vector.load %arg10[%c0_29, %c9, %c0_30] : memref<12x25x4xf32, #tpu.memory_space<vmem>>, vector<10x16x4xf32>
    %28 = vector.shape_cast %27 : vector<10x16x4xf32> to vector<160x4xf32>
    %29 = tpu.concatenate %24, %26, %28 in 1 : vector<160x4xf32>, vector<160x4xf32>, vector<160x4xf32> -> vector<160x12xf32>
    %c0_31 = arith.constant 0 : index
    %c0_32 = arith.constant 0 : index
    %c0_33 = arith.constant 0 : index
    %30 = vector.load %arg5[%c0_31, %c0_32, %c0_33] : memref<3x12x4xf32, #tpu.memory_space<vmem>>, vector<1x12x4xf32>
    %31 = vector.shape_cast %30 : vector<1x12x4xf32> to vector<12x4xf32>
    %cst_34 = arith.constant dense<0.000000e+00> : vector<160x4xf32>
    %32 = tpu.matmul %29, %31, %cst_34 {dimension_numbers = #tpu.dot_dimension_numbers<[1], [0], [0], [1], [0, 0, 1, 1], [], []>} : vector<160x12xf32>, vector<12x4xf32>, vector<160x4xf32> -> vector<160x4xf32>
    %c1 = arith.constant 1 : index
    %c7_35 = arith.constant 7 : index
    %c0_36 = arith.constant 0 : index
    %33 = vector.load %arg10[%c1, %c7_35, %c0_36] : memref<12x25x4xf32, #tpu.memory_space<vmem>>, vector<10x16x4xf32>
    %34 = vector.shape_cast %33 : vector<10x16x4xf32> to vector<160x4xf32>
    %c1_37 = arith.constant 1 : index
    %c8_38 = arith.constant 8 : index
    %c0_39 = arith.constant 0 : index
    %35 = vector.load %arg10[%c1_37, %c8_38, %c0_39] : memref<12x25x4xf32, #tpu.memory_space<vmem>>, vector<10x16x4xf32>
    %36 = vector.shape_cast %35 : vector<10x16x4xf32> to vector<160x4xf32>
    %c1_40 = arith.constant 1 : index
    %c9_41 = arith.constant 9 : index
    %c0_42 = arith.constant 0 : index
    %37 = vector.load %arg10[%c1_40, %c9_41, %c0_42] : memref<12x25x4xf32, #tpu.memory_space<vmem>>, vector<10x16x4xf32>
    %38 = vector.shape_cast %37 : vector<10x16x4xf32> to vector<160x4xf32>
    %39 = tpu.concatenate %34, %36, %38 in 1 : vector<160x4xf32>, vector<160x4xf32>, vector<160x4xf32> -> vector<160x12xf32>
    %c1_43 = arith.constant 1 : index
    %c0_44 = arith.constant 0 : index
    %c0_45 = arith.constant 0 : index
    %40 = vector.load %arg5[%c1_43, %c0_44, %c0_45] : memref<3x12x4xf32, #tpu.memory_space<vmem>>, vector<1x12x4xf32>
    %41 = vector.shape_cast %40 : vector<1x12x4xf32> to vector<12x4xf32>
    %cst_46 = arith.constant dense<0.000000e+00> : vector<160x4xf32>
    %42 = tpu.matmul %39, %41, %cst_46 {dimension_numbers = #tpu.dot_dimension_numbers<[1], [0], [0], [1], [0, 0, 1, 1], [], []>} : vector<160x12xf32>, vector<12x4xf32>, vector<160x4xf32> -> vector<160x4xf32>
    %43 = arith.addf %32, %42 : vector<160x4xf32>
    %c2_47 = arith.constant 2 : index
    %c7_48 = arith.constant 7 : index
    %c0_49 = arith.constant 0 : index
    %44 = vector.load %arg10[%c2_47, %c7_48, %c0_49] : memref<12x25x4xf32, #tpu.memory_space<vmem>>, vector<10x16x4xf32>
    %45 = vector.shape_cast %44 : vector<10x16x4xf32> to vector<160x4xf32>
    %c2_50 = arith.constant 2 : index
    %c8_51 = arith.constant 8 : index
    %c0_52 = arith.constant 0 : index
    %46 = vector.load %arg10[%c2_50, %c8_51, %c0_52] : memref<12x25x4xf32, #tpu.memory_space<vmem>>, vector<10x16x4xf32>
    %47 = vector.shape_cast %46 : vector<10x16x4xf32> to vector<160x4xf32>
    %c2_53 = arith.constant 2 : index
    %c9_54 = arith.constant 9 : index
    %c0_55 = arith.constant 0 : index
    %48 = vector.load %arg10[%c2_53, %c9_54, %c0_55] : memref<12x25x4xf32, #tpu.memory_space<vmem>>, vector<10x16x4xf32>
    %49 = vector.shape_cast %48 : vector<10x16x4xf32> to vector<160x4xf32>
    %50 = tpu.concatenate %45, %47, %49 in 1 : vector<160x4xf32>, vector<160x4xf32>, vector<160x4xf32> -> vector<160x12xf32>
    %c2_56 = arith.constant 2 : index
    %c0_57 = arith.constant 0 : index
    %c0_58 = arith.constant 0 : index
    %51 = vector.load %arg5[%c2_56, %c0_57, %c0_58] : memref<3x12x4xf32, #tpu.memory_space<vmem>>, vector<1x12x4xf32>
    %52 = vector.shape_cast %51 : vector<1x12x4xf32> to vector<12x4xf32>
    %cst_59 = arith.constant dense<0.000000e+00> : vector<160x4xf32>
    %53 = tpu.matmul %50, %52, %cst_59 {dimension_numbers = #tpu.dot_dimension_numbers<[1], [0], [0], [1], [0, 0, 1, 1], [], []>} : vector<160x12xf32>, vector<12x4xf32>, vector<160x4xf32> -> vector<160x4xf32>
    %54 = arith.addf %43, %53 : vector<160x4xf32>
    %c0_60 = arith.constant 0 : index
    %c0_61 = arith.constant 0 : index
    %55 = vector.load %arg6[%c0_60, %c0_61] : memref<1x4xf32, #tpu.memory_space<vmem>>, vector<1x4xf32>
    %56 = vector.broadcast %55 : vector<1x4xf32> to vector<160x4xf32>
    %57 = arith.addf %54, %56 : vector<160x4xf32>
    %cst_62 = arith.constant 0.000000e+00 : f32
    %58 = vector.broadcast %cst_62 : f32 to vector<160x4xf32>
    %59 = arith.maximumf %57, %58 : vector<160x4xf32>
    %60 = vector.shape_cast %59 : vector<160x4xf32> to vector<10x16x4xf32>
    %c0_63 = arith.constant 0 : index
    %c8_64 = arith.constant 8 : index
    %c0_65 = arith.constant 0 : index
    %61 = vector.load %arg11[%c0_63, %c8_64, %c0_65] : memref<10x25x4xf32, #tpu.memory_space<vmem>>, vector<10x16x4xf32>
    tpu.vector_store %arg11[%c0_63, %c8_64, %c0_65], %60 {strides = array<i32>} : memref<10x25x4xf32, #tpu.memory_space<vmem>>, vector<10x16x4xf32>,
    %c0_i32_66 = arith.constant 0 : i32
    %62 = arith.cmpi eq, %arg1, %c0_i32_66 : i32
    %63 = arith.extui %62 : i1 to i32
    %c0_i32_67 = arith.constant 0 : i32
    %64 = arith.cmpi ne, %63, %c0_i32_67 : i32
    scf.if %64 {
      %cst_120 = arith.constant 0.000000e+00 : f32
      %113 = vector.broadcast %cst_120 : f32 to vector<1x16x4xf32>
      %c0_121 = arith.constant 0 : index
      %c8_122 = arith.constant 8 : index
      %c0_123 = arith.constant 0 : index
      %114 = vector.load %arg11[%c0_121, %c8_122, %c0_123] : memref<10x25x4xf32, #tpu.memory_space<vmem>>, vector<1x16x4xf32>
      tpu.vector_store %arg11[%c0_121, %c8_122, %c0_123], %113 {strides = array<i32>} : memref<10x25x4xf32, #tpu.memory_space<vmem>>, vector<1x16x4xf32>,
    } else {
    }
    %c1_i32_68 = arith.constant 1 : i32
    %65 = arith.cmpi eq, %arg1, %c1_i32_68 : i32
    %66 = arith.extui %65 : i1 to i32
    %c0_i32_69 = arith.constant 0 : i32
    %67 = arith.cmpi ne, %66, %c0_i32_69 : i32
    scf.if %67 {
      %cst_120 = arith.constant 0.000000e+00 : f32
      %113 = vector.broadcast %cst_120 : f32 to vector<1x16x4xf32>
      %c9_121 = arith.constant 9 : index
      %c8_122 = arith.constant 8 : index
      %c0_123 = arith.constant 0 : index
      %114 = vector.load %arg11[%c9_121, %c8_122, %c0_123] : memref<10x25x4xf32, #tpu.memory_space<vmem>>, vector<1x16x4xf32>
      tpu.vector_store %arg11[%c9_121, %c8_122, %c0_123], %113 {strides = array<i32>} : memref<10x25x4xf32, #tpu.memory_space<vmem>>, vector<1x16x4xf32>,
    } else {
    }
    %c0_70 = arith.constant 0 : index
    %c7_71 = arith.constant 7 : index
    %c0_72 = arith.constant 0 : index
    %68 = vector.load %arg11[%c0_70, %c7_71, %c0_72] : memref<10x25x4xf32, #tpu.memory_space<vmem>>, vector<8x16x4xf32>
    %69 = vector.shape_cast %68 : vector<8x16x4xf32> to vector<128x4xf32>
    %c0_73 = arith.constant 0 : index
    %c8_74 = arith.constant 8 : index
    %c0_75 = arith.constant 0 : index
    %70 = vector.load %arg11[%c0_73, %c8_74, %c0_75] : memref<10x25x4xf32, #tpu.memory_space<vmem>>, vector<8x16x4xf32>
    %71 = vector.shape_cast %70 : vector<8x16x4xf32> to vector<128x4xf32>
    %c0_76 = arith.constant 0 : index
    %c9_77 = arith.constant 9 : index
    %c0_78 = arith.constant 0 : index
    %72 = vector.load %arg11[%c0_76, %c9_77, %c0_78] : memref<10x25x4xf32, #tpu.memory_space<vmem>>, vector<8x16x4xf32>
    %73 = vector.shape_cast %72 : vector<8x16x4xf32> to vector<128x4xf32>
    %74 = tpu.concatenate %69, %71, %73 in 1 : vector<128x4xf32>, vector<128x4xf32>, vector<128x4xf32> -> vector<128x12xf32>
    %c0_79 = arith.constant 0 : index
    %c0_80 = arith.constant 0 : index
    %c0_81 = arith.constant 0 : index
    %75 = vector.load %arg7[%c0_79, %c0_80, %c0_81] : memref<3x12x4xf32, #tpu.memory_space<vmem>>, vector<1x12x4xf32>
    %76 = vector.shape_cast %75 : vector<1x12x4xf32> to vector<12x4xf32>
    %cst_82 = arith.constant dense<0.000000e+00> : vector<128x4xf32>
    %77 = tpu.matmul %74, %76, %cst_82 {dimension_numbers = #tpu.dot_dimension_numbers<[1], [0], [0], [1], [0, 0, 1, 1], [], []>} : vector<128x12xf32>, vector<12x4xf32>, vector<128x4xf32> -> vector<128x4xf32>
    %c1_83 = arith.constant 1 : index
    %c7_84 = arith.constant 7 : index
    %c0_85 = arith.constant 0 : index
    %78 = vector.load %arg11[%c1_83, %c7_84, %c0_85] : memref<10x25x4xf32, #tpu.memory_space<vmem>>, vector<8x16x4xf32>
    %79 = vector.shape_cast %78 : vector<8x16x4xf32> to vector<128x4xf32>
    %c1_86 = arith.constant 1 : index
    %c8_87 = arith.constant 8 : index
    %c0_88 = arith.constant 0 : index
    %80 = vector.load %arg11[%c1_86, %c8_87, %c0_88] : memref<10x25x4xf32, #tpu.memory_space<vmem>>, vector<8x16x4xf32>
    %81 = vector.shape_cast %80 : vector<8x16x4xf32> to vector<128x4xf32>
    %c1_89 = arith.constant 1 : index
    %c9_90 = arith.constant 9 : index
    %c0_91 = arith.constant 0 : index
    %82 = vector.load %arg11[%c1_89, %c9_90, %c0_91] : memref<10x25x4xf32, #tpu.memory_space<vmem>>, vector<8x16x4xf32>
    %83 = vector.shape_cast %82 : vector<8x16x4xf32> to vector<128x4xf32>
    %84 = tpu.concatenate %79, %81, %83 in 1 : vector<128x4xf32>, vector<128x4xf32>, vector<128x4xf32> -> vector<128x12xf32>
    %c1_92 = arith.constant 1 : index
    %c0_93 = arith.constant 0 : index
    %c0_94 = arith.constant 0 : index
    %85 = vector.load %arg7[%c1_92, %c0_93, %c0_94] : memref<3x12x4xf32, #tpu.memory_space<vmem>>, vector<1x12x4xf32>
    %86 = vector.shape_cast %85 : vector<1x12x4xf32> to vector<12x4xf32>
    %cst_95 = arith.constant dense<0.000000e+00> : vector<128x4xf32>
    %87 = tpu.matmul %84, %86, %cst_95 {dimension_numbers = #tpu.dot_dimension_numbers<[1], [0], [0], [1], [0, 0, 1, 1], [], []>} : vector<128x12xf32>, vector<12x4xf32>, vector<128x4xf32> -> vector<128x4xf32>
    %88 = arith.addf %77, %87 : vector<128x4xf32>
    %c2_96 = arith.constant 2 : index
    %c7_97 = arith.constant 7 : index
    %c0_98 = arith.constant 0 : index
    %89 = vector.load %arg11[%c2_96, %c7_97, %c0_98] : memref<10x25x4xf32, #tpu.memory_space<vmem>>, vector<8x16x4xf32>
    %90 = vector.shape_cast %89 : vector<8x16x4xf32> to vector<128x4xf32>
    %c2_99 = arith.constant 2 : index
    %c8_100 = arith.constant 8 : index
    %c0_101 = arith.constant 0 : index
    %91 = vector.load %arg11[%c2_99, %c8_100, %c0_101] : memref<10x25x4xf32, #tpu.memory_space<vmem>>, vector<8x16x4xf32>
    %92 = vector.shape_cast %91 : vector<8x16x4xf32> to vector<128x4xf32>
    %c2_102 = arith.constant 2 : index
    %c9_103 = arith.constant 9 : index
    %c0_104 = arith.constant 0 : index
    %93 = vector.load %arg11[%c2_102, %c9_103, %c0_104] : memref<10x25x4xf32, #tpu.memory_space<vmem>>, vector<8x16x4xf32>
    %94 = vector.shape_cast %93 : vector<8x16x4xf32> to vector<128x4xf32>
    %95 = tpu.concatenate %90, %92, %94 in 1 : vector<128x4xf32>, vector<128x4xf32>, vector<128x4xf32> -> vector<128x12xf32>
    %c2_105 = arith.constant 2 : index
    %c0_106 = arith.constant 0 : index
    %c0_107 = arith.constant 0 : index
    %96 = vector.load %arg7[%c2_105, %c0_106, %c0_107] : memref<3x12x4xf32, #tpu.memory_space<vmem>>, vector<1x12x4xf32>
    %97 = vector.shape_cast %96 : vector<1x12x4xf32> to vector<12x4xf32>
    %cst_108 = arith.constant dense<0.000000e+00> : vector<128x4xf32>
    %98 = tpu.matmul %95, %97, %cst_108 {dimension_numbers = #tpu.dot_dimension_numbers<[1], [0], [0], [1], [0, 0, 1, 1], [], []>} : vector<128x12xf32>, vector<12x4xf32>, vector<128x4xf32> -> vector<128x4xf32>
    %99 = arith.addf %88, %98 : vector<128x4xf32>
    %c0_109 = arith.constant 0 : index
    %c0_110 = arith.constant 0 : index
    %c0_111 = arith.constant 0 : index
    %c0_112 = arith.constant 0 : index
    %100 = vector.load %arg2[%c0_109, %c0_110, %c0_111, %c0_112] : memref<1x8x16x4xf32, #tpu.memory_space<vmem>>, vector<1x8x16x4xf32>
    %101 = vector.shape_cast %100 : vector<1x8x16x4xf32> to vector<8x16x4xf32>
    %102 = vector.shape_cast %101 : vector<8x16x4xf32> to vector<128x4xf32>
    %c0_113 = arith.constant 0 : index
    %c0_114 = arith.constant 0 : index
    %103 = vector.load %arg8[%c0_113, %c0_114] : memref<1x4xf32, #tpu.memory_space<vmem>>, vector<1x4xf32>
    %104 = vector.broadcast %103 : vector<1x4xf32> to vector<128x4xf32>
    %105 = arith.addf %99, %104 : vector<128x4xf32>
    %106 = arith.addf %105, %102 : vector<128x4xf32>
    %cst_115 = arith.constant 0.000000e+00 : f32
    %107 = vector.broadcast %cst_115 : f32 to vector<128x4xf32>
    %108 = arith.maximumf %106, %107 : vector<128x4xf32>
    %109 = vector.shape_cast %108 : vector<128x4xf32> to vector<8x16x4xf32>
    %c0_116 = arith.constant 0 : index
    %c0_117 = arith.constant 0 : index
    %c0_118 = arith.constant 0 : index
    %c0_119 = arith.constant 0 : index
    %110 = vector.load %arg9[%c0_116, %c0_117, %c0_118, %c0_119] : memref<1x8x16x4xf32, #tpu.memory_space<vmem>>, vector<1x8x16x4xf32>
    %111 = vector.shape_cast %110 : vector<1x8x16x4xf32> to vector<8x16x4xf32>
    %112 = vector.shape_cast %109 : vector<8x16x4xf32> to vector<1x8x16x4xf32>
    tpu.vector_store %arg9[%c0_116, %c0_117, %c0_118, %c0_119], %112 {strides = array<i32>} : memref<1x8x16x4xf32, #tpu.memory_space<vmem>>, vector<1x8x16x4xf32>,
    return
  }
  func.func @transform_0(%arg0: i32, %arg1: i32) -> (i32, i32, i32, i32) {
    %c0_i32 = arith.constant 0 : i32
    %c0_i32_0 = arith.constant 0 : i32
    %c0_i32_1 = arith.constant 0 : i32
    return %arg0, %arg1, %c0_i32, %c0_i32_0 : i32, i32, i32, i32
  }
  func.func @transform_1(%arg0: i32, %arg1: i32) -> (i32, i32, i32, i32) {
    %c4_i32 = arith.constant 4 : i32
    %0 = arith.muli %arg1, %c4_i32 : i32
    %c1_i32 = arith.constant 1 : i32
    %1 = arith.subi %0, %c1_i32 : i32
    %c0_i32 = arith.constant 0 : i32
    %2 = arith.maxsi %1, %c0_i32 : i32
    %c0_i32_0 = arith.constant 0 : i32
    %c0_i32_1 = arith.constant 0 : i32
    %c0_i32_2 = arith.constant 0 : i32
    return %arg0, %2, %c0_i32_0, %c0_i32_1 : i32, i32, i32, i32
  }
  func.func @transform_2(%arg0: i32, %arg1: i32) -> (i32, i32, i32, i32) {
    %c1_i32 = arith.constant 1 : i32
    %0 = arith.addi %arg1, %c1_i32 : i32
    %c4_i32 = arith.constant 4 : i32
    %1 = arith.muli %0, %c4_i32 : i32
    %c7_i32 = arith.constant 7 : i32
    %2 = arith.minsi %1, %c7_i32 : i32
    %c0_i32 = arith.constant 0 : i32
    %c0_i32_0 = arith.constant 0 : i32
    %c0_i32_1 = arith.constant 0 : i32
    return %arg0, %2, %c0_i32, %c0_i32_0 : i32, i32, i32, i32
  }
  func.func @transform_3(%arg0: i32, %arg1: i32) -> (i32, i32, i32) {
    %c0_i32 = arith.constant 0 : i32
    %c0_i32_0 = arith.constant 0 : i32
    %c0_i32_1 = arith.constant 0 : i32
    %c0_i32_2 = arith.constant 0 : i32
    return %c0_i32, %c0_i32_0, %c0_i32_1 : i32, i32, i32
  }
  func.func @transform_4(%arg0: i32, %arg1: i32) -> (i32, i32) {
    %c0_i32 = arith.constant 0 : i32
    %c0_i32_0 = arith.constant 0 : i32
    %c0_i32_1 = arith.constant 0 : i32
    return %c0_i32, %c0_i32_0 : i32, i32
  }
  func.func @transform_5(%arg0: i32, %arg1: i32) -> (i32, i32, i32) {
    %c0_i32 = arith.constant 0 : i32
    %c0_i32_0 = arith.constant 0 : i32
    %c0_i32_1 = arith.constant 0 : i32
    %c0_i32_2 = arith.constant 0 : i32
    return %c0_i32, %c0_i32_0, %c0_i32_1 : i32, i32, i32
  }
  func.func @transform_6(%arg0: i32, %arg1: i32) -> (i32, i32) {
    %c0_i32 = arith.constant 0 : i32
    %c0_i32_0 = arith.constant 0 : i32
    %c0_i32_1 = arith.constant 0 : i32
    return %c0_i32, %c0_i32_0 : i32, i32
  }
  func.func @transform_7(%arg0: i32, %arg1: i32) -> (i32, i32, i32, i32) {
    %c0_i32 = arith.constant 0 : i32
    %c0_i32_0 = arith.constant 0 : i32
    %c0_i32_1 = arith.constant 0 : i32
    return %arg0, %arg1, %c0_i32, %c0_i32_0 : i32, i32, i32, i32
  }
}

</mosaic_0001>

<llo_original>
// kernel: tpu_custom_call.1
$region0: #{tpu_custom_call.1}
  #allocation0 [shape = 'u32[]', space=smem, size = 0x4, offset = 0x4, fixed_abs, tag = 'smem constant byte address 0x4 - core index']
  #allocation1 [shape = 'u32[144,128]{1,0:T(1,128)}', space=vmem, size = 0x12000, scoped, tag = 'internal scratch']
  #allocation2 [shape = 'f32[12,25,4]{2,1,0:T(8,128)}', space=vmem, size = 0x30000, scoped, tag = 'scratch operand']
  #allocation3 [shape = 'f32[10,25,4]{2,1,0:T(8,128)}', space=vmem, size = 0x28000, scoped, tag = 'scratch operand']
  %s0 = inlined_call_operand.vmem [shape: f32[2,16,16,4], index: 0, kind: input, shape index: {}]
  %s1 = inlined_call_operand.vmem [shape: f32[2,16,16,4], index: 1, kind: input, shape index: {}]
  %s2 = inlined_call_operand.vmem [shape: f32[2,16,16,4], index: 2, kind: input, shape index: {}]
  %s3 = inlined_call_operand.vmem [shape: f32[3,12,4], index: 3, kind: input, shape index: {}]
  %s4 = inlined_call_operand.vmem [shape: f32[1,4], index: 4, kind: input, shape index: {}]
  %s5 = inlined_call_operand.vmem [shape: f32[3,12,4], index: 5, kind: input, shape index: {}]
  %s6 = inlined_call_operand.vmem [shape: f32[1,4], index: 6, kind: input, shape index: {}]
  %s7 = inlined_call_operand.vmem [shape: f32[2,16,16,4], index: 7, kind: output, shape index: {}]
  %s8 = sld [smem:[#allocation0]]
  $region85: #{tpu_custom_call.1} parent=0
    _
  %s10 = ssub.s32 1, %s8
  %s11 = scalar_select 0, %s10, %s8
  loop: start=0, step=1, limit=6
  $region2: #{tpu_custom_call.1} parent=0 // loop_pre_header
    _
  $region3: #{tpu_custom_call.1} parent=0 // loop_header
    %s13 = sphi 0, %s17
    %p14 = scmp.ge.s32.totalorder %s13, 6
    %s20 = sphi 0, %s32
    %s21 = sphi 0, %s28
    %s22 = sphi 0, %s20
    %s23 = sphi 0, %s21
    %s24 = sphi 0, %s22
    %s25 = sphi 0, %s23
    %s37 = sphi 0, %s39
    %s40 = sphi 0, %s37
    %s41 = sphi 0, %s40
    %s57 = sphi 0, %s41
    %s73 = sphi 0, %s75
    %s76 = sphi 0, %s73
    %s77 = sphi 0, %s76
    %s93 = sphi 0, %s77
    %s109 = sphi 0, %s111
    %s112 = sphi 0, %s109
    %s113 = sphi 0, %s112
    %s129 = sphi 0, %s113
    %s133 = sphi 0, %s133
    %s135 = sphi 0, %s133
    %s136 = sphi 0, %s135
    %s150 = sphi 0, %s136
    %s154 = sphi 0, %s154
    %s156 = sphi 0, %s154
    %s157 = sphi 0, %s156
    %s171 = sphi 0, %s157
    %s175 = sphi 0, %s175
    %s177 = sphi 0, %s175
    %s178 = sphi 0, %s177
    %s192 = sphi 0, %s178
    %s196 = sphi 0, %s196
    %s198 = sphi 0, %s196
    %s199 = sphi 0, %s198
    %s213 = sphi 0, %s199
    %s221 = sphi 0, %s223
    %s224 = sphi 0, %s221
    %s225 = sphi 0, %s224
    %s241 = sphi 0, %s225
  $region4: #{tpu_custom_call.1} parent=0 // loop_header_branch
    %16 = sbr.rel (%p14) target = $region8
  $region5: #{tpu_custom_call.1} parent=0 // loop_body
    %s18 = ssub.s32 %s13, 1
    %s19 = ssub.s32 %s13, 2
    %s26 = sadd.s32 1, %s21
    %p27 = scmp.ge.s32.totalorder %s26, 2
    %s28 = scalar_select %p27, 0, %s26
    %s29 = sadd.s32 1, %s20
    %s30 = scalar_select %p27, %s29, %s20
    %p31 = scmp.ge.s32.totalorder %s30, 2
    %s32 = scalar_select %p31, 0, %s30
    %s33 = ssub.s32 %s20, %s32
    %s34 = ssub.s32 %s21, %s28
    %s35 = sor.u32 %s33, %s34
    %p36 = scmp.eq.s32.totalorder %s35, 0
    %s38 = sadd.s32 %s37, 1
    %s39 = scalar_select %p36, %s37, %s38
    %p42 = pneg %p36
    %p43 = scmp.eq.s32.totalorder %s13, 3
    %p44 = por %p42, %p43
    %p45 = scmp.ne.s32.totalorder %s37, %s40
    %p46 = scmp.eq.s32.totalorder %s13, 0
    %p47 = por %p45, %p46
    %p48 = scmp.ne.s32.totalorder %s37, %s40
    %p49 = scmp.eq.s32.totalorder %s18, 3
    %p50 = por %p48, %p49
    %p51 = scmp.ne.s32.totalorder %s40, %s41
    %p52 = scmp.eq.s32.totalorder %s18, 0
    %p53 = por %p51, %p52
    %p54 = scmp.ne.s32.totalorder %s40, %s41
    %p55 = scmp.eq.s32.totalorder %s19, 3
    %p56 = por %p54, %p55
    %p58 = scmp.ne.s32.totalorder %s41, %s57
    %p59 = scmp.eq.s32.totalorder %s19, 0
    %p60 = por %p58, %p59
    %s61 = smul.u32 %s21, 4
    %s62 = ssub.s32 %s61, 1
    %p63 = scmp.gt.s32.totalorder %s62, 0
    %s64 = scalar_select %p63, %s62, 0
    %s65 = smul.u32 %s28, 4
    %s66 = ssub.s32 %s65, 1
    %p67 = scmp.gt.s32.totalorder %s66, 0
    %s68 = scalar_select %p67, %s66, 0
    %s69 = ssub.s32 %s20, %s32
    %s70 = ssub.s32 %s64, %s68
    %s71 = sor.u32 %s69, %s70
    %p72 = scmp.eq.s32.totalorder %s71, 0
    %s74 = sadd.s32 %s73, 1
    %s75 = scalar_select %p72, %s73, %s74
    %p78 = pneg %p72
    %p79 = scmp.eq.s32.totalorder %s13, 3
    %p80 = por %p78, %p79
    %p81 = scmp.ne.s32.totalorder %s73, %s76
    %p82 = scmp.eq.s32.totalorder %s13, 0
    %p83 = por %p81, %p82
    %p84 = scmp.ne.s32.totalorder %s73, %s76
    %p85 = scmp.eq.s32.totalorder %s18, 3
    %p86 = por %p84, %p85
    %p87 = scmp.ne.s32.totalorder %s76, %s77
    %p88 = scmp.eq.s32.totalorder %s18, 0
    %p89 = por %p87, %p88
    %p90 = scmp.ne.s32.totalorder %s76, %s77
    %p91 = scmp.eq.s32.totalorder %s19, 3
    %p92 = por %p90, %p91
    %p94 = scmp.ne.s32.totalorder %s77, %s93
    %p95 = scmp.eq.s32.totalorder %s19, 0
    %p96 = por %p94, %p95
    %s97 = sadd.s32 %s21, 1
    %s98 = smul.u32 %s97, 4
    %p99 = scmp.lt.s32.totalorder %s98, 7
    %s100 = scalar_select %p99, %s98, 7
    %s101 = sadd.s32 %s28, 1
    %s102 = smul.u32 %s101, 4
    %p103 = scmp.lt.s32.totalorder %s102, 7
    %s104 = scalar_select %p103, %s102, 7
    %s105 = ssub.s32 %s20, %s32
    %s106 = ssub.s32 %s100, %s104
    %s107 = sor.u32 %s105, %s106
    %p108 = scmp.eq.s32.totalorder %s107, 0
    %s110 = sadd.s32 %s109, 1
    %s111 = scalar_select %p108, %s109, %s110
    %p114 = pneg %p108
    %p115 = scmp.eq.s32.totalorder %s13, 3
    %p116 = por %p114, %p115
    %p117 = scmp.ne.s32.totalorder %s109, %s112
    %p118 = scmp.eq.s32.totalorder %s13, 0
    %p119 = por %p117, %p118
    %p120 = scmp.ne.s32.totalorder %s109, %s112
    %p121 = scmp.eq.s32.totalorder %s18, 3
    %p122 = por %p120, %p121
    %p123 = scmp.ne.s32.totalorder %s112, %s113
    %p124 = scmp.eq.s32.totalorder %s18, 0
    %p125 = por %p123, %p124
    %p126 = scmp.ne.s32.totalorder %s112, %s113
    %p127 = scmp.eq.s32.totalorder %s19, 3
    %p128 = por %p126, %p127
    %p130 = scmp.ne.s32.totalorder %s113, %s129
    %p131 = scmp.eq.s32.totalorder %s19, 0
    %p132 = por %p130, %p131
    %s134 = sadd.s32 %s133, 1
    %p137 = scmp.eq.s32.totalorder %s13, 3
    %p138 = scmp.ne.s32.totalorder %s133, %s135
    %p139 = scmp.eq.s32.totalorder %s13, 0
    %p140 = por %p138, %p139
    %p141 = scmp.ne.s32.totalorder %s133, %s135
    %p142 = scmp.eq.s32.totalorder %s18, 3
    %p143 = por %p141, %p142
    %p144 = scmp.ne.s32.totalorder %s135, %s136
    %p145 = scmp.eq.s32.totalorder %s18, 0
    %p146 = por %p144, %p145
    %p147 = scmp.ne.s32.totalorder %s135, %s136
    %p148 = scmp.eq.s32.totalorder %s19, 3
    %p149 = por %p147, %p148
    %p151 = scmp.ne.s32.totalorder %s136, %s150
    %p152 = scmp.eq.s32.totalorder %s19, 0
    %p153 = por %p151, %p152
    %s155 = sadd.s32 %s154, 1
    %p158 = scmp.eq.s32.totalorder %s13, 3
    %p159 = scmp.ne.s32.totalorder %s154, %s156
    %p160 = scmp.eq.s32.totalorder %s13, 0
    %p161 = por %p159, %p160
    %p162 = scmp.ne.s32.totalorder %s154, %s156
    %p163 = scmp.eq.s32.totalorder %s18, 3
    %p164 = por %p162, %p163
    %p165 = scmp.ne.s32.totalorder %s156, %s157
    %p166 = scmp.eq.s32.totalorder %s18, 0
    %p167 = por %p165, %p166
    %p168 = scmp.ne.s32.totalorder %s156, %s157
    %p169 = scmp.eq.s32.totalorder %s19, 3
    %p170 = por %p168, %p169
    %p172 = scmp.ne.s32.totalorder %s157, %s171
    %p173 = scmp.eq.s32.totalorder %s19, 0
    %p174 = por %p172, %p173
    %s176 = sadd.s32 %s175, 1
    %p179 = scmp.eq.s32.totalorder %s13, 3
    %p180 = scmp.ne.s32.totalorder %s175, %s177
    %p181 = scmp.eq.s32.totalorder %s13, 0
    %p182 = por %p180, %p181
    %p183 = scmp.ne.s32.totalorder %s175, %s177
    %p184 = scmp.eq.s32.totalorder %s18, 3
    %p185 = por %p183, %p184
    %p186 = scmp.ne.s32.totalorder %s177, %s178
    %p187 = scmp.eq.s32.totalorder %s18, 0
    %p188 = por %p186, %p187
    %p189 = scmp.ne.s32.totalorder %s177, %s178
    %p190 = scmp.eq.s32.totalorder %s19, 3
    %p191 = por %p189, %p190
    %p193 = scmp.ne.s32.totalorder %s178, %s192
    %p194 = scmp.eq.s32.totalorder %s19, 0
    %p195 = por %p193, %p194
    %s197 = sadd.s32 %s196, 1
    %p200 = scmp.eq.s32.totalorder %s13, 3
    %p201 = scmp.ne.s32.totalorder %s196, %s198
    %p202 = scmp.eq.s32.totalorder %s13, 0
    %p203 = por %p201, %p202
    %p204 = scmp.ne.s32.totalorder %s196, %s198
    %p205 = scmp.eq.s32.totalorder %s18, 3
    %p206 = por %p204, %p205
    %p207 = scmp.ne.s32.totalorder %s198, %s199
    %p208 = scmp.eq.s32.totalorder %s18, 0
    %p209 = por %p207, %p208
    %p210 = scmp.ne.s32.totalorder %s198, %s199
    %p211 = scmp.eq.s32.totalorder %s19, 3
    %p212 = por %p210, %p211
    %p214 = scmp.ne.s32.totalorder %s199, %s213
    %p215 = scmp.eq.s32.totalorder %s19, 0
    %p216 = por %p214, %p215
    %s217 = ssub.s32 %s20, %s32
    %s218 = ssub.s32 %s21, %s28
    %s219 = sor.u32 %s217, %s218
    %p220 = scmp.eq.s32.totalorder %s219, 0
    %s222 = sadd.s32 %s221, 1
    %s223 = scalar_select %p220, %s221, %s222
    %p226 = pneg %p220
    %p227 = scmp.eq.s32.totalorder %s13, 3
    %p228 = por %p226, %p227
    %p229 = scmp.ne.s32.totalorder %s221, %s224
    %p230 = scmp.eq.s32.totalorder %s13, 0
    %p231 = por %p229, %p230
    %p232 = scmp.ne.s32.totalorder %s221, %s224
    %p233 = scmp.eq.s32.totalorder %s18, 3
    %p234 = por %p232, %p233
    %p235 = scmp.ne.s32.totalorder %s224, %s225
    %p236 = scmp.eq.s32.totalorder %s18, 0
    %p237 = por %p235, %p236
    %p238 = scmp.ne.s32.totalorder %s224, %s225
    %p239 = scmp.eq.s32.totalorder %s19, 3
    %p240 = por %p238, %p239
    %p242 = scmp.ne.s32.totalorder %s225, %s241
    %p243 = scmp.eq.s32.totalorder %s19, 0
    %p244 = por %p242, %p243
    %p245 = scmp.le.s32.totalorder 1, %s13
    %p246 = scmp.lt.s32.totalorder %s13, 5
    %p247 = pnand %p245, %p246
    %p248 = pneg %p247
    // Predicated region
    $region9: #{tpu_custom_call.1} parent=5 // pred_check
      _
    $region10: #{tpu_custom_call.1} parent=5 // pred_check_branch
      %250 = sbr.rel (%p247) target = $region12
    $region11: #{tpu_custom_call.1} parent=5 // pred_region
      %s251 = ssub.s32 %s13, 1
      // Predicated region
      $region13: #{tpu_custom_call.1} parent=11 // pred_check
        %p252 = pneg %p146
      $region14: #{tpu_custom_call.1} parent=11 // pred_check_branch
        %254 = sbr.rel (%p252) target = $region16
      $region15: #{tpu_custom_call.1} parent=11 // pred_region
        _
      $region16: #{tpu_custom_call.1} parent=11 // pred_fallthru
        _
      // Predicated region
      $region17: #{tpu_custom_call.1} parent=11 // pred_check
        %p255 = pneg %p167
      $region18: #{tpu_custom_call.1} parent=11 // pred_check_branch
        %257 = sbr.rel (%p255) target = $region20
      $region19: #{tpu_custom_call.1} parent=11 // pred_region
        _
      $region20: #{tpu_custom_call.1} parent=11 // pred_fallthru
        _
      // Predicated region
      $region21: #{tpu_custom_call.1} parent=11 // pred_check
        %p258 = pneg %p188
      $region22: #{tpu_custom_call.1} parent=11 // pred_check_branch
        %260 = sbr.rel (%p258) target = $region24
      $region23: #{tpu_custom_call.1} parent=11 // pred_region
        _
      $region24: #{tpu_custom_call.1} parent=11 // pred_fallthru
        _
      // Predicated region
      $region25: #{tpu_custom_call.1} parent=11 // pred_check
        %p261 = pneg %p209
      $region26: #{tpu_custom_call.1} parent=11 // pred_check_branch
        %263 = sbr.rel (%p261) target = $region28
      $region27: #{tpu_custom_call.1} parent=11 // pred_region
        _
      $region28: #{tpu_custom_call.1} parent=11 // pred_fallthru
        _
    $region12: #{tpu_custom_call.1} parent=5 // pred_fallthru
      _
    %p264 = scmp.lt.s32.totalorder %s13, 4
    // Predicated region
    $region29: #{tpu_custom_call.1} parent=5 // pred_check
      %p265 = pneg %p264
    $region30: #{tpu_custom_call.1} parent=5 // pred_check_branch
      %267 = sbr.rel (%p265) target = $region32
    $region31: #{tpu_custom_call.1} parent=5 // pred_region
      // Predicated region
      $region33: #{tpu_custom_call.1} parent=31 // pred_check
        %p268 = pneg %p47
      $region34: #{tpu_custom_call.1} parent=31 // pred_check_branch
        %270 = sbr.rel (%p268) target = $region36
      $region35: #{tpu_custom_call.1} parent=31 // pred_region
        %s271 = smul.u32 8, %s21
        %p272 = scmp.lt.s32.totalorder %s20, 1
        %s273 = scalar_select %p272, %s20, 1
        %p274 = scmp.lt.s32.totalorder %s271, 15
        %s275 = scalar_select %p274, %s271, 15
        %s276 = smul.addr %s275, 2
        %s277 = smul.addr %s273, 32
        %s278 = sadd.s32 %s276, %s277
        %s279 = smul.addr %s278, 8
        %s280 = scalar_lea.vmem %s0, %s279
        %s281 = smul.u32 8, %s21
      $region36: #{tpu_custom_call.1} parent=31 // pred_fallthru
        _
      // Predicated region
      $region37: #{tpu_custom_call.1} parent=31 // pred_check
        %p282 = pneg %p83
      $region38: #{tpu_custom_call.1} parent=31 // pred_check_branch
        %284 = sbr.rel (%p282) target = $region40
      $region39: #{tpu_custom_call.1} parent=31 // pred_region
        %s285 = smul.u32 %s21, 4
        %s286 = ssub.s32 %s285, 1
        %p287 = scmp.gt.s32.totalorder %s286, 0
        %s288 = scalar_select %p287, %s286, 0
        %s289 = smul.u32 2, %s288
        %p290 = scmp.lt.s32.totalorder %s20, 1
        %s291 = scalar_select %p290, %s20, 1
        %p292 = scmp.lt.s32.totalorder %s289, 15
        %s293 = scalar_select %p292, %s289, 15
        %s294 = smul.addr %s293, 2
        %s295 = smul.addr %s291, 32
        %s296 = sadd.s32 %s294, %s295
        %s297 = smul.addr %s296, 8
        %s298 = scalar_lea.vmem %s1, %s297
        %s299 = smul.u32 %s21, 4
        %s300 = ssub.s32 %s299, 1
        %p301 = scmp.gt.s32.totalorder %s300, 0
        %s302 = scalar_select %p301, %s300, 0
        %s303 = smul.u32 2, %s302
      $region40: #{tpu_custom_call.1} parent=31 // pred_fallthru
        _
      // Predicated region
      $region41: #{tpu_custom_call.1} parent=31 // pred_check
        %p304 = pneg %p119
      $region42: #{tpu_custom_call.1} parent=31 // pred_check_branch
        %306 = sbr.rel (%p304) target = $region44
      $region43: #{tpu_custom_call.1} parent=31 // pred_region
        %s307 = sadd.s32 %s21, 1
        %s308 = smul.u32 %s307, 4
        %p309 = scmp.lt.s32.totalorder %s308, 7
        %s310 = scalar_select %p309, %s308, 7
        %s311 = smul.u32 2, %s310
        %p312 = scmp.lt.s32.totalorder %s20, 1
        %s313 = scalar_select %p312, %s20, 1
        %p314 = scmp.lt.s32.totalorder %s311, 15
        %s315 = scalar_select %p314, %s311, 15
        %s316 = smul.addr %s315, 2
        %s317 = smul.addr %s313, 32
        %s318 = sadd.s32 %s316, %s317
        %s319 = smul.addr %s318, 8
        %s320 = scalar_lea.vmem %s2, %s319
        %s321 = sadd.s32 %s21, 1
        %s322 = smul.u32 %s321, 4
        %p323 = scmp.lt.s32.totalorder %s322, 7
        %s324 = scalar_select %p323, %s322, 7
        %s325 = smul.u32 2, %s324
      $region44: #{tpu_custom_call.1} parent=31 // pred_fallthru
        _
    $region32: #{tpu_custom_call.1} parent=5 // pred_fallthru
      _
    %p326 = scmp.le.s32.totalorder 1, %s13
    %p327 = scmp.lt.s32.totalorder %s13, 5
    %p328 = pnand %p326, %p327
    %p329 = pneg %p328
    // Predicated region
    $region45: #{tpu_custom_call.1} parent=5 // pred_check
      _
    $region46: #{tpu_custom_call.1} parent=5 // pred_check_branch
      %331 = sbr.rel (%p328) target = $region48
    $region47: #{tpu_custom_call.1} parent=5 // pred_region
      %s332 = ssub.s32 %s13, 1
      %s333 = smul.u32 8, %s23
      %p334 = scmp.lt.s32.totalorder %s22, 1
      %s335 = scalar_select %p334, %s22, 1
      %p336 = scmp.lt.s32.totalorder %s333, 15
      %s337 = scalar_select %p336, %s333, 15
      %s338 = smul.addr %s337, 2
      %s339 = smul.addr %s335, 32
      %s340 = sadd.s32 %s338, %s339
      %s341 = smul.addr %s340, 8
      %s342 = scalar_lea.vmem %s0, %s341
      %p343 = pneg %p53
      %p344 = pneg %p50
      %s345 = smul.u32 %s23, 4
      %s346 = ssub.s32 %s345, 1
      %p347 = scmp.gt.s32.totalorder %s346, 0
      %s348 = scalar_select %p347, %s346, 0
      %s349 = smul.u32 2, %s348
      %p350 = scmp.lt.s32.totalorder %s22, 1
      %s351 = scalar_select %p350, %s22, 1
      %p352 = scmp.lt.s32.totalorder %s349, 15
      %s353 = scalar_select %p352, %s349, 15
      %s354 = smul.addr %s353, 2
      %s355 = smul.addr %s351, 32
      %s356 = sadd.s32 %s354, %s355
      %s357 = smul.addr %s356, 8
      %s358 = scalar_lea.vmem %s1, %s357
      %p359 = pneg %p89
      %p360 = pneg %p86
      %s361 = sadd.s32 %s23, 1
      %s362 = smul.u32 %s361, 4
      %p363 = scmp.lt.s32.totalorder %s362, 7
      %s364 = scalar_select %p363, %s362, 7
      %s365 = smul.u32 2, %s364
      %p366 = scmp.lt.s32.totalorder %s22, 1
      %s367 = scalar_select %p366, %s22, 1
      %p368 = scmp.lt.s32.totalorder %s365, 15
      %s369 = scalar_select %p368, %s365, 15
      %s370 = smul.addr %s369, 2
      %s371 = smul.addr %s367, 32
      %s372 = sadd.s32 %s370, %s371
      %s373 = smul.addr %s372, 8
      %s374 = scalar_lea.vmem %s2, %s373
      %p375 = pneg %p125
      %p376 = pneg %p122
      %p377 = pneg %p146
      %p378 = pneg %p143
      %p379 = pneg %p167
      %p380 = pneg %p164
      %p381 = pneg %p188
      %p382 = pneg %p185
      %p383 = pneg %p209
      %p384 = pneg %p206
      %p385 = pneg %p237
      %p386 = pneg %p234
      %s387 = smul.u32 8, %s23
      %p388 = scmp.lt.s32.totalorder %s22, 1
      %s389 = scalar_select %p388, %s22, 1
      %p390 = scmp.lt.s32.totalorder %s387, 15
      %s391 = scalar_select %p390, %s387, 15
      %s392 = smul.addr %s391, 2
      %s393 = smul.addr %s389, 32
      %s394 = sadd.s32 %s392, %s393
      %s395 = smul.addr %s394, 8
      %s396 = scalar_lea.vmem %s7, %s395
      %s397 = smul.u32 8, %s23
      %p398 = scmp.lt.s32.totalorder %s22, 1
      %s399 = scalar_select %p398, %s22, 1
      %p400 = scmp.lt.s32.totalorder %s397, 15
      %s401 = scalar_select %p400, %s397, 15
      %s402 = smul.addr %s401, 2
      %s403 = smul.addr %s399, 32
      %s404 = sadd.s32 %s402, %s403
      %s405 = smul.addr %s404, 8
      %s406 = scalar_lea.vmem %s0, %s405
      %s407 = smul.u32 8, %s23
      %s408 = smul.u32 %s23, 4
      %s409 = ssub.s32 %s408, 1
      %p410 = scmp.gt.s32.totalorder %s409, 0
      %s411 = scalar_select %p410, %s409, 0
      %s412 = smul.u32 2, %s411
      %p413 = scmp.lt.s32.totalorder %s22, 1
      %s414 = scalar_select %p413, %s22, 1
      %p415 = scmp.lt.s32.totalorder %s412, 15
      %s416 = scalar_select %p415, %s412, 15
      %s417 = smul.addr %s416, 2
      %s418 = smul.addr %s414, 32
      %s419 = sadd.s32 %s417, %s418
      %s420 = smul.addr %s419, 8
      %s421 = scalar_lea.vmem %s1, %s420
      %s422 = smul.u32 %s23, 4
      %s423 = ssub.s32 %s422, 1
      %p424 = scmp.gt.s32.totalorder %s423, 0
      %s425 = scalar_select %p424, %s423, 0
      %s426 = smul.u32 2, %s425
      %s427 = sadd.s32 %s23, 1
      %s428 = smul.u32 %s427, 4
      %p429 = scmp.lt.s32.totalorder %s428, 7
      %s430 = scalar_select %p429, %s428, 7
      %s431 = smul.u32 2, %s430
      %p432 = scmp.lt.s32.totalorder %s22, 1
      %s433 = scalar_select %p432, %s22, 1
      %p434 = scmp.lt.s32.totalorder %s431, 15
      %s435 = scalar_select %p434, %s431, 15
      %s436 = smul.addr %s435, 2
      %s437 = smul.addr %s433, 32
      %s438 = sadd.s32 %s436, %s437
      %s439 = smul.addr %s438, 8
      %s440 = scalar_lea.vmem %s2, %s439
      %s441 = sadd.s32 %s23, 1
      %s442 = smul.u32 %s441, 4
      %p443 = scmp.lt.s32.totalorder %s442, 7
      %s444 = scalar_select %p443, %s442, 7
      %s445 = smul.u32 2, %s444
      %s446 = smul.u32 8, %s23
      %p447 = scmp.lt.s32.totalorder %s22, 1
      %s448 = scalar_select %p447, %s22, 1
      %p449 = scmp.lt.s32.totalorder %s446, 15
      %s450 = scalar_select %p449, %s446, 15
      %s451 = smul.addr %s450, 2
      %s452 = smul.addr %s448, 32
      %s453 = sadd.s32 %s451, %s452
      %s454 = smul.addr %s453, 8
      %s455 = scalar_lea.vmem %s7, %s454
      %s456 = smul.u32 8, %s23
      %vm457 = vcmask 24576
      %458 = vst.msk [vmem:[#allocation2 + $0x7] sm:$0x1] %vm457, 0.0
      %459 = vst.msk [vmem:[#allocation2 + $0x27] sm:$0x1] %vm457, 0.0
      %460 = vst.msk [vmem:[#allocation2 + $0x47] sm:$0x1] %vm457, 0.0
      %461 = vst.msk [vmem:[#allocation2 + $0x67] sm:$0x1] %vm457, 0.0
      %462 = vst.msk [vmem:[#allocation2 + $0x87] sm:$0x1] %vm457, 0.0
      %463 = vst.msk [vmem:[#allocation2 + $0xa7] sm:$0x1] %vm457, 0.0
      %464 = vst.msk [vmem:[#allocation2 + $0xc7] sm:$0x1] %vm457, 0.0
      %465 = vst.msk [vmem:[#allocation2 + $0xe7] sm:$0x1] %vm457, 0.0
      %466 = vst.msk [vmem:[#allocation2 + $0x107] sm:$0x1] %vm457, 0.0
      %467 = vst.msk [vmem:[#allocation2 + $0x127] sm:$0x1] %vm457, 0.0
      %468 = vst.msk [vmem:[#allocation2 + $0x147] sm:$0x1] %vm457, 0.0
      %469 = vst.msk [vmem:[#allocation2 + $0x167] sm:$0x1] %vm457, 0.0
      %470 = vst.msk [vmem:[#allocation2 + $0x18] sm:$0x1] %vm457, 0.0
      %471 = vst.msk [vmem:[#allocation2 + $0x38] sm:$0x1] %vm457, 0.0
      %472 = vst.msk [vmem:[#allocation2 + $0x58] sm:$0x1] %vm457, 0.0
      %473 = vst.msk [vmem:[#allocation2 + $0x78] sm:$0x1] %vm457, 0.0
      %474 = vst.msk [vmem:[#allocation2 + $0x98] sm:$0x1] %vm457, 0.0
      %475 = vst.msk [vmem:[#allocation2 + $0xb8] sm:$0x1] %vm457, 0.0
      %476 = vst.msk [vmem:[#allocation2 + $0xd8] sm:$0x1] %vm457, 0.0
      %477 = vst.msk [vmem:[#allocation2 + $0xf8] sm:$0x1] %vm457, 0.0
      %478 = vst.msk [vmem:[#allocation2 + $0x118] sm:$0x1] %vm457, 0.0
      %479 = vst.msk [vmem:[#allocation2 + $0x138] sm:$0x1] %vm457, 0.0
      %480 = vst.msk [vmem:[#allocation2 + $0x158] sm:$0x1] %vm457, 0.0
      %481 = vst.msk [vmem:[#allocation2 + $0x178] sm:$0x1] %vm457, 0.0
      %482 = vst.msk [vmem:[#allocation3 + $0x7] sm:$0x1] %vm457, 0.0
      %483 = vst.msk [vmem:[#allocation3 + $0x27] sm:$0x1] %vm457, 0.0
      %484 = vst.msk [vmem:[#allocation3 + $0x47] sm:$0x1] %vm457, 0.0
      %485 = vst.msk [vmem:[#allocation3 + $0x67] sm:$0x1] %vm457, 0.0
      %486 = vst.msk [vmem:[#allocation3 + $0x87] sm:$0x1] %vm457, 0.0
      %487 = vst.msk [vmem:[#allocation3 + $0xa7] sm:$0x1] %vm457, 0.0
      %488 = vst.msk [vmem:[#allocation3 + $0xc7] sm:$0x1] %vm457, 0.0
      %489 = vst.msk [vmem:[#allocation3 + $0xe7] sm:$0x1] %vm457, 0.0
      %490 = vst.msk [vmem:[#allocation3 + $0x107] sm:$0x1] %vm457, 0.0
      %491 = vst.msk [vmem:[#allocation3 + $0x127] sm:$0x1] %vm457, 0.0
      %492 = vst.msk [vmem:[#allocation3 + $0x18] sm:$0x1] %vm457, 0.0
      %493 = vst.msk [vmem:[#allocation3 + $0x38] sm:$0x1] %vm457, 0.0
      %494 = vst.msk [vmem:[#allocation3 + $0x58] sm:$0x1] %vm457, 0.0
      %495 = vst.msk [vmem:[#allocation3 + $0x78] sm:$0x1] %vm457, 0.0
      %496 = vst.msk [vmem:[#allocation3 + $0x98] sm:$0x1] %vm457, 0.0
      %497 = vst.msk [vmem:[#allocation3 + $0xb8] sm:$0x1] %vm457, 0.0
      %498 = vst.msk [vmem:[#allocation3 + $0xd8] sm:$0x1] %vm457, 0.0
      %499 = vst.msk [vmem:[#allocation3 + $0xf8] sm:$0x1] %vm457, 0.0
      %500 = vst.msk [vmem:[#allocation3 + $0x118] sm:$0x1] %vm457, 0.0
      %501 = vst.msk [vmem:[#allocation3 + $0x138] sm:$0x1] %vm457, 0.0
      %v502 = vld [vmem:[%s406] sm:$0xff]
      %v503 = vld [vmem:[%s406 + $0x8] sm:$0xff]
      %v504 = vld [vmem:[%s406 + $0x10] sm:$0xff]
      %v505 = vld [vmem:[%s406 + $0x18] sm:$0xff]
      %v506 = vld [vmem:[%s406 + $0x20] sm:$0xff]
      %v507 = vld [vmem:[%s406 + $0x28] sm:$0xff]
      %v508 = vld [vmem:[%s406 + $0x30] sm:$0xff]
      %v509 = vld [vmem:[%s406 + $0x38] sm:$0xff]
      %v510 = vld [vmem:[%s406 + $0x40] sm:$0xff]
      %v511 = vld [vmem:[%s406 + $0x48] sm:$0xff]
      %v512 = vld [vmem:[%s406 + $0x50] sm:$0xff]
      %v513 = vld [vmem:[%s406 + $0x58] sm:$0xff]
      %v514 = vld [vmem:[%s406 + $0x60] sm:$0xff]
      %v515 = vld [vmem:[%s406 + $0x68] sm:$0xff]
      %v516 = vld [vmem:[%s406 + $0x70] sm:$0xff]
      %v517 = vld [vmem:[%s406 + $0x78] sm:$0xff]
      %s518 = scalar_lea.vmem [#allocation2], 64
      %vm519 = vcmask 31744
      %520 = vst.msk [vmem:[%s518 + $0x8] sm:$0xff] %vm519, %v502
      %521 = vst.msk [vmem:[%s518 + $0x10] sm:$0xff] %vm519, %v503
      %522 = vst.msk [vmem:[%s518 + $0x28] sm:$0xff] %vm519, %v504
      %523 = vst.msk [vmem:[%s518 + $0x30] sm:$0xff] %vm519, %v505
      %524 = vst.msk [vmem:[%s518 + $0x48] sm:$0xff] %vm519, %v506
      %525 = vst.msk [vmem:[%s518 + $0x50] sm:$0xff] %vm519, %v507
      %526 = vst.msk [vmem:[%s518 + $0x68] sm:$0xff] %vm519, %v508
      %527 = vst.msk [vmem:[%s518 + $0x70] sm:$0xff] %vm519, %v509
      %528 = vst.msk [vmem:[%s518 + $0x88] sm:$0xff] %vm519, %v510
      %529 = vst.msk [vmem:[%s518 + $0x90] sm:$0xff] %vm519, %v511
      %530 = vst.msk [vmem:[%s518 + $0xa8] sm:$0xff] %vm519, %v512
      %531 = vst.msk [vmem:[%s518 + $0xb0] sm:$0xff] %vm519, %v513
      %532 = vst.msk [vmem:[%s518 + $0xc8] sm:$0xff] %vm519, %v514
      %533 = vst.msk [vmem:[%s518 + $0xd0] sm:$0xff] %vm519, %v515
      %534 = vst.msk [vmem:[%s518 + $0xe8] sm:$0xff] %vm519, %v516
      %535 = vst.msk [vmem:[%s518 + $0xf0] sm:$0xff] %vm519, %v517
      %p536 = scmp.gt.s32.totalorder %s23, 0
      // Predicated region
      $region49: #{tpu_custom_call.1} parent=47 // pred_check
        %p537 = pneg %p536
      $region50: #{tpu_custom_call.1} parent=47 // pred_check_branch
        %539 = sbr.rel (%p537) target = $region52
      $region51: #{tpu_custom_call.1} parent=47 // pred_region
        %v540 = vld [vmem:[%s421] sm:$0xff]
        %v541 = vld [vmem:[%s421 + $0x8] sm:$0xff]
        %v542 = vld [vmem:[%s421 + $0x10] sm:$0xff]
        %v543 = vld [vmem:[%s421 + $0x18] sm:$0xff]
        %544 = vst.msk [vmem:[#allocation2 + $0x8] sm:$0xff] %vm519, %v540
        %545 = vst.msk [vmem:[#allocation2 + $0x10] sm:$0xff] %vm519, %v541
        %546 = vst.msk [vmem:[#allocation2 + $0x28] sm:$0xff] %vm519, %v542
        %547 = vst.msk [vmem:[#allocation2 + $0x30] sm:$0xff] %vm519, %v543
      $region52: #{tpu_custom_call.1} parent=47 // pred_fallthru
        _
      %p548 = scmp.eq.s32.totalorder %s23, 0
      // Predicated region
      $region53: #{tpu_custom_call.1} parent=47 // pred_check
        %p549 = pneg %p548
      $region54: #{tpu_custom_call.1} parent=47 // pred_check_branch
        %551 = sbr.rel (%p549) target = $region56
      $region55: #{tpu_custom_call.1} parent=47 // pred_region
        %552 = vst.msk [vmem:[#allocation2 + $0x8] sm:$0xff] %vm519, 0.0
        %553 = vst.msk [vmem:[#allocation2 + $0x10] sm:$0xff] %vm519, 0.0
        %554 = vst.msk [vmem:[#allocation2 + $0x28] sm:$0xff] %vm519, 0.0
        %555 = vst.msk [vmem:[#allocation2 + $0x30] sm:$0xff] %vm519, 0.0
      $region56: #{tpu_custom_call.1} parent=47 // pred_fallthru
        _
      %p556 = scmp.lt.s32.totalorder %s23, 1
      // Predicated region
      $region57: #{tpu_custom_call.1} parent=47 // pred_check
        %p557 = pneg %p556
      $region58: #{tpu_custom_call.1} parent=47 // pred_check_branch
        %559 = sbr.rel (%p557) target = $region60
      $region59: #{tpu_custom_call.1} parent=47 // pred_region
        %v560 = vld [vmem:[%s440] sm:$0xff]
        %v561 = vld [vmem:[%s440 + $0x8] sm:$0xff]
        %v562 = vld [vmem:[%s440 + $0x10] sm:$0xff]
        %v563 = vld [vmem:[%s440 + $0x18] sm:$0xff]
        %s564 = scalar_lea.vmem [#allocation2], 320
        %565 = vst.msk [vmem:[%s564 + $0x8] sm:$0xff] %vm519, %v560
        %566 = vst.msk [vmem:[%s564 + $0x10] sm:$0xff] %vm519, %v561
        %567 = vst.msk [vmem:[%s564 + $0x28] sm:$0xff] %vm519, %v562
        %568 = vst.msk [vmem:[%s564 + $0x30] sm:$0xff] %vm519, %v563
      $region60: #{tpu_custom_call.1} parent=47 // pred_fallthru
        _
      %p569 = scmp.eq.s32.totalorder %s23, 1
      // Predicated region
      $region61: #{tpu_custom_call.1} parent=47 // pred_check
        %p570 = pneg %p569
      $region62: #{tpu_custom_call.1} parent=47 // pred_check_branch
        %572 = sbr.rel (%p570) target = $region64
      $region63: #{tpu_custom_call.1} parent=47 // pred_region
        %s573 = scalar_lea.vmem [#allocation2], 320
        %574 = vst.msk [vmem:[%s573 + $0x8] sm:$0xff] %vm519, 0.0
        %575 = vst.msk [vmem:[%s573 + $0x10] sm:$0xff] %vm519, 0.0
        %576 = vst.msk [vmem:[%s573 + $0x28] sm:$0xff] %vm519, 0.0
        %577 = vst.msk [vmem:[%s573 + $0x30] sm:$0xff] %vm519, 0.0
      $region64: #{tpu_custom_call.1} parent=47 // pred_fallthru
        _
      %v578 = vld [vmem:[#allocation2 + $0x7] sm:$0xff]
      %v579 = vld [vmem:[#allocation2 + $0xf] sm:$0xff]
      %v580 = vld [vmem:[#allocation2 + $0x27] sm:$0xff]
      %v581 = vld [vmem:[#allocation2 + $0x2f] sm:$0xff]
      %v582 = vld [vmem:[#allocation2 + $0x47] sm:$0xff]
      %v583 = vld [vmem:[#allocation2 + $0x4f] sm:$0xff]
      %v584 = vld [vmem:[#allocation2 + $0x67] sm:$0xff]
      %v585 = vld [vmem:[#allocation2 + $0x6f] sm:$0xff]
      %v586 = vld [vmem:[#allocation2 + $0x87] sm:$0xff]
      %v587 = vld [vmem:[#allocation2 + $0x8f] sm:$0xff]
      %v588 = vld [vmem:[#allocation2 + $0xa7] sm:$0xff]
      %v589 = vld [vmem:[#allocation2 + $0xaf] sm:$0xff]
      %v590 = vld [vmem:[#allocation2 + $0xc7] sm:$0xff]
      %v591 = vld [vmem:[#allocation2 + $0xcf] sm:$0xff]
      %v592 = vld [vmem:[#allocation2 + $0xe7] sm:$0xff]
      %v593 = vld [vmem:[#allocation2 + $0xef] sm:$0xff]
      %v594 = vld [vmem:[#allocation2 + $0x107] sm:$0xff]
      %v595 = vld [vmem:[#allocation2 + $0x10f] sm:$0xff]
      %v596 = vld [vmem:[#allocation2 + $0x127] sm:$0xff]
      %v597 = vld [vmem:[#allocation2 + $0x12f] sm:$0xff]
      %v598 = vld [vmem:[#allocation2 + $0x8] sm:$0xff]
      %v599 = vld [vmem:[#allocation2 + $0x10] sm:$0xff]
      %v600 = vld [vmem:[#allocation2 + $0x28] sm:$0xff]
      %v601 = vld [vmem:[#allocation2 + $0x30] sm:$0xff]
      %v602 = vld [vmem:[#allocation2 + $0x48] sm:$0xff]
      %v603 = vld [vmem:[#allocation2 + $0x50] sm:$0xff]
      %v604 = vld [vmem:[#allocation2 + $0x68] sm:$0xff]
      %v605 = vld [vmem:[#allocation2 + $0x70] sm:$0xff]
      %v606 = vld [vmem:[#allocation2 + $0x88] sm:$0xff]
      %v607 = vld [vmem:[#allocation2 + $0x90] sm:$0xff]
      %v608 = vld [vmem:[#allocation2 + $0xa8] sm:$0xff]
      %v609 = vld [vmem:[#allocation2 + $0xb0] sm:$0xff]
      %v610 = vld [vmem:[#allocation2 + $0xc8] sm:$0xff]
      %v611 = vld [vmem:[#allocation2 + $0xd0] sm:$0xff]
      %v612 = vld [vmem:[#allocation2 + $0xe8] sm:$0xff]
      %v613 = vld [vmem:[#allocation2 + $0xf0] sm:$0xff]
      %v614 = vld [vmem:[#allocation2 + $0x108] sm:$0xff]
      %v615 = vld [vmem:[#allocation2 + $0x110] sm:$0xff]
      %v616 = vld [vmem:[#allocation2 + $0x128] sm:$0xff]
      %v617 = vld [vmem:[#allocation2 + $0x130] sm:$0xff]
      %v618 = vld [vmem:[#allocation2 + $0x9] sm:$0xff]
      %v619 = vld [vmem:[#allocation2 + $0x11] sm:$0xff]
      %v620 = vld [vmem:[#allocation2 + $0x29] sm:$0xff]
      %v621 = vld [vmem:[#allocation2 + $0x31] sm:$0xff]
      %v622 = vld [vmem:[#allocation2 + $0x49] sm:$0xff]
      %v623 = vld [vmem:[#allocation2 + $0x51] sm:$0xff]
      %v624 = vld [vmem:[#allocation2 + $0x69] sm:$0xff]
      %v625 = vld [vmem:[#allocation2 + $0x71] sm:$0xff]
      %v626 = vld [vmem:[#allocation2 + $0x89] sm:$0xff]
      %v627 = vld [vmem:[#allocation2 + $0x91] sm:$0xff]
      %v628 = vld [vmem:[#allocation2 + $0xa9] sm:$0xff]
      %v629 = vld [vmem:[#allocation2 + $0xb1] sm:$0xff]
      %v630 = vld [vmem:[#allocation2 + $0xc9] sm:$0xff]
      %v631 = vld [vmem:[#allocation2 + $0xd1] sm:$0xff]
      %v632 = vld [vmem:[#allocation2 + $0xe9] sm:$0xff]
      %v633 = vld [vmem:[#allocation2 + $0xf1] sm:$0xff]
      %v634 = vld [vmem:[#allocation2 + $0x109] sm:$0xff]
      %v635 = vld [vmem:[#allocation2 + $0x111] sm:$0xff]
      %v636 = vld [vmem:[#allocation2 + $0x129] sm:$0xff]
      %v637 = vld [vmem:[#allocation2 + $0x131] sm:$0xff]
      %658 = vrot.lane.b32.xlu0 %v598, 4
      %v659 = vpop.permute.xlu0 %658
      %660 = vrot.lane.b32.xlu0 %v599, 4
      %v661 = vpop.permute.xlu0 %660
      %662 = vrot.lane.b32.xlu0 %v600, 4
      %v663 = vpop.permute.xlu0 %662
      %664 = vrot.lane.b32.xlu0 %v601, 4
      %v665 = vpop.permute.xlu0 %664
      %666 = vrot.lane.b32.xlu0 %v602, 4
      %v667 = vpop.permute.xlu0 %666
      %668 = vrot.lane.b32.xlu0 %v603, 4
      %v669 = vpop.permute.xlu0 %668
      %670 = vrot.lane.b32.xlu0 %v604, 4
      %v671 = vpop.permute.xlu0 %670
      %672 = vrot.lane.b32.xlu0 %v605, 4
      %v673 = vpop.permute.xlu0 %672
      %674 = vrot.lane.b32.xlu0 %v606, 4
      %v675 = vpop.permute.xlu0 %674
      %676 = vrot.lane.b32.xlu0 %v607, 4
      %v677 = vpop.permute.xlu0 %676
      %678 = vrot.lane.b32.xlu0 %v608, 4
      %v679 = vpop.permute.xlu0 %678
      %680 = vrot.lane.b32.xlu0 %v609, 4
      %v681 = vpop.permute.xlu0 %680
      %682 = vrot.lane.b32.xlu0 %v610, 4
      %v683 = vpop.permute.xlu0 %682
      %684 = vrot.lane.b32.xlu0 %v611, 4
      %v685 = vpop.permute.xlu0 %684
      %686 = vrot.lane.b32.xlu0 %v612, 4
      %v687 = vpop.permute.xlu0 %686
      %688 = vrot.lane.b32.xlu0 %v613, 4
      %v689 = vpop.permute.xlu0 %688
      %690 = vrot.lane.b32.xlu0 %v614, 4
      %v691 = vpop.permute.xlu0 %690
      %692 = vrot.lane.b32.xlu0 %v615, 4
      %v693 = vpop.permute.xlu0 %692
      %694 = vrot.lane.b32.xlu0 %v616, 4
      %v695 = vpop.permute.xlu0 %694
      %696 = vrot.lane.b32.xlu0 %v617, 4
      %v697 = vpop.permute.xlu0 %696
      %738 = vrot.lane.b32.xlu0 %v618, 8
      %v739 = vpop.permute.xlu0 %738
      %740 = vrot.lane.b32.xlu0 %v619, 8
      %v741 = vpop.permute.xlu0 %740
      %742 = vrot.lane.b32.xlu0 %v620, 8
      %v743 = vpop.permute.xlu0 %742
      %744 = vrot.lane.b32.xlu0 %v621, 8
      %v745 = vpop.permute.xlu0 %744
      %746 = vrot.lane.b32.xlu0 %v622, 8
      %v747 = vpop.permute.xlu0 %746
      %748 = vrot.lane.b32.xlu0 %v623, 8
      %v749 = vpop.permute.xlu0 %748
      %750 = vrot.lane.b32.xlu0 %v624, 8
      %v751 = vpop.permute.xlu0 %750
      %752 = vrot.lane.b32.xlu0 %v625, 8
      %v753 = vpop.permute.xlu0 %752
      %754 = vrot.lane.b32.xlu0 %v626, 8
      %v755 = vpop.permute.xlu0 %754
      %756 = vrot.lane.b32.xlu0 %v627, 8
      %v757 = vpop.permute.xlu0 %756
      %758 = vrot.lane.b32.xlu0 %v628, 8
      %v759 = vpop.permute.xlu0 %758
      %760 = vrot.lane.b32.xlu0 %v629, 8
      %v761 = vpop.permute.xlu0 %760
      %762 = vrot.lane.b32.xlu0 %v630, 8
      %v763 = vpop.permute.xlu0 %762
      %764 = vrot.lane.b32.xlu0 %v631, 8
      %v765 = vpop.permute.xlu0 %764
      %766 = vrot.lane.b32.xlu0 %v632, 8
      %v767 = vpop.permute.xlu0 %766
      %768 = vrot.lane.b32.xlu0 %v633, 8
      %v769 = vpop.permute.xlu0 %768
      %770 = vrot.lane.b32.xlu0 %v634, 8
      %v771 = vpop.permute.xlu0 %770
      %772 = vrot.lane.b32.xlu0 %v635, 8
      %v773 = vpop.permute.xlu0 %772
      %774 = vrot.lane.b32.xlu0 %v636, 8
      %v775 = vpop.permute.xlu0 %774
      %776 = vrot.lane.b32.xlu0 %v637, 8
      %v777 = vpop.permute.xlu0 %776
      %v798 = vsel %vm519, %v578, %v659
      %v799 = vsel %vm519, %v579, %v661
      %v800 = vsel %vm519, %v580, %v663
      %v801 = vsel %vm519, %v581, %v665
      %v802 = vsel %vm519, %v582, %v667
      %v803 = vsel %vm519, %v583, %v669
      %v804 = vsel %vm519, %v584, %v671
      %v805 = vsel %vm519, %v585, %v673
      %v806 = vsel %vm519, %v586, %v675
      %v807 = vsel %vm519, %v587, %v677
      %v808 = vsel %vm519, %v588, %v679
      %v809 = vsel %vm519, %v589, %v681
      %v810 = vsel %vm519, %v590, %v683
      %v811 = vsel %vm519, %v591, %v685
      %v812 = vsel %vm519, %v592, %v687
      %v813 = vsel %vm519, %v593, %v689
      %v814 = vsel %vm519, %v594, %v691
      %v815 = vsel %vm519, %v595, %v693
      %v816 = vsel %vm519, %v596, %v695
      %v817 = vsel %vm519, %v597, %v697
      %vm818 = vcmask 64512
      %v819 = vsel %vm818, %v798, %v739
      %v820 = vsel %vm818, %v799, %v741
      %v821 = vsel %vm818, %v800, %v743
      %v822 = vsel %vm818, %v801, %v745
      %v823 = vsel %vm818, %v802, %v747
      %v824 = vsel %vm818, %v803, %v749
      %v825 = vsel %vm818, %v804, %v751
      %v826 = vsel %vm818, %v805, %v753
      %v827 = vsel %vm818, %v806, %v755
      %v828 = vsel %vm818, %v807, %v757
      %v829 = vsel %vm818, %v808, %v759
      %v830 = vsel %vm818, %v809, %v761
      %v831 = vsel %vm818, %v810, %v763
      %v832 = vsel %vm818, %v811, %v765
      %v833 = vsel %vm818, %v812, %v767
      %v834 = vsel %vm818, %v813, %v769
      %v835 = vsel %vm818, %v814, %v771
      %v836 = vsel %vm818, %v815, %v773
      %v837 = vsel %vm818, %v816, %v775
      %v838 = vsel %vm818, %v817, %v777
      %v839 = vld [vmem:[%s3] sm:$0xff]
      %v840 = vld [vmem:[%s3 + $0x8] sm:$0xf]
      %s841 = scalar_lea.vmem [#allocation2], 32
      %v842 = vld [vmem:[%s841 + $0x7] sm:$0xff]
      %v843 = vld [vmem:[%s841 + $0xf] sm:$0xff]
      %v844 = vld [vmem:[%s841 + $0x27] sm:$0xff]
      %v845 = vld [vmem:[%s841 + $0x2f] sm:$0xff]
      %v846 = vld [vmem:[%s841 + $0x47] sm:$0xff]
      %v847 = vld [vmem:[%s841 + $0x4f] sm:$0xff]
      %v848 = vld [vmem:[%s841 + $0x67] sm:$0xff]
      %v849 = vld [vmem:[%s841 + $0x6f] sm:$0xff]
      %v850 = vld [vmem:[%s841 + $0x87] sm:$0xff]
      %v851 = vld [vmem:[%s841 + $0x8f] sm:$0xff]
      %v852 = vld [vmem:[%s841 + $0xa7] sm:$0xff]
      %v853 = vld [vmem:[%s841 + $0xaf] sm:$0xff]
      %v854 = vld [vmem:[%s841 + $0xc7] sm:$0xff]
      %v855 = vld [vmem:[%s841 + $0xcf] sm:$0xff]
      %v856 = vld [vmem:[%s841 + $0xe7] sm:$0xff]
      %v857 = vld [vmem:[%s841 + $0xef] sm:$0xff]
      %v858 = vld [vmem:[%s841 + $0x107] sm:$0xff]
      %v859 = vld [vmem:[%s841 + $0x10f] sm:$0xff]
      %v860 = vld [vmem:[%s841 + $0x127] sm:$0xff]
      %v861 = vld [vmem:[%s841 + $0x12f] sm:$0xff]
      %v862 = vld [vmem:[%s841 + $0x8] sm:$0xff]
      %v863 = vld [vmem:[%s841 + $0x10] sm:$0xff]
      %v864 = vld [vmem:[%s841 + $0x28] sm:$0xff]
      %v865 = vld [vmem:[%s841 + $0x30] sm:$0xff]
      %v866 = vld [vmem:[%s841 + $0x48] sm:$0xff]
      %v867 = vld [vmem:[%s841 + $0x50] sm:$0xff]
      %v868 = vld [vmem:[%s841 + $0x68] sm:$0xff]
      %v869 = vld [vmem:[%s841 + $0x70] sm:$0xff]
      %v870 = vld [vmem:[%s841 + $0x88] sm:$0xff]
      %v871 = vld [vmem:[%s841 + $0x90] sm:$0xff]
      %v872 = vld [vmem:[%s841 + $0xa8] sm:$0xff]
      %v873 = vld [vmem:[%s841 + $0xb0] sm:$0xff]
      %v874 = vld [vmem:[%s841 + $0xc8] sm:$0xff]
      %v875 = vld [vmem:[%s841 + $0xd0] sm:$0xff]
      %v876 = vld [vmem:[%s841 + $0xe8] sm:$0xff]
      %v877 = vld [vmem:[%s841 + $0xf0] sm:$0xff]
      %v878 = vld [vmem:[%s841 + $0x108] sm:$0xff]
      %v879 = vld [vmem:[%s841 + $0x110] sm:$0xff]
      %v880 = vld [vmem:[%s841 + $0x128] sm:$0xff]
      %v881 = vld [vmem:[%s841 + $0x130] sm:$0xff]
      %v882 = vld [vmem:[%s841 + $0x9] sm:$0xff]
      %v883 = vld [vmem:[%s841 + $0x11] sm:$0xff]
      %v884 = vld [vmem:[%s841 + $0x29] sm:$0xff]
      %v885 = vld [vmem:[%s841 + $0x31] sm:$0xff]
      %v886 = vld [vmem:[%s841 + $0x49] sm:$0xff]
      %v887 = vld [vmem:[%s841 + $0x51] sm:$0xff]
      %v888 = vld [vmem:[%s841 + $0x69] sm:$0xff]
      %v889 = vld [vmem:[%s841 + $0x71] sm:$0xff]
      %v890 = vld [vmem:[%s841 + $0x89] sm:$0xff]
      %v891 = vld [vmem:[%s841 + $0x91] sm:$0xff]
      %v892 = vld [vmem:[%s841 + $0xa9] sm:$0xff]
      %v893 = vld [vmem:[%s841 + $0xb1] sm:$0xff]
      %v894 = vld [vmem:[%s841 + $0xc9] sm:$0xff]
      %v895 = vld [vmem:[%s841 + $0xd1] sm:$0xff]
      %v896 = vld [vmem:[%s841 + $0xe9] sm:$0xff]
      %v897 = vld [vmem:[%s841 + $0xf1] sm:$0xff]
      %v898 = vld [vmem:[%s841 + $0x109] sm:$0xff]
      %v899 = vld [vmem:[%s841 + $0x111] sm:$0xff]
      %v900 = vld [vmem:[%s841 + $0x129] sm:$0xff]
      %v901 = vld [vmem:[%s841 + $0x131] sm:$0xff]
      %922 = vrot.lane.b32.xlu0 %v862, 4
      %v923 = vpop.permute.xlu0 %922
      %924 = vrot.lane.b32.xlu0 %v863, 4
      %v925 = vpop.permute.xlu0 %924
      %926 = vrot.lane.b32.xlu0 %v864, 4
      %v927 = vpop.permute.xlu0 %926
      %928 = vrot.lane.b32.xlu0 %v865, 4
      %v929 = vpop.permute.xlu0 %928
      %930 = vrot.lane.b32.xlu0 %v866, 4
      %v931 = vpop.permute.xlu0 %930
      %932 = vrot.lane.b32.xlu0 %v867, 4
      %v933 = vpop.permute.xlu0 %932
      %934 = vrot.lane.b32.xlu0 %v868, 4
      %v935 = vpop.permute.xlu0 %934
      %936 = vrot.lane.b32.xlu0 %v869, 4
      %v937 = vpop.permute.xlu0 %936
      %938 = vrot.lane.b32.xlu0 %v870, 4
      %v939 = vpop.permute.xlu0 %938
      %940 = vrot.lane.b32.xlu0 %v871, 4
      %v941 = vpop.permute.xlu0 %940
      %942 = vrot.lane.b32.xlu0 %v872, 4
      %v943 = vpop.permute.xlu0 %942
      %944 = vrot.lane.b32.xlu0 %v873, 4
      %v945 = vpop.permute.xlu0 %944
      %946 = vrot.lane.b32.xlu0 %v874, 4
      %v947 = vpop.permute.xlu0 %946
      %948 = vrot.lane.b32.xlu0 %v875, 4
      %v949 = vpop.permute.xlu0 %948
      %950 = vrot.lane.b32.xlu0 %v876, 4
      %v951 = vpop.permute.xlu0 %950
      %952 = vrot.lane.b32.xlu0 %v877, 4
      %v953 = vpop.permute.xlu0 %952
      %954 = vrot.lane.b32.xlu0 %v878, 4
      %v955 = vpop.permute.xlu0 %954
      %956 = vrot.lane.b32.xlu0 %v879, 4
      %v957 = vpop.permute.xlu0 %956
      %958 = vrot.lane.b32.xlu0 %v880, 4
      %v959 = vpop.permute.xlu0 %958
      %960 = vrot.lane.b32.xlu0 %v881, 4
      %v961 = vpop.permute.xlu0 %960
      %1002 = vrot.lane.b32.xlu0 %v882, 8
      %v1003 = vpop.permute.xlu0 %1002
      %1004 = vrot.lane.b32.xlu0 %v883, 8
      %v1005 = vpop.permute.xlu0 %1004
      %1006 = vrot.lane.b32.xlu0 %v884, 8
      %v1007 = vpop.permute.xlu0 %1006
      %1008 = vrot.lane.b32.xlu0 %v885, 8
      %v1009 = vpop.permute.xlu0 %1008
      %1010 = vrot.lane.b32.xlu0 %v886, 8
      %v1011 = vpop.permute.xlu0 %1010
      %1012 = vrot.lane.b32.xlu0 %v887, 8
      %v1013 = vpop.permute.xlu0 %1012
      %1014 = vrot.lane.b32.xlu0 %v888, 8
      %v1015 = vpop.permute.xlu0 %1014
      %1016 = vrot.lane.b32.xlu0 %v889, 8
      %v1017 = vpop.permute.xlu0 %1016
      %1018 = vrot.lane.b32.xlu0 %v890, 8
      %v1019 = vpop.permute.xlu0 %1018
      %1020 = vrot.lane.b32.xlu0 %v891, 8
      %v1021 = vpop.permute.xlu0 %1020
      %1022 = vrot.lane.b32.xlu0 %v892, 8
      %v1023 = vpop.permute.xlu0 %1022
      %1024 = vrot.lane.b32.xlu0 %v893, 8
      %v1025 = vpop.permute.xlu0 %1024
      %1026 = vrot.lane.b32.xlu0 %v894, 8
      %v1027 = vpop.permute.xlu0 %1026
      %1028 = vrot.lane.b32.xlu0 %v895, 8
      %v1029 = vpop.permute.xlu0 %1028
      %1030 = vrot.lane.b32.xlu0 %v896, 8
      %v1031 = vpop.permute.xlu0 %1030
      %1032 = vrot.lane.b32.xlu0 %v897, 8
      %v1033 = vpop.permute.xlu0 %1032
      %1034 = vrot.lane.b32.xlu0 %v898, 8
      %v1035 = vpop.permute.xlu0 %1034
      %1036 = vrot.lane.b32.xlu0 %v899, 8
      %v1037 = vpop.permute.xlu0 %1036
      %1038 = vrot.lane.b32.xlu0 %v900, 8
      %v1039 = vpop.permute.xlu0 %1038
      %1040 = vrot.lane.b32.xlu0 %v901, 8
      %v1041 = vpop.permute.xlu0 %1040
      %v1062 = vsel %vm519, %v842, %v923
      %v1063 = vsel %vm519, %v843, %v925
      %v1064 = vsel %vm519, %v844, %v927
      %v1065 = vsel %vm519, %v845, %v929
      %v1066 = vsel %vm519, %v846, %v931
      %v1067 = vsel %vm519, %v847, %v933
      %v1068 = vsel %vm519, %v848, %v935
      %v1069 = vsel %vm519, %v849, %v937
      %v1070 = vsel %vm519, %v850, %v939
      %v1071 = vsel %vm519, %v851, %v941
      %v1072 = vsel %vm519, %v852, %v943
      %v1073 = vsel %vm519, %v853, %v945
      %v1074 = vsel %vm519, %v854, %v947
      %v1075 = vsel %vm519, %v855, %v949
      %v1076 = vsel %vm519, %v856, %v951
      %v1077 = vsel %vm519, %v857, %v953
      %v1078 = vsel %vm519, %v858, %v955
      %v1079 = vsel %vm519, %v859, %v957
      %v1080 = vsel %vm519, %v860, %v959
      %v1081 = vsel %vm519, %v861, %v961
      %v1082 = vsel %vm818, %v1062, %v1003
      %v1083 = vsel %vm818, %v1063, %v1005
      %v1084 = vsel %vm818, %v1064, %v1007
      %v1085 = vsel %vm818, %v1065, %v1009
      %v1086 = vsel %vm818, %v1066, %v1011
      %v1087 = vsel %vm818, %v1067, %v1013
      %v1088 = vsel %vm818, %v1068, %v1015
      %v1089 = vsel %vm818, %v1069, %v1017
      %v1090 = vsel %vm818, %v1070, %v1019
      %v1091 = vsel %vm818, %v1071, %v1021
      %v1092 = vsel %vm818, %v1072, %v1023
      %v1093 = vsel %vm818, %v1073, %v1025
      %v1094 = vsel %vm818, %v1074, %v1027
      %v1095 = vsel %vm818, %v1075, %v1029
      %v1096 = vsel %vm818, %v1076, %v1031
      %v1097 = vsel %vm818, %v1077, %v1033
      %v1098 = vsel %vm818, %v1078, %v1035
      %v1099 = vsel %vm818, %v1079, %v1037
      %v1100 = vsel %vm818, %v1080, %v1039
      %v1101 = vsel %vm818, %v1081, %v1041
      %s1102 = scalar_lea.vmem %s3, 16
      %v1103 = vld [vmem:[%s1102] sm:$0xff]
      %v1104 = vld [vmem:[%s1102 + $0x8] sm:$0xf]
      %vm1105 = vcmask 97280
      %v1107 = vsel %vm1105, %v1082, 0
      %v1110 = vsel %vm1105, %v1083, 0
      %v1113 = vsel %vm1105, %v1084, 0
      %v1116 = vsel %vm1105, %v1085, 0
      %v1119 = vsel %vm1105, %v1086, 0
      %v1122 = vsel %vm1105, %v1087, 0
      %v1125 = vsel %vm1105, %v1088, 0
      %v1128 = vsel %vm1105, %v1089, 0
      %v1131 = vsel %vm1105, %v1090, 0
      %v1134 = vsel %vm1105, %v1091, 0
      %v1137 = vsel %vm1105, %v1092, 0
      %v1140 = vsel %vm1105, %v1093, 0
      %v1143 = vsel %vm1105, %v1094, 0
      %v1146 = vsel %vm1105, %v1095, 0
      %v1149 = vsel %vm1105, %v1096, 0
      %v1152 = vsel %vm1105, %v1097, 0
      %v1155 = vsel %vm1105, %v1098, 0
      %v1158 = vsel %vm1105, %v1099, 0
      %v1161 = vsel %vm1105, %v1100, 0
      %v1164 = vsel %vm1105, %v1101, 0
      %vm1166 = vcmask 1043456
      %v1168 = vsel %vm1166, %v1104, 0
      %1170 = vmatprep.subr.mxu0 0.0
      %1171 = vmatpush1.msra.mxu0 0.0
      %1172 = vmatprep.subr.mxu0 0.0
      %1173 = vmatpush1.msra.mxu0 0.0
      %1174 = vmatprep.subr.mxu0 0.0
      %1175 = vmatpush1.msra.mxu0 0.0
      %1176 = vmatprep.subr.mxu0 0.0
      %1177 = vmatpush1.msra.mxu0 0.0
      %1178 = vmatprep.subr.mxu0 0.0
      %1179 = vmatpush1.msra.mxu0 0.0
      %1180 = vmatprep.subr.mxu0 0.0
      %1181 = vmatpush1.msra.mxu0 0.0
      %1182 = vmatprep.subr.mxu0 0.0
      %1183 = vmatpush1.msra.mxu0 0.0
      %1184 = vmatprep.subr.mxu0 0.0
      %1185 = vmatpush1.msra.mxu0 0.0
      %1186 = vmatprep.subr.mxu0 0.0
      %1187 = vmatpush1.msra.mxu0 0.0
      %1188 = vmatprep.subr.mxu0 0.0
      %1189 = vmatpush1.msra.mxu0 0.0
      %1190 = vmatprep.subr.mxu0 0.0
      %1191 = vmatpush1.msra.mxu0 0.0
      %1192 = vmatprep.subr.mxu0 0.0
      %1193 = vmatpush1.msra.mxu0 0.0
      %1194 = vmatprep.subr.mxu0 0.0
      %1195 = vmatpush1.msra.mxu0 0.0
      %1196 = vmatprep.subr.mxu0 0.0
      %1197 = vmatpush1.msra.mxu0 0.0
      %1198 = vmatprep.subr.mxu0 0.0
      %1199 = vmatpush1.msra.mxu0 %v1168
      %1200 = vmatprep.subr.mxu0 0.0
      %1201 = vmatpush1.msra.mxu0 %v1103
      %1202 = vmatprep.subr.mxu0 0.0
      %1203 = vmatpush2.msra.mxu0 0.0
      %1204 = vmatprep.subr.mxu0 0.0
      %1205 = vmatpush2.msra.mxu0 0.0
      %1206 = vmatprep.subr.mxu0 0.0
      %1207 = vmatpush2.msra.mxu0 0.0
      %1208 = vmatprep.subr.mxu0 0.0
      %1209 = vmatpush2.msra.mxu0 0.0
      %1210 = vmatprep.subr.mxu0 0.0
      %1211 = vmatpush2.msra.mxu0 0.0
      %1212 = vmatprep.subr.mxu0 0.0
      %1213 = vmatpush2.msra.mxu0 0.0
      %1214 = vmatprep.subr.mxu0 0.0
      %1215 = vmatpush2.msra.mxu0 0.0
      %1216 = vmatprep.subr.mxu0 0.0
      %1217 = vmatpush2.msra.mxu0 0.0
      %1218 = vmatprep.subr.mxu0 0.0
      %1219 = vmatpush2.msra.mxu0 0.0
      %1220 = vmatprep.subr.mxu0 0.0
      %1221 = vmatpush2.msra.mxu0 0.0
      %1222 = vmatprep.subr.mxu0 0.0
      %1223 = vmatpush2.msra.mxu0 0.0
      %1224 = vmatprep.subr.mxu0 0.0
      %1225 = vmatpush2.msra.mxu0 0.0
      %1226 = vmatprep.subr.mxu0 0.0
      %1227 = vmatpush2.msra.mxu0 0.0
      %1228 = vmatprep.subr.mxu0 0.0
      %1229 = vmatpush2.msra.mxu0 0.0
      %1230 = vmatprep.subr.mxu0 0.0
      %1231 = vmatpush2.msra.mxu0 0.0
      %1232 = vmatprep.subr.mxu0 0.0
      %1233 = vmatpush2.msra.mxu0 0.0
      %1234 = vmatprep.mubr.f32.mxu0 0.0
      %1235 = vmatmul.mubr.f32.gmra.mxu0 %v1107
      %v1236 = vpop.f32.mrf.mxu0
      %v1237 = vadd.f32 0.0, %v1236
      %v1238 = vpop.f32.mrf.mxu0
      %1239 = vmatprep.mubr.f32.mxu0 0.0
      %1240 = vmatmul.mubr.f32.gmra.mxu0 %v1110
      %v1241 = vpop.f32.mrf.mxu0
      %v1242 = vadd.f32 0.0, %v1241
      %v1243 = vpop.f32.mrf.mxu0
      %1244 = vmatprep.mubr.f32.mxu0 0.0
      %1245 = vmatmul.mubr.f32.gmra.mxu0 %v1113
      %v1246 = vpop.f32.mrf.mxu0
      %v1247 = vadd.f32 0.0, %v1246
      %v1248 = vpop.f32.mrf.mxu0
      %1249 = vmatprep.mubr.f32.mxu0 0.0
      %1250 = vmatmul.mubr.f32.gmra.mxu0 %v1116
      %v1251 = vpop.f32.mrf.mxu0
      %v1252 = vadd.f32 0.0, %v1251
      %v1253 = vpop.f32.mrf.mxu0
      %1254 = vmatprep.mubr.f32.mxu0 0.0
      %1255 = vmatmul.mubr.f32.gmra.mxu0 %v1119
      %v1256 = vpop.f32.mrf.mxu0
      %v1257 = vadd.f32 0.0, %v1256
      %v1258 = vpop.f32.mrf.mxu0
      %1259 = vmatprep.mubr.f32.mxu0 0.0
      %1260 = vmatmul.mubr.f32.gmra.mxu0 %v1122
      %v1261 = vpop.f32.mrf.mxu0
      %v1262 = vadd.f32 0.0, %v1261
      %v1263 = vpop.f32.mrf.mxu0
      %1264 = vmatprep.mubr.f32.mxu0 0.0
      %1265 = vmatmul.mubr.f32.gmra.mxu0 %v1125
      %v1266 = vpop.f32.mrf.mxu0
      %v1267 = vadd.f32 0.0, %v1266
      %v1268 = vpop.f32.mrf.mxu0
      %1269 = vmatprep.mubr.f32.mxu0 0.0
      %1270 = vmatmul.mubr.f32.gmra.mxu0 %v1128
      %v1271 = vpop.f32.mrf.mxu0
      %v1272 = vadd.f32 0.0, %v1271
      %v1273 = vpop.f32.mrf.mxu0
      %1274 = vmatprep.mubr.f32.mxu0 0.0
      %1275 = vmatmul.mubr.f32.gmra.mxu0 %v1131
      %v1276 = vpop.f32.mrf.mxu0
      %v1277 = vadd.f32 0.0, %v1276
      %v1278 = vpop.f32.mrf.mxu0
      %1279 = vmatprep.mubr.f32.mxu0 0.0
      %1280 = vmatmul.mubr.f32.gmra.mxu0 %v1134
      %v1281 = vpop.f32.mrf.mxu0
      %v1282 = vadd.f32 0.0, %v1281
      %v1283 = vpop.f32.mrf.mxu0
      %1284 = vmatprep.mubr.f32.mxu0 0.0
      %1285 = vmatmul.mubr.f32.gmra.mxu0 %v1137
      %v1286 = vpop.f32.mrf.mxu0
      %v1287 = vadd.f32 0.0, %v1286
      %v1288 = vpop.f32.mrf.mxu0
      %1289 = vmatprep.mubr.f32.mxu0 0.0
      %1290 = vmatmul.mubr.f32.gmra.mxu0 %v1140
      %v1291 = vpop.f32.mrf.mxu0
      %v1292 = vadd.f32 0.0, %v1291
      %v1293 = vpop.f32.mrf.mxu0
      %1294 = vmatprep.mubr.f32.mxu0 0.0
      %1295 = vmatmul.mubr.f32.gmra.mxu0 %v1143
      %v1296 = vpop.f32.mrf.mxu0
      %v1297 = vadd.f32 0.0, %v1296
      %v1298 = vpop.f32.mrf.mxu0
      %1299 = vmatprep.mubr.f32.mxu0 0.0
      %1300 = vmatmul.mubr.f32.gmra.mxu0 %v1146
      %v1301 = vpop.f32.mrf.mxu0
      %v1302 = vadd.f32 0.0, %v1301
      %v1303 = vpop.f32.mrf.mxu0
      %1304 = vmatprep.mubr.f32.mxu0 0.0
      %1305 = vmatmul.mubr.f32.gmra.mxu0 %v1149
      %v1306 = vpop.f32.mrf.mxu0
      %v1307 = vadd.f32 0.0, %v1306
      %v1308 = vpop.f32.mrf.mxu0
      %1309 = vmatprep.mubr.f32.mxu0 0.0
      %1310 = vmatmul.mubr.f32.gmra.mxu0 %v1152
      %v1311 = vpop.f32.mrf.mxu0
      %v1312 = vadd.f32 0.0, %v1311
      %v1313 = vpop.f32.mrf.mxu0
      %1314 = vmatprep.mubr.f32.mxu0 0.0
      %1315 = vmatmul.mubr.f32.gmra.mxu0 %v1155
      %v1316 = vpop.f32.mrf.mxu0
      %v1317 = vadd.f32 0.0, %v1316
      %v1318 = vpop.f32.mrf.mxu0
      %1319 = vmatprep.mubr.f32.mxu0 0.0
      %1320 = vmatmul.mubr.f32.gmra.mxu0 %v1158
      %v1321 = vpop.f32.mrf.mxu0
      %v1322 = vadd.f32 0.0, %v1321
      %v1323 = vpop.f32.mrf.mxu0
      %1324 = vmatprep.mubr.f32.mxu0 0.0
      %1325 = vmatmul.mubr.f32.gmra.mxu0 %v1161
      %v1326 = vpop.f32.mrf.mxu0
      %v1327 = vadd.f32 0.0, %v1326
      %v1328 = vpop.f32.mrf.mxu0
      %1329 = vmatprep.mubr.f32.mxu0 0.0
      %1330 = vmatmul.mubr.f32.gmra.mxu0 %v1164
      %v1331 = vpop.f32.mrf.mxu0
      %v1332 = vadd.f32 0.0, %v1331
      %v1333 = vpop.f32.mrf.mxu0
      %1334 = vdwg.mxu0
      %v1336 = vsel %vm1105, %v819, 0
      %v1339 = vsel %vm1105, %v820, 0
      %v1342 = vsel %vm1105, %v821, 0
      %v1345 = vsel %vm1105, %v822, 0
      %v1348 = vsel %vm1105, %v823, 0
      %v1351 = vsel %vm1105, %v824, 0
      %v1354 = vsel %vm1105, %v825, 0
      %v1357 = vsel %vm1105, %v826, 0
      %v1360 = vsel %vm1105, %v827, 0
      %v1363 = vsel %vm1105, %v828, 0
      %v1366 = vsel %vm1105, %v829, 0
      %v1369 = vsel %vm1105, %v830, 0
      %v1372 = vsel %vm1105, %v831, 0
      %v1375 = vsel %vm1105, %v832, 0
      %v1378 = vsel %vm1105, %v833, 0
      %v1381 = vsel %vm1105, %v834, 0
      %v1384 = vsel %vm1105, %v835, 0
      %v1387 = vsel %vm1105, %v836, 0
      %v1390 = vsel %vm1105, %v837, 0
      %v1393 = vsel %vm1105, %v838, 0
      %v1396 = vsel %vm1166, %v840, 0
      %1398 = vmatprep.subr.mxu0 0.0
      %1399 = vmatpush1.msra.mxu0 0.0
      %1400 = vmatprep.subr.mxu0 0.0
      %1401 = vmatpush1.msra.mxu0 0.0
      %1402 = vmatprep.subr.mxu0 0.0
      %1403 = vmatpush1.msra.mxu0 0.0
      %1404 = vmatprep.subr.mxu0 0.0
      %1405 = vmatpush1.msra.mxu0 0.0
      %1406 = vmatprep.subr.mxu0 0.0
      %1407 = vmatpush1.msra.mxu0 0.0
      %1408 = vmatprep.subr.mxu0 0.0
      %1409 = vmatpush1.msra.mxu0 0.0
      %1410 = vmatprep.subr.mxu0 0.0
      %1411 = vmatpush1.msra.mxu0 0.0
      %1412 = vmatprep.subr.mxu0 0.0
      %1413 = vmatpush1.msra.mxu0 0.0
      %1414 = vmatprep.subr.mxu0 0.0
      %1415 = vmatpush1.msra.mxu0 0.0
      %1416 = vmatprep.subr.mxu0 0.0
      %1417 = vmatpush1.msra.mxu0 0.0
      %1418 = vmatprep.subr.mxu0 0.0
      %1419 = vmatpush1.msra.mxu0 0.0
      %1420 = vmatprep.subr.mxu0 0.0
      %1421 = vmatpush1.msra.mxu0 0.0
      %1422 = vmatprep.subr.mxu0 0.0
      %1423 = vmatpush1.msra.mxu0 0.0
      %1424 = vmatprep.subr.mxu0 0.0
      %1425 = vmatpush1.msra.mxu0 0.0
      %1426 = vmatprep.subr.mxu0 0.0
      %1427 = vmatpush1.msra.mxu0 %v1396
      %1428 = vmatprep.subr.mxu0 0.0
      %1429 = vmatpush1.msra.mxu0 %v839
      %1430 = vmatprep.subr.mxu0 0.0
      %1431 = vmatpush2.msra.mxu0 0.0
      %1432 = vmatprep.subr.mxu0 0.0
      %1433 = vmatpush2.msra.mxu0 0.0
      %1434 = vmatprep.subr.mxu0 0.0
      %1435 = vmatpush2.msra.mxu0 0.0
      %1436 = vmatprep.subr.mxu0 0.0
      %1437 = vmatpush2.msra.mxu0 0.0
      %1438 = vmatprep.subr.mxu0 0.0
      %1439 = vmatpush2.msra.mxu0 0.0
      %1440 = vmatprep.subr.mxu0 0.0
      %1441 = vmatpush2.msra.mxu0 0.0
      %1442 = vmatprep.subr.mxu0 0.0
      %1443 = vmatpush2.msra.mxu0 0.0
      %1444 = vmatprep.subr.mxu0 0.0
      %1445 = vmatpush2.msra.mxu0 0.0
      %1446 = vmatprep.subr.mxu0 0.0
      %1447 = vmatpush2.msra.mxu0 0.0
      %1448 = vmatprep.subr.mxu0 0.0
      %1449 = vmatpush2.msra.mxu0 0.0
      %1450 = vmatprep.subr.mxu0 0.0
      %1451 = vmatpush2.msra.mxu0 0.0
      %1452 = vmatprep.subr.mxu0 0.0
      %1453 = vmatpush2.msra.mxu0 0.0
      %1454 = vmatprep.subr.mxu0 0.0
      %1455 = vmatpush2.msra.mxu0 0.0
      %1456 = vmatprep.subr.mxu0 0.0
      %1457 = vmatpush2.msra.mxu0 0.0
      %1458 = vmatprep.subr.mxu0 0.0
      %1459 = vmatpush2.msra.mxu0 0.0
      %1460 = vmatprep.subr.mxu0 0.0
      %1461 = vmatpush2.msra.mxu0 0.0
      %1462 = vmatprep.mubr.f32.mxu0 0.0
      %1463 = vmatmul.mubr.f32.gmra.mxu0 %v1336
      %v1464 = vpop.f32.mrf.mxu0
      %v1465 = vadd.f32 %v1237, %v1464
      %v1466 = vpop.f32.mrf.mxu0
      %1467 = vmatprep.mubr.f32.mxu0 0.0
      %1468 = vmatmul.mubr.f32.gmra.mxu0 %v1339
      %v1469 = vpop.f32.mrf.mxu0
      %v1470 = vadd.f32 %v1242, %v1469
      %v1471 = vpop.f32.mrf.mxu0
      %1472 = vmatprep.mubr.f32.mxu0 0.0
      %1473 = vmatmul.mubr.f32.gmra.mxu0 %v1342
      %v1474 = vpop.f32.mrf.mxu0
      %v1475 = vadd.f32 %v1247, %v1474
      %v1476 = vpop.f32.mrf.mxu0
      %1477 = vmatprep.mubr.f32.mxu0 0.0
      %1478 = vmatmul.mubr.f32.gmra.mxu0 %v1345
      %v1479 = vpop.f32.mrf.mxu0
      %v1480 = vadd.f32 %v1252, %v1479
      %v1481 = vpop.f32.mrf.mxu0
      %1482 = vmatprep.mubr.f32.mxu0 0.0
      %1483 = vmatmul.mubr.f32.gmra.mxu0 %v1348
      %v1484 = vpop.f32.mrf.mxu0
      %v1485 = vadd.f32 %v1257, %v1484
      %v1486 = vpop.f32.mrf.mxu0
      %1487 = vmatprep.mubr.f32.mxu0 0.0
      %1488 = vmatmul.mubr.f32.gmra.mxu0 %v1351
      %v1489 = vpop.f32.mrf.mxu0
      %v1490 = vadd.f32 %v1262, %v1489
      %v1491 = vpop.f32.mrf.mxu0
      %1492 = vmatprep.mubr.f32.mxu0 0.0
      %1493 = vmatmul.mubr.f32.gmra.mxu0 %v1354
      %v1494 = vpop.f32.mrf.mxu0
      %v1495 = vadd.f32 %v1267, %v1494
      %v1496 = vpop.f32.mrf.mxu0
      %1497 = vmatprep.mubr.f32.mxu0 0.0
      %1498 = vmatmul.mubr.f32.gmra.mxu0 %v1357
      %v1499 = vpop.f32.mrf.mxu0
      %v1500 = vadd.f32 %v1272, %v1499
      %v1501 = vpop.f32.mrf.mxu0
      %1502 = vmatprep.mubr.f32.mxu0 0.0
      %1503 = vmatmul.mubr.f32.gmra.mxu0 %v1360
      %v1504 = vpop.f32.mrf.mxu0
      %v1505 = vadd.f32 %v1277, %v1504
      %v1506 = vpop.f32.mrf.mxu0
      %1507 = vmatprep.mubr.f32.mxu0 0.0
      %1508 = vmatmul.mubr.f32.gmra.mxu0 %v1363
      %v1509 = vpop.f32.mrf.mxu0
      %v1510 = vadd.f32 %v1282, %v1509
      %v1511 = vpop.f32.mrf.mxu0
      %1512 = vmatprep.mubr.f32.mxu0 0.0
      %1513 = vmatmul.mubr.f32.gmra.mxu0 %v1366
      %v1514 = vpop.f32.mrf.mxu0
      %v1515 = vadd.f32 %v1287, %v1514
      %v1516 = vpop.f32.mrf.mxu0
      %1517 = vmatprep.mubr.f32.mxu0 0.0
      %1518 = vmatmul.mubr.f32.gmra.mxu0 %v1369
      %v1519 = vpop.f32.mrf.mxu0
      %v1520 = vadd.f32 %v1292, %v1519
      %v1521 = vpop.f32.mrf.mxu0
      %1522 = vmatprep.mubr.f32.mxu0 0.0
      %1523 = vmatmul.mubr.f32.gmra.mxu0 %v1372
      %v1524 = vpop.f32.mrf.mxu0
      %v1525 = vadd.f32 %v1297, %v1524
      %v1526 = vpop.f32.mrf.mxu0
      %1527 = vmatprep.mubr.f32.mxu0 0.0
      %1528 = vmatmul.mubr.f32.gmra.mxu0 %v1375
      %v1529 = vpop.f32.mrf.mxu0
      %v1530 = vadd.f32 %v1302, %v1529
      %v1531 = vpop.f32.mrf.mxu0
      %1532 = vmatprep.mubr.f32.mxu0 0.0
      %1533 = vmatmul.mubr.f32.gmra.mxu0 %v1378
      %v1534 = vpop.f32.mrf.mxu0
      %v1535 = vadd.f32 %v1307, %v1534
      %v1536 = vpop.f32.mrf.mxu0
      %1537 = vmatprep.mubr.f32.mxu0 0.0
      %1538 = vmatmul.mubr.f32.gmra.mxu0 %v1381
      %v1539 = vpop.f32.mrf.mxu0
      %v1540 = vadd.f32 %v1312, %v1539
      %v1541 = vpop.f32.mrf.mxu0
      %1542 = vmatprep.mubr.f32.mxu0 0.0
      %1543 = vmatmul.mubr.f32.gmra.mxu0 %v1384
      %v1544 = vpop.f32.mrf.mxu0
      %v1545 = vadd.f32 %v1317, %v1544
      %v1546 = vpop.f32.mrf.mxu0
      %1547 = vmatprep.mubr.f32.mxu0 0.0
      %1548 = vmatmul.mubr.f32.gmra.mxu0 %v1387
      %v1549 = vpop.f32.mrf.mxu0
      %v1550 = vadd.f32 %v1322, %v1549
      %v1551 = vpop.f32.mrf.mxu0
      %1552 = vmatprep.mubr.f32.mxu0 0.0
      %1553 = vmatmul.mubr.f32.gmra.mxu0 %v1390
      %v1554 = vpop.f32.mrf.mxu0
      %v1555 = vadd.f32 %v1327, %v1554
      %v1556 = vpop.f32.mrf.mxu0
      %1557 = vmatprep.mubr.f32.mxu0 0.0
      %1558 = vmatmul.mubr.f32.gmra.mxu0 %v1393
      %v1559 = vpop.f32.mrf.mxu0
      %v1560 = vadd.f32 %v1332, %v1559
      %v1561 = vpop.f32.mrf.mxu0
      %1562 = vdwg.mxu0
      %v1563 = vld [vmem:[%s518 + $0x7] sm:$0xff]
      %v1564 = vld [vmem:[%s518 + $0xf] sm:$0xff]
      %v1565 = vld [vmem:[%s518 + $0x27] sm:$0xff]
      %v1566 = vld [vmem:[%s518 + $0x2f] sm:$0xff]
      %v1567 = vld [vmem:[%s518 + $0x47] sm:$0xff]
      %v1568 = vld [vmem:[%s518 + $0x4f] sm:$0xff]
      %v1569 = vld [vmem:[%s518 + $0x67] sm:$0xff]
      %v1570 = vld [vmem:[%s518 + $0x6f] sm:$0xff]
      %v1571 = vld [vmem:[%s518 + $0x87] sm:$0xff]
      %v1572 = vld [vmem:[%s518 + $0x8f] sm:$0xff]
      %v1573 = vld [vmem:[%s518 + $0xa7] sm:$0xff]
      %v1574 = vld [vmem:[%s518 + $0xaf] sm:$0xff]
      %v1575 = vld [vmem:[%s518 + $0xc7] sm:$0xff]
      %v1576 = vld [vmem:[%s518 + $0xcf] sm:$0xff]
      %v1577 = vld [vmem:[%s518 + $0xe7] sm:$0xff]
      %v1578 = vld [vmem:[%s518 + $0xef] sm:$0xff]
      %v1579 = vld [vmem:[%s518 + $0x107] sm:$0xff]
      %v1580 = vld [vmem:[%s518 + $0x10f] sm:$0xff]
      %v1581 = vld [vmem:[%s518 + $0x127] sm:$0xff]
      %v1582 = vld [vmem:[%s518 + $0x12f] sm:$0xff]
      %v1583 = vld [vmem:[%s518 + $0x8] sm:$0xff]
      %v1584 = vld [vmem:[%s518 + $0x10] sm:$0xff]
      %v1585 = vld [vmem:[%s518 + $0x28] sm:$0xff]
      %v1586 = vld [vmem:[%s518 + $0x30] sm:$0xff]
      %v1587 = vld [vmem:[%s518 + $0x48] sm:$0xff]
      %v1588 = vld [vmem:[%s518 + $0x50] sm:$0xff]
      %v1589 = vld [vmem:[%s518 + $0x68] sm:$0xff]
      %v1590 = vld [vmem:[%s518 + $0x70] sm:$0xff]
      %v1591 = vld [vmem:[%s518 + $0x88] sm:$0xff]
      %v1592 = vld [vmem:[%s518 + $0x90] sm:$0xff]
      %v1593 = vld [vmem:[%s518 + $0xa8] sm:$0xff]
      %v1594 = vld [vmem:[%s518 + $0xb0] sm:$0xff]
      %v1595 = vld [vmem:[%s518 + $0xc8] sm:$0xff]
      %v1596 = vld [vmem:[%s518 + $0xd0] sm:$0xff]
      %v1597 = vld [vmem:[%s518 + $0xe8] sm:$0xff]
      %v1598 = vld [vmem:[%s518 + $0xf0] sm:$0xff]
      %v1599 = vld [vmem:[%s518 + $0x108] sm:$0xff]
      %v1600 = vld [vmem:[%s518 + $0x110] sm:$0xff]
      %v1601 = vld [vmem:[%s518 + $0x128] sm:$0xff]
      %v1602 = vld [vmem:[%s518 + $0x130] sm:$0xff]
      %v1603 = vld [vmem:[%s518 + $0x9] sm:$0xff]
      %v1604 = vld [vmem:[%s518 + $0x11] sm:$0xff]
      %v1605 = vld [vmem:[%s518 + $0x29] sm:$0xff]
      %v1606 = vld [vmem:[%s518 + $0x31] sm:$0xff]
      %v1607 = vld [vmem:[%s518 + $0x49] sm:$0xff]
      %v1608 = vld [vmem:[%s518 + $0x51] sm:$0xff]
      %v1609 = vld [vmem:[%s518 + $0x69] sm:$0xff]
      %v1610 = vld [vmem:[%s518 + $0x71] sm:$0xff]
      %v1611 = vld [vmem:[%s518 + $0x89] sm:$0xff]
      %v1612 = vld [vmem:[%s518 + $0x91] sm:$0xff]
      %v1613 = vld [vmem:[%s518 + $0xa9] sm:$0xff]
      %v1614 = vld [vmem:[%s518 + $0xb1] sm:$0xff]
      %v1615 = vld [vmem:[%s518 + $0xc9] sm:$0xff]
      %v1616 = vld [vmem:[%s518 + $0xd1] sm:$0xff]
      %v1617 = vld [vmem:[%s518 + $0xe9] sm:$0xff]
      %v1618 = vld [vmem:[%s518 + $0xf1] sm:$0xff]
      %v1619 = vld [vmem:[%s518 + $0x109] sm:$0xff]
      %v1620 = vld [vmem:[%s518 + $0x111] sm:$0xff]
      %v1621 = vld [vmem:[%s518 + $0x129] sm:$0xff]
      %v1622 = vld [vmem:[%s518 + $0x131] sm:$0xff]
      %1643 = vrot.lane.b32.xlu0 %v1583, 4
      %v1644 = vpop.permute.xlu0 %1643
      %1645 = vrot.lane.b32.xlu0 %v1584, 4
      %v1646 = vpop.permute.xlu0 %1645
      %1647 = vrot.lane.b32.xlu0 %v1585, 4
      %v1648 = vpop.permute.xlu0 %1647
      %1649 = vrot.lane.b32.xlu0 %v1586, 4
      %v1650 = vpop.permute.xlu0 %1649
      %1651 = vrot.lane.b32.xlu0 %v1587, 4
      %v1652 = vpop.permute.xlu0 %1651
      %1653 = vrot.lane.b32.xlu0 %v1588, 4
      %v1654 = vpop.permute.xlu0 %1653
      %1655 = vrot.lane.b32.xlu0 %v1589, 4
      %v1656 = vpop.permute.xlu0 %1655
      %1657 = vrot.lane.b32.xlu0 %v1590, 4
      %v1658 = vpop.permute.xlu0 %1657
      %1659 = vrot.lane.b32.xlu0 %v1591, 4
      %v1660 = vpop.permute.xlu0 %1659
      %1661 = vrot.lane.b32.xlu0 %v1592, 4
      %v1662 = vpop.permute.xlu0 %1661
      %1663 = vrot.lane.b32.xlu0 %v1593, 4
      %v1664 = vpop.permute.xlu0 %1663
      %1665 = vrot.lane.b32.xlu0 %v1594, 4
      %v1666 = vpop.permute.xlu0 %1665
      %1667 = vrot.lane.b32.xlu0 %v1595, 4
      %v1668 = vpop.permute.xlu0 %1667
      %1669 = vrot.lane.b32.xlu0 %v1596, 4
      %v1670 = vpop.permute.xlu0 %1669
      %1671 = vrot.lane.b32.xlu0 %v1597, 4
      %v1672 = vpop.permute.xlu0 %1671
      %1673 = vrot.lane.b32.xlu0 %v1598, 4
      %v1674 = vpop.permute.xlu0 %1673
      %1675 = vrot.lane.b32.xlu0 %v1599, 4
      %v1676 = vpop.permute.xlu0 %1675
      %1677 = vrot.lane.b32.xlu0 %v1600, 4
      %v1678 = vpop.permute.xlu0 %1677
      %1679 = vrot.lane.b32.xlu0 %v1601, 4
      %v1680 = vpop.permute.xlu0 %1679
      %1681 = vrot.lane.b32.xlu0 %v1602, 4
      %v1682 = vpop.permute.xlu0 %1681
      %1723 = vrot.lane.b32.xlu0 %v1603, 8
      %v1724 = vpop.permute.xlu0 %1723
      %1725 = vrot.lane.b32.xlu0 %v1604, 8
      %v1726 = vpop.permute.xlu0 %1725
      %1727 = vrot.lane.b32.xlu0 %v1605, 8
      %v1728 = vpop.permute.xlu0 %1727
      %1729 = vrot.lane.b32.xlu0 %v1606, 8
      %v1730 = vpop.permute.xlu0 %1729
      %1731 = vrot.lane.b32.xlu0 %v1607, 8
      %v1732 = vpop.permute.xlu0 %1731
      %1733 = vrot.lane.b32.xlu0 %v1608, 8
      %v1734 = vpop.permute.xlu0 %1733
      %1735 = vrot.lane.b32.xlu0 %v1609, 8
      %v1736 = vpop.permute.xlu0 %1735
      %1737 = vrot.lane.b32.xlu0 %v1610, 8
      %v1738 = vpop.permute.xlu0 %1737
      %1739 = vrot.lane.b32.xlu0 %v1611, 8
      %v1740 = vpop.permute.xlu0 %1739
      %1741 = vrot.lane.b32.xlu0 %v1612, 8
      %v1742 = vpop.permute.xlu0 %1741
      %1743 = vrot.lane.b32.xlu0 %v1613, 8
      %v1744 = vpop.permute.xlu0 %1743
      %1745 = vrot.lane.b32.xlu0 %v1614, 8
      %v1746 = vpop.permute.xlu0 %1745
      %1747 = vrot.lane.b32.xlu0 %v1615, 8
      %v1748 = vpop.permute.xlu0 %1747
      %1749 = vrot.lane.b32.xlu0 %v1616, 8
      %v1750 = vpop.permute.xlu0 %1749
      %1751 = vrot.lane.b32.xlu0 %v1617, 8
      %v1752 = vpop.permute.xlu0 %1751
      %1753 = vrot.lane.b32.xlu0 %v1618, 8
      %v1754 = vpop.permute.xlu0 %1753
      %1755 = vrot.lane.b32.xlu0 %v1619, 8
      %v1756 = vpop.permute.xlu0 %1755
      %1757 = vrot.lane.b32.xlu0 %v1620, 8
      %v1758 = vpop.permute.xlu0 %1757
      %1759 = vrot.lane.b32.xlu0 %v1621, 8
      %v1760 = vpop.permute.xlu0 %1759
      %1761 = vrot.lane.b32.xlu0 %v1622, 8
      %v1762 = vpop.permute.xlu0 %1761
      %v1783 = vsel %vm519, %v1563, %v1644
      %v1784 = vsel %vm519, %v1564, %v1646
      %v1785 = vsel %vm519, %v1565, %v1648
      %v1786 = vsel %vm519, %v1566, %v1650
      %v1787 = vsel %vm519, %v1567, %v1652
      %v1788 = vsel %vm519, %v1568, %v1654
      %v1789 = vsel %vm519, %v1569, %v1656
      %v1790 = vsel %vm519, %v1570, %v1658
      %v1791 = vsel %vm519, %v1571, %v1660
      %v1792 = vsel %vm519, %v1572, %v1662
      %v1793 = vsel %vm519, %v1573, %v1664
      %v1794 = vsel %vm519, %v1574, %v1666
      %v1795 = vsel %vm519, %v1575, %v1668
      %v1796 = vsel %vm519, %v1576, %v1670
      %v1797 = vsel %vm519, %v1577, %v1672
      %v1798 = vsel %vm519, %v1578, %v1674
      %v1799 = vsel %vm519, %v1579, %v1676
      %v1800 = vsel %vm519, %v1580, %v1678
      %v1801 = vsel %vm519, %v1581, %v1680
      %v1802 = vsel %vm519, %v1582, %v1682
      %v1803 = vsel %vm818, %v1783, %v1724
      %v1804 = vsel %vm818, %v1784, %v1726
      %v1805 = vsel %vm818, %v1785, %v1728
      %v1806 = vsel %vm818, %v1786, %v1730
      %v1807 = vsel %vm818, %v1787, %v1732
      %v1808 = vsel %vm818, %v1788, %v1734
      %v1809 = vsel %vm818, %v1789, %v1736
      %v1810 = vsel %vm818, %v1790, %v1738
      %v1811 = vsel %vm818, %v1791, %v1740
      %v1812 = vsel %vm818, %v1792, %v1742
      %v1813 = vsel %vm818, %v1793, %v1744
      %v1814 = vsel %vm818, %v1794, %v1746
      %v1815 = vsel %vm818, %v1795, %v1748
      %v1816 = vsel %vm818, %v1796, %v1750
      %v1817 = vsel %vm818, %v1797, %v1752
      %v1818 = vsel %vm818, %v1798, %v1754
      %v1819 = vsel %vm818, %v1799, %v1756
      %v1820 = vsel %vm818, %v1800, %v1758
      %v1821 = vsel %vm818, %v1801, %v1760
      %v1822 = vsel %vm818, %v1802, %v1762
      %s1823 = scalar_lea.vmem %s3, 32
      %v1824 = vld [vmem:[%s1823] sm:$0xff]
      %v1825 = vld [vmem:[%s1823 + $0x8] sm:$0xf]
      %v1827 = vsel %vm1105, %v1803, 0
      %v1830 = vsel %vm1105, %v1804, 0
      %v1833 = vsel %vm1105, %v1805, 0
      %v1836 = vsel %vm1105, %v1806, 0
      %v1839 = vsel %vm1105, %v1807, 0
      %v1842 = vsel %vm1105, %v1808, 0
      %v1845 = vsel %vm1105, %v1809, 0
      %v1848 = vsel %vm1105, %v1810, 0
      %v1851 = vsel %vm1105, %v1811, 0
      %v1854 = vsel %vm1105, %v1812, 0
      %v1857 = vsel %vm1105, %v1813, 0
      %v1860 = vsel %vm1105, %v1814, 0
      %v1863 = vsel %vm1105, %v1815, 0
      %v1866 = vsel %vm1105, %v1816, 0
      %v1869 = vsel %vm1105, %v1817, 0
      %v1872 = vsel %vm1105, %v1818, 0
      %v1875 = vsel %vm1105, %v1819, 0
      %v1878 = vsel %vm1105, %v1820, 0
      %v1881 = vsel %vm1105, %v1821, 0
      %v1884 = vsel %vm1105, %v1822, 0
      %v1887 = vsel %vm1166, %v1825, 0
      %1889 = vmatprep.subr.mxu0 0.0
      %1890 = vmatpush1.msra.mxu0 0.0
      %1891 = vmatprep.subr.mxu0 0.0
      %1892 = vmatpush1.msra.mxu0 0.0
      %1893 = vmatprep.subr.mxu0 0.0
      %1894 = vmatpush1.msra.mxu0 0.0
      %1895 = vmatprep.subr.mxu0 0.0
      %1896 = vmatpush1.msra.mxu0 0.0
      %1897 = vmatprep.subr.mxu0 0.0
      %1898 = vmatpush1.msra.mxu0 0.0
      %1899 = vmatprep.subr.mxu0 0.0
      %1900 = vmatpush1.msra.mxu0 0.0
      %1901 = vmatprep.subr.mxu0 0.0
      %1902 = vmatpush1.msra.mxu0 0.0
      %1903 = vmatprep.subr.mxu0 0.0
      %1904 = vmatpush1.msra.mxu0 0.0
      %1905 = vmatprep.subr.mxu0 0.0
      %1906 = vmatpush1.msra.mxu0 0.0
      %1907 = vmatprep.subr.mxu0 0.0
      %1908 = vmatpush1.msra.mxu0 0.0
      %1909 = vmatprep.subr.mxu0 0.0
      %1910 = vmatpush1.msra.mxu0 0.0
      %1911 = vmatprep.subr.mxu0 0.0
      %1912 = vmatpush1.msra.mxu0 0.0
      %1913 = vmatprep.subr.mxu0 0.0
      %1914 = vmatpush1.msra.mxu0 0.0
      %1915 = vmatprep.subr.mxu0 0.0
      %1916 = vmatpush1.msra.mxu0 0.0
      %1917 = vmatprep.subr.mxu0 0.0
      %1918 = vmatpush1.msra.mxu0 %v1887
      %1919 = vmatprep.subr.mxu0 0.0
      %1920 = vmatpush1.msra.mxu0 %v1824
      %1921 = vmatprep.subr.mxu0 0.0
      %1922 = vmatpush2.msra.mxu0 0.0
      %1923 = vmatprep.subr.mxu0 0.0
      %1924 = vmatpush2.msra.mxu0 0.0
      %1925 = vmatprep.subr.mxu0 0.0
      %1926 = vmatpush2.msra.mxu0 0.0
      %1927 = vmatprep.subr.mxu0 0.0
      %1928 = vmatpush2.msra.mxu0 0.0
      %1929 = vmatprep.subr.mxu0 0.0
      %1930 = vmatpush2.msra.mxu0 0.0
      %1931 = vmatprep.subr.mxu0 0.0
      %1932 = vmatpush2.msra.mxu0 0.0
      %1933 = vmatprep.subr.mxu0 0.0
      %1934 = vmatpush2.msra.mxu0 0.0
      %1935 = vmatprep.subr.mxu0 0.0
      %1936 = vmatpush2.msra.mxu0 0.0
      %1937 = vmatprep.subr.mxu0 0.0
      %1938 = vmatpush2.msra.mxu0 0.0
      %1939 = vmatprep.subr.mxu0 0.0
      %1940 = vmatpush2.msra.mxu0 0.0
      %1941 = vmatprep.subr.mxu0 0.0
      %1942 = vmatpush2.msra.mxu0 0.0
      %1943 = vmatprep.subr.mxu0 0.0
      %1944 = vmatpush2.msra.mxu0 0.0
      %1945 = vmatprep.subr.mxu0 0.0
      %1946 = vmatpush2.msra.mxu0 0.0
      %1947 = vmatprep.subr.mxu0 0.0
      %1948 = vmatpush2.msra.mxu0 0.0
      %1949 = vmatprep.subr.mxu0 0.0
      %1950 = vmatpush2.msra.mxu0 0.0
      %1951 = vmatprep.subr.mxu0 0.0
      %1952 = vmatpush2.msra.mxu0 0.0
      %1953 = vmatprep.mubr.f32.mxu0 0.0
      %1954 = vmatmul.mubr.f32.gmra.mxu0 %v1827
      %v1955 = vpop.f32.mrf.mxu0
      %v1956 = vadd.f32 0.0, %v1955
      %v1957 = vpop.f32.mrf.mxu0
      %1958 = vmatprep.mubr.f32.mxu0 0.0
      %1959 = vmatmul.mubr.f32.gmra.mxu0 %v1830
      %v1960 = vpop.f32.mrf.mxu0
      %v1961 = vadd.f32 0.0, %v1960
      %v1962 = vpop.f32.mrf.mxu0
      %1963 = vmatprep.mubr.f32.mxu0 0.0
      %1964 = vmatmul.mubr.f32.gmra.mxu0 %v1833
      %v1965 = vpop.f32.mrf.mxu0
      %v1966 = vadd.f32 0.0, %v1965
      %v1967 = vpop.f32.mrf.mxu0
      %1968 = vmatprep.mubr.f32.mxu0 0.0
      %1969 = vmatmul.mubr.f32.gmra.mxu0 %v1836
      %v1970 = vpop.f32.mrf.mxu0
      %v1971 = vadd.f32 0.0, %v1970
      %v1972 = vpop.f32.mrf.mxu0
      %1973 = vmatprep.mubr.f32.mxu0 0.0
      %1974 = vmatmul.mubr.f32.gmra.mxu0 %v1839
      %v1975 = vpop.f32.mrf.mxu0
      %v1976 = vadd.f32 0.0, %v1975
      %v1977 = vpop.f32.mrf.mxu0
      %1978 = vmatprep.mubr.f32.mxu0 0.0
      %1979 = vmatmul.mubr.f32.gmra.mxu0 %v1842
      %v1980 = vpop.f32.mrf.mxu0
      %v1981 = vadd.f32 0.0, %v1980
      %v1982 = vpop.f32.mrf.mxu0
      %1983 = vmatprep.mubr.f32.mxu0 0.0
      %1984 = vmatmul.mubr.f32.gmra.mxu0 %v1845
      %v1985 = vpop.f32.mrf.mxu0
      %v1986 = vadd.f32 0.0, %v1985
      %v1987 = vpop.f32.mrf.mxu0
      %1988 = vmatprep.mubr.f32.mxu0 0.0
      %1989 = vmatmul.mubr.f32.gmra.mxu0 %v1848
      %v1990 = vpop.f32.mrf.mxu0
      %v1991 = vadd.f32 0.0, %v1990
      %v1992 = vpop.f32.mrf.mxu0
      %1993 = vmatprep.mubr.f32.mxu0 0.0
      %1994 = vmatmul.mubr.f32.gmra.mxu0 %v1851
      %v1995 = vpop.f32.mrf.mxu0
      %v1996 = vadd.f32 0.0, %v1995
      %v1997 = vpop.f32.mrf.mxu0
      %1998 = vmatprep.mubr.f32.mxu0 0.0
      %1999 = vmatmul.mubr.f32.gmra.mxu0 %v1854
      %v2000 = vpop.f32.mrf.mxu0
      %v2001 = vadd.f32 0.0, %v2000
      %v2002 = vpop.f32.mrf.mxu0
      %2003 = vmatprep.mubr.f32.mxu0 0.0
      %2004 = vmatmul.mubr.f32.gmra.mxu0 %v1857
      %v2005 = vpop.f32.mrf.mxu0
      %v2006 = vadd.f32 0.0, %v2005
      %v2007 = vpop.f32.mrf.mxu0
      %2008 = vmatprep.mubr.f32.mxu0 0.0
      %2009 = vmatmul.mubr.f32.gmra.mxu0 %v1860
      %v2010 = vpop.f32.mrf.mxu0
      %v2011 = vadd.f32 0.0, %v2010
      %v2012 = vpop.f32.mrf.mxu0
      %2013 = vmatprep.mubr.f32.mxu0 0.0
      %2014 = vmatmul.mubr.f32.gmra.mxu0 %v1863
      %v2015 = vpop.f32.mrf.mxu0
      %v2016 = vadd.f32 0.0, %v2015
      %v2017 = vpop.f32.mrf.mxu0
      %2018 = vmatprep.mubr.f32.mxu0 0.0
      %2019 = vmatmul.mubr.f32.gmra.mxu0 %v1866
      %v2020 = vpop.f32.mrf.mxu0
      %v2021 = vadd.f32 0.0, %v2020
      %v2022 = vpop.f32.mrf.mxu0
      %2023 = vmatprep.mubr.f32.mxu0 0.0
      %2024 = vmatmul.mubr.f32.gmra.mxu0 %v1869
      %v2025 = vpop.f32.mrf.mxu0
      %v2026 = vadd.f32 0.0, %v2025
      %v2027 = vpop.f32.mrf.mxu0
      %2028 = vmatprep.mubr.f32.mxu0 0.0
      %2029 = vmatmul.mubr.f32.gmra.mxu0 %v1872
      %v2030 = vpop.f32.mrf.mxu0
      %v2031 = vadd.f32 0.0, %v2030
      %v2032 = vpop.f32.mrf.mxu0
      %2033 = vmatprep.mubr.f32.mxu0 0.0
      %2034 = vmatmul.mubr.f32.gmra.mxu0 %v1875
      %v2035 = vpop.f32.mrf.mxu0
      %v2036 = vadd.f32 0.0, %v2035
      %v2037 = vpop.f32.mrf.mxu0
      %2038 = vmatprep.mubr.f32.mxu0 0.0
      %2039 = vmatmul.mubr.f32.gmra.mxu0 %v1878
      %v2040 = vpop.f32.mrf.mxu0
      %v2041 = vadd.f32 0.0, %v2040
      %v2042 = vpop.f32.mrf.mxu0
      %2043 = vmatprep.mubr.f32.mxu0 0.0
      %2044 = vmatmul.mubr.f32.gmra.mxu0 %v1881
      %v2045 = vpop.f32.mrf.mxu0
      %v2046 = vadd.f32 0.0, %v2045
      %v2047 = vpop.f32.mrf.mxu0
      %2048 = vmatprep.mubr.f32.mxu0 0.0
      %2049 = vmatmul.mubr.f32.gmra.mxu0 %v1884
      %v2050 = vpop.f32.mrf.mxu0
      %v2051 = vadd.f32 0.0, %v2050
      %v2052 = vpop.f32.mrf.mxu0
      %2053 = vdwg.mxu0
      %v2054 = vadd.f32 %v1465, %v1956
      %v2055 = vadd.f32 %v1470, %v1961
      %v2056 = vadd.f32 %v1475, %v1966
      %v2057 = vadd.f32 %v1480, %v1971
      %v2058 = vadd.f32 %v1485, %v1976
      %v2059 = vadd.f32 %v1490, %v1981
      %v2060 = vadd.f32 %v1495, %v1986
      %v2061 = vadd.f32 %v1500, %v1991
      %v2062 = vadd.f32 %v1505, %v1996
      %v2063 = vadd.f32 %v1510, %v2001
      %v2064 = vadd.f32 %v1515, %v2006
      %v2065 = vadd.f32 %v1520, %v2011
      %v2066 = vadd.f32 %v1525, %v2016
      %v2067 = vadd.f32 %v1530, %v2021
      %v2068 = vadd.f32 %v1535, %v2026
      %v2069 = vadd.f32 %v1540, %v2031
      %v2070 = vadd.f32 %v1545, %v2036
      %v2071 = vadd.f32 %v1550, %v2041
      %v2072 = vadd.f32 %v1555, %v2046
      %v2073 = vadd.f32 %v1560, %v2051
      %v2074 = vld [vmem:[%s4] sm:$0x1]
      %v2076 = vlaneseq
      %v2077 = vshrl.u32 %v2076, 7
      %v2078 = vsub.s32 0, %v2077
      %v2079 = vrot.slane %v2074, %v2078
      %v2081 = vadd.f32 %v2054, %v2079
      %v2082 = vadd.f32 %v2055, %v2079
      %v2083 = vadd.f32 %v2056, %v2079
      %v2084 = vadd.f32 %v2057, %v2079
      %v2085 = vadd.f32 %v2058, %v2079
      %v2086 = vadd.f32 %v2059, %v2079
      %v2087 = vadd.f32 %v2060, %v2079
      %v2088 = vadd.f32 %v2061, %v2079
      %v2089 = vadd.f32 %v2062, %v2079
      %v2090 = vadd.f32 %v2063, %v2079
      %v2091 = vadd.f32 %v2064, %v2079
      %v2092 = vadd.f32 %v2065, %v2079
      %v2093 = vadd.f32 %v2066, %v2079
      %v2094 = vadd.f32 %v2067, %v2079
      %v2095 = vadd.f32 %v2068, %v2079
      %v2096 = vadd.f32 %v2069, %v2079
      %v2097 = vadd.f32 %v2070, %v2079
      %v2098 = vadd.f32 %v2071, %v2079
      %v2099 = vadd.f32 %v2072, %v2079
      %v2100 = vadd.f32 %v2073, %v2079
      %v2101 = vmax.f32 %v2081, 0.0
      %v2102 = vmax.f32 %v2082, 0.0
      %v2103 = vmax.f32 %v2083, 0.0
      %v2104 = vmax.f32 %v2084, 0.0
      %v2105 = vmax.f32 %v2085, 0.0
      %v2106 = vmax.f32 %v2086, 0.0
      %v2107 = vmax.f32 %v2087, 0.0
      %v2108 = vmax.f32 %v2088, 0.0
      %v2109 = vmax.f32 %v2089, 0.0
      %v2110 = vmax.f32 %v2090, 0.0
      %v2111 = vmax.f32 %v2091, 0.0
      %v2112 = vmax.f32 %v2092, 0.0
      %v2113 = vmax.f32 %v2093, 0.0
      %v2114 = vmax.f32 %v2094, 0.0
      %v2115 = vmax.f32 %v2095, 0.0
      %v2116 = vmax.f32 %v2096, 0.0
      %v2117 = vmax.f32 %v2097, 0.0
      %v2118 = vmax.f32 %v2098, 0.0
      %v2119 = vmax.f32 %v2099, 0.0
      %v2120 = vmax.f32 %v2100, 0.0
      %2121 = vst.msk [vmem:[#allocation3 + $0x8] sm:$0xff] %vm519, %v2101
      %2122 = vst.msk [vmem:[#allocation3 + $0x10] sm:$0xff] %vm519, %v2102
      %2123 = vst.msk [vmem:[#allocation3 + $0x28] sm:$0xff] %vm519, %v2103
      %2124 = vst.msk [vmem:[#allocation3 + $0x30] sm:$0xff] %vm519, %v2104
      %2125 = vst.msk [vmem:[#allocation3 + $0x48] sm:$0xff] %vm519, %v2105
      %2126 = vst.msk [vmem:[#allocation3 + $0x50] sm:$0xff] %vm519, %v2106
      %2127 = vst.msk [vmem:[#allocation3 + $0x68] sm:$0xff] %vm519, %v2107
      %2128 = vst.msk [vmem:[#allocation3 + $0x70] sm:$0xff] %vm519, %v2108
      %2129 = vst.msk [vmem:[#allocation3 + $0x88] sm:$0xff] %vm519, %v2109
      %2130 = vst.msk [vmem:[#allocation3 + $0x90] sm:$0xff] %vm519, %v2110
      %2131 = vst.msk [vmem:[#allocation3 + $0xa8] sm:$0xff] %vm519, %v2111
      %2132 = vst.msk [vmem:[#allocation3 + $0xb0] sm:$0xff] %vm519, %v2112
      %2133 = vst.msk [vmem:[#allocation3 + $0xc8] sm:$0xff] %vm519, %v2113
      %2134 = vst.msk [vmem:[#allocation3 + $0xd0] sm:$0xff] %vm519, %v2114
      %2135 = vst.msk [vmem:[#allocation3 + $0xe8] sm:$0xff] %vm519, %v2115
      %2136 = vst.msk [vmem:[#allocation3 + $0xf0] sm:$0xff] %vm519, %v2116
      %2137 = vst.msk [vmem:[#allocation3 + $0x108] sm:$0xff] %vm519, %v2117
      %2138 = vst.msk [vmem:[#allocation3 + $0x110] sm:$0xff] %vm519, %v2118
      %2139 = vst.msk [vmem:[#allocation3 + $0x128] sm:$0xff] %vm519, %v2119
      %2140 = vst.msk [vmem:[#allocation3 + $0x130] sm:$0xff] %vm519, %v2120
      // Predicated region
      $region65: #{tpu_custom_call.1} parent=47 // pred_check
        %p2141 = pneg %p548
      $region66: #{tpu_custom_call.1} parent=47 // pred_check_branch
        %2143 = sbr.rel (%p2141) target = $region68
      $region67: #{tpu_custom_call.1} parent=47 // pred_region
        %2144 = vst.msk [vmem:[#allocation3 + $0x8] sm:$0xff] %vm519, 0.0
        %2145 = vst.msk [vmem:[#allocation3 + $0x10] sm:$0xff] %vm519, 0.0
      $region68: #{tpu_custom_call.1} parent=47 // pred_fallthru
        _
      // Predicated region
      $region69: #{tpu_custom_call.1} parent=47 // pred_check
        %p2146 = pneg %p569
      $region70: #{tpu_custom_call.1} parent=47 // pred_check_branch
        %2148 = sbr.rel (%p2146) target = $region72
      $region71: #{tpu_custom_call.1} parent=47 // pred_region
        %s2149 = scalar_lea.vmem [#allocation3], 288
        %2150 = vst.msk [vmem:[%s2149 + $0x8] sm:$0xff] %vm519, 0.0
        %2151 = vst.msk [vmem:[%s2149 + $0x10] sm:$0xff] %vm519, 0.0
      $region72: #{tpu_custom_call.1} parent=47 // pred_fallthru
        _
      %v2152 = vld [vmem:[#allocation3 + $0x7] sm:$0xff]
      %v2153 = vld [vmem:[#allocation3 + $0xf] sm:$0xff]
      %v2154 = vld [vmem:[#allocation3 + $0x27] sm:$0xff]
      %v2155 = vld [vmem:[#allocation3 + $0x2f] sm:$0xff]
      %v2156 = vld [vmem:[#allocation3 + $0x47] sm:$0xff]
      %v2157 = vld [vmem:[#allocation3 + $0x4f] sm:$0xff]
      %v2158 = vld [vmem:[#allocation3 + $0x67] sm:$0xff]
      %v2159 = vld [vmem:[#allocation3 + $0x6f] sm:$0xff]
      %v2160 = vld [vmem:[#allocation3 + $0x87] sm:$0xff]
      %v2161 = vld [vmem:[#allocation3 + $0x8f] sm:$0xff]
      %v2162 = vld [vmem:[#allocation3 + $0xa7] sm:$0xff]
      %v2163 = vld [vmem:[#allocation3 + $0xaf] sm:$0xff]
      %v2164 = vld [vmem:[#allocation3 + $0xc7] sm:$0xff]
      %v2165 = vld [vmem:[#allocation3 + $0xcf] sm:$0xff]
      %v2166 = vld [vmem:[#allocation3 + $0xe7] sm:$0xff]
      %v2167 = vld [vmem:[#allocation3 + $0xef] sm:$0xff]
      %v2168 = vld [vmem:[#allocation3 + $0x8] sm:$0xff]
      %v2169 = vld [vmem:[#allocation3 + $0x10] sm:$0xff]
      %v2170 = vld [vmem:[#allocation3 + $0x28] sm:$0xff]
      %v2171 = vld [vmem:[#allocation3 + $0x30] sm:$0xff]
      %v2172 = vld [vmem:[#allocation3 + $0x48] sm:$0xff]
      %v2173 = vld [vmem:[#allocation3 + $0x50] sm:$0xff]
      %v2174 = vld [vmem:[#allocation3 + $0x68] sm:$0xff]
      %v2175 = vld [vmem:[#allocation3 + $0x70] sm:$0xff]
      %v2176 = vld [vmem:[#allocation3 + $0x88] sm:$0xff]
      %v2177 = vld [vmem:[#allocation3 + $0x90] sm:$0xff]
      %v2178 = vld [vmem:[#allocation3 + $0xa8] sm:$0xff]
      %v2179 = vld [vmem:[#allocation3 + $0xb0] sm:$0xff]
      %v2180 = vld [vmem:[#allocation3 + $0xc8] sm:$0xff]
      %v2181 = vld [vmem:[#allocation3 + $0xd0] sm:$0xff]
      %v2182 = vld [vmem:[#allocation3 + $0xe8] sm:$0xff]
      %v2183 = vld [vmem:[#allocation3 + $0xf0] sm:$0xff]
      %v2184 = vld [vmem:[#allocation3 + $0x9] sm:$0xff]
      %v2185 = vld [vmem:[#allocation3 + $0x11] sm:$0xff]
      %v2186 = vld [vmem:[#allocation3 + $0x29] sm:$0xff]
      %v2187 = vld [vmem:[#allocation3 + $0x31] sm:$0xff]
      %v2188 = vld [vmem:[#allocation3 + $0x49] sm:$0xff]
      %v2189 = vld [vmem:[#allocation3 + $0x51] sm:$0xff]
      %v2190 = vld [vmem:[#allocation3 + $0x69] sm:$0xff]
      %v2191 = vld [vmem:[#allocation3 + $0x71] sm:$0xff]
      %v2192 = vld [vmem:[#allocation3 + $0x89] sm:$0xff]
      %v2193 = vld [vmem:[#allocation3 + $0x91] sm:$0xff]
      %v2194 = vld [vmem:[#allocation3 + $0xa9] sm:$0xff]
      %v2195 = vld [vmem:[#allocation3 + $0xb1] sm:$0xff]
      %v2196 = vld [vmem:[#allocation3 + $0xc9] sm:$0xff]
      %v2197 = vld [vmem:[#allocation3 + $0xd1] sm:$0xff]
      %v2198 = vld [vmem:[#allocation3 + $0xe9] sm:$0xff]
      %v2199 = vld [vmem:[#allocation3 + $0xf1] sm:$0xff]
      %2216 = vrot.lane.b32.xlu0 %v2168, 4
      %v2217 = vpop.permute.xlu0 %2216
      %2218 = vrot.lane.b32.xlu0 %v2169, 4
      %v2219 = vpop.permute.xlu0 %2218
      %2220 = vrot.lane.b32.xlu0 %v2170, 4
      %v2221 = vpop.permute.xlu0 %2220
      %2222 = vrot.lane.b32.xlu0 %v2171, 4
      %v2223 = vpop.permute.xlu0 %2222
      %2224 = vrot.lane.b32.xlu0 %v2172, 4
      %v2225 = vpop.permute.xlu0 %2224
      %2226 = vrot.lane.b32.xlu0 %v2173, 4
      %v2227 = vpop.permute.xlu0 %2226
      %2228 = vrot.lane.b32.xlu0 %v2174, 4
      %v2229 = vpop.permute.xlu0 %2228
      %2230 = vrot.lane.b32.xlu0 %v2175, 4
      %v2231 = vpop.permute.xlu0 %2230
      %2232 = vrot.lane.b32.xlu0 %v2176, 4
      %v2233 = vpop.permute.xlu0 %2232
      %2234 = vrot.lane.b32.xlu0 %v2177, 4
      %v2235 = vpop.permute.xlu0 %2234
      %2236 = vrot.lane.b32.xlu0 %v2178, 4
      %v2237 = vpop.permute.xlu0 %2236
      %2238 = vrot.lane.b32.xlu0 %v2179, 4
      %v2239 = vpop.permute.xlu0 %2238
      %2240 = vrot.lane.b32.xlu0 %v2180, 4
      %v2241 = vpop.permute.xlu0 %2240
      %2242 = vrot.lane.b32.xlu0 %v2181, 4
      %v2243 = vpop.permute.xlu0 %2242
      %2244 = vrot.lane.b32.xlu0 %v2182, 4
      %v2245 = vpop.permute.xlu0 %2244
      %2246 = vrot.lane.b32.xlu0 %v2183, 4
      %v2247 = vpop.permute.xlu0 %2246
      %2280 = vrot.lane.b32.xlu0 %v2184, 8
      %v2281 = vpop.permute.xlu0 %2280
      %2282 = vrot.lane.b32.xlu0 %v2185, 8
      %v2283 = vpop.permute.xlu0 %2282
      %2284 = vrot.lane.b32.xlu0 %v2186, 8
      %v2285 = vpop.permute.xlu0 %2284
      %2286 = vrot.lane.b32.xlu0 %v2187, 8
      %v2287 = vpop.permute.xlu0 %2286
      %2288 = vrot.lane.b32.xlu0 %v2188, 8
      %v2289 = vpop.permute.xlu0 %2288
      %2290 = vrot.lane.b32.xlu0 %v2189, 8
      %v2291 = vpop.permute.xlu0 %2290
      %2292 = vrot.lane.b32.xlu0 %v2190, 8
      %v2293 = vpop.permute.xlu0 %2292
      %2294 = vrot.lane.b32.xlu0 %v2191, 8
      %v2295 = vpop.permute.xlu0 %2294
      %2296 = vrot.lane.b32.xlu0 %v2192, 8
      %v2297 = vpop.permute.xlu0 %2296
      %2298 = vrot.lane.b32.xlu0 %v2193, 8
      %v2299 = vpop.permute.xlu0 %2298
      %2300 = vrot.lane.b32.xlu0 %v2194, 8
      %v2301 = vpop.permute.xlu0 %2300
      %2302 = vrot.lane.b32.xlu0 %v2195, 8
      %v2303 = vpop.permute.xlu0 %2302
      %2304 = vrot.lane.b32.xlu0 %v2196, 8
      %v2305 = vpop.permute.xlu0 %2304
      %2306 = vrot.lane.b32.xlu0 %v2197, 8
      %v2307 = vpop.permute.xlu0 %2306
      %2308 = vrot.lane.b32.xlu0 %v2198, 8
      %v2309 = vpop.permute.xlu0 %2308
      %2310 = vrot.lane.b32.xlu0 %v2199, 8
      %v2311 = vpop.permute.xlu0 %2310
      %v2328 = vsel %vm519, %v2152, %v2217
      %v2329 = vsel %vm519, %v2153, %v2219
      %v2330 = vsel %vm519, %v2154, %v2221
      %v2331 = vsel %vm519, %v2155, %v2223
      %v2332 = vsel %vm519, %v2156, %v2225
      %v2333 = vsel %vm519, %v2157, %v2227
      %v2334 = vsel %vm519, %v2158, %v2229
      %v2335 = vsel %vm519, %v2159, %v2231
      %v2336 = vsel %vm519, %v2160, %v2233
      %v2337 = vsel %vm519, %v2161, %v2235
      %v2338 = vsel %vm519, %v2162, %v2237
      %v2339 = vsel %vm519, %v2163, %v2239
      %v2340 = vsel %vm519, %v2164, %v2241
      %v2341 = vsel %vm519, %v2165, %v2243
      %v2342 = vsel %vm519, %v2166, %v2245
      %v2343 = vsel %vm519, %v2167, %v2247
      %v2344 = vsel %vm818, %v2328, %v2281
      %v2345 = vsel %vm818, %v2329, %v2283
      %v2346 = vsel %vm818, %v2330, %v2285
      %v2347 = vsel %vm818, %v2331, %v2287
      %v2348 = vsel %vm818, %v2332, %v2289
      %v2349 = vsel %vm818, %v2333, %v2291
      %v2350 = vsel %vm818, %v2334, %v2293
      %v2351 = vsel %vm818, %v2335, %v2295
      %v2352 = vsel %vm818, %v2336, %v2297
      %v2353 = vsel %vm818, %v2337, %v2299
      %v2354 = vsel %vm818, %v2338, %v2301
      %v2355 = vsel %vm818, %v2339, %v2303
      %v2356 = vsel %vm818, %v2340, %v2305
      %v2357 = vsel %vm818, %v2341, %v2307
      %v2358 = vsel %vm818, %v2342, %v2309
      %v2359 = vsel %vm818, %v2343, %v2311
      %v2360 = vld [vmem:[%s5] sm:$0xff]
      %v2361 = vld [vmem:[%s5 + $0x8] sm:$0xf]
      %s2362 = scalar_lea.vmem [#allocation3], 32
      %v2363 = vld [vmem:[%s2362 + $0x7] sm:$0xff]
      %v2364 = vld [vmem:[%s2362 + $0xf] sm:$0xff]
      %v2365 = vld [vmem:[%s2362 + $0x27] sm:$0xff]
      %v2366 = vld [vmem:[%s2362 + $0x2f] sm:$0xff]
      %v2367 = vld [vmem:[%s2362 + $0x47] sm:$0xff]
      %v2368 = vld [vmem:[%s2362 + $0x4f] sm:$0xff]
      %v2369 = vld [vmem:[%s2362 + $0x67] sm:$0xff]
      %v2370 = vld [vmem:[%s2362 + $0x6f] sm:$0xff]
      %v2371 = vld [vmem:[%s2362 + $0x87] sm:$0xff]
      %v2372 = vld [vmem:[%s2362 + $0x8f] sm:$0xff]
      %v2373 = vld [vmem:[%s2362 + $0xa7] sm:$0xff]
      %v2374 = vld [vmem:[%s2362 + $0xaf] sm:$0xff]
      %v2375 = vld [vmem:[%s2362 + $0xc7] sm:$0xff]
      %v2376 = vld [vmem:[%s2362 + $0xcf] sm:$0xff]
      %v2377 = vld [vmem:[%s2362 + $0xe7] sm:$0xff]
      %v2378 = vld [vmem:[%s2362 + $0xef] sm:$0xff]
      %v2379 = vld [vmem:[%s2362 + $0x8] sm:$0xff]
      %v2380 = vld [vmem:[%s2362 + $0x10] sm:$0xff]
      %v2381 = vld [vmem:[%s2362 + $0x28] sm:$0xff]
      %v2382 = vld [vmem:[%s2362 + $0x30] sm:$0xff]
      %v2383 = vld [vmem:[%s2362 + $0x48] sm:$0xff]
      %v2384 = vld [vmem:[%s2362 + $0x50] sm:$0xff]
      %v2385 = vld [vmem:[%s2362 + $0x68] sm:$0xff]
      %v2386 = vld [vmem:[%s2362 + $0x70] sm:$0xff]
      %v2387 = vld [vmem:[%s2362 + $0x88] sm:$0xff]
      %v2388 = vld [vmem:[%s2362 + $0x90] sm:$0xff]
      %v2389 = vld [vmem:[%s2362 + $0xa8] sm:$0xff]
      %v2390 = vld [vmem:[%s2362 + $0xb0] sm:$0xff]
      %v2391 = vld [vmem:[%s2362 + $0xc8] sm:$0xff]
      %v2392 = vld [vmem:[%s2362 + $0xd0] sm:$0xff]
      %v2393 = vld [vmem:[%s2362 + $0xe8] sm:$0xff]
      %v2394 = vld [vmem:[%s2362 + $0xf0] sm:$0xff]
      %v2395 = vld [vmem:[%s2362 + $0x9] sm:$0xff]
      %v2396 = vld [vmem:[%s2362 + $0x11] sm:$0xff]
      %v2397 = vld [vmem:[%s2362 + $0x29] sm:$0xff]
      %v2398 = vld [vmem:[%s2362 + $0x31] sm:$0xff]
      %v2399 = vld [vmem:[%s2362 + $0x49] sm:$0xff]
      %v2400 = vld [vmem:[%s2362 + $0x51] sm:$0xff]
      %v2401 = vld [vmem:[%s2362 + $0x69] sm:$0xff]
      %v2402 = vld [vmem:[%s2362 + $0x71] sm:$0xff]
      %v2403 = vld [vmem:[%s2362 + $0x89] sm:$0xff]
      %v2404 = vld [vmem:[%s2362 + $0x91] sm:$0xff]
      %v2405 = vld [vmem:[%s2362 + $0xa9] sm:$0xff]
      %v2406 = vld [vmem:[%s2362 + $0xb1] sm:$0xff]
      %v2407 = vld [vmem:[%s2362 + $0xc9] sm:$0xff]
      %v2408 = vld [vmem:[%s2362 + $0xd1] sm:$0xff]
      %v2409 = vld [vmem:[%s2362 + $0xe9] sm:$0xff]
      %v2410 = vld [vmem:[%s2362 + $0xf1] sm:$0xff]
      %2427 = vrot.lane.b32.xlu0 %v2379, 4
      %v2428 = vpop.permute.xlu0 %2427
      %2429 = vrot.lane.b32.xlu0 %v2380, 4
      %v2430 = vpop.permute.xlu0 %2429
      %2431 = vrot.lane.b32.xlu0 %v2381, 4
      %v2432 = vpop.permute.xlu0 %2431
      %2433 = vrot.lane.b32.xlu0 %v2382, 4
      %v2434 = vpop.permute.xlu0 %2433
      %2435 = vrot.lane.b32.xlu0 %v2383, 4
      %v2436 = vpop.permute.xlu0 %2435
      %2437 = vrot.lane.b32.xlu0 %v2384, 4
      %v2438 = vpop.permute.xlu0 %2437
      %2439 = vrot.lane.b32.xlu0 %v2385, 4
      %v2440 = vpop.permute.xlu0 %2439
      %2441 = vrot.lane.b32.xlu0 %v2386, 4
      %v2442 = vpop.permute.xlu0 %2441
      %2443 = vrot.lane.b32.xlu0 %v2387, 4
      %v2444 = vpop.permute.xlu0 %2443
      %2445 = vrot.lane.b32.xlu0 %v2388, 4
      %v2446 = vpop.permute.xlu0 %2445
      %2447 = vrot.lane.b32.xlu0 %v2389, 4
      %v2448 = vpop.permute.xlu0 %2447
      %2449 = vrot.lane.b32.xlu0 %v2390, 4
      %v2450 = vpop.permute.xlu0 %2449
      %2451 = vrot.lane.b32.xlu0 %v2391, 4
      %v2452 = vpop.permute.xlu0 %2451
      %2453 = vrot.lane.b32.xlu0 %v2392, 4
      %v2454 = vpop.permute.xlu0 %2453
      %2455 = vrot.lane.b32.xlu0 %v2393, 4
      %v2456 = vpop.permute.xlu0 %2455
      %2457 = vrot.lane.b32.xlu0 %v2394, 4
      %v2458 = vpop.permute.xlu0 %2457
      %2491 = vrot.lane.b32.xlu0 %v2395, 8
      %v2492 = vpop.permute.xlu0 %2491
      %2493 = vrot.lane.b32.xlu0 %v2396, 8
      %v2494 = vpop.permute.xlu0 %2493
      %2495 = vrot.lane.b32.xlu0 %v2397, 8
      %v2496 = vpop.permute.xlu0 %2495
      %2497 = vrot.lane.b32.xlu0 %v2398, 8
      %v2498 = vpop.permute.xlu0 %2497
      %2499 = vrot.lane.b32.xlu0 %v2399, 8
      %v2500 = vpop.permute.xlu0 %2499
      %2501 = vrot.lane.b32.xlu0 %v2400, 8
      %v2502 = vpop.permute.xlu0 %2501
      %2503 = vrot.lane.b32.xlu0 %v2401, 8
      %v2504 = vpop.permute.xlu0 %2503
      %2505 = vrot.lane.b32.xlu0 %v2402, 8
      %v2506 = vpop.permute.xlu0 %2505
      %2507 = vrot.lane.b32.xlu0 %v2403, 8
      %v2508 = vpop.permute.xlu0 %2507
      %2509 = vrot.lane.b32.xlu0 %v2404, 8
      %v2510 = vpop.permute.xlu0 %2509
      %2511 = vrot.lane.b32.xlu0 %v2405, 8
      %v2512 = vpop.permute.xlu0 %2511
      %2513 = vrot.lane.b32.xlu0 %v2406, 8
      %v2514 = vpop.permute.xlu0 %2513
      %2515 = vrot.lane.b32.xlu0 %v2407, 8
      %v2516 = vpop.permute.xlu0 %2515
      %2517 = vrot.lane.b32.xlu0 %v2408, 8
      %v2518 = vpop.permute.xlu0 %2517
      %2519 = vrot.lane.b32.xlu0 %v2409, 8
      %v2520 = vpop.permute.xlu0 %2519
      %2521 = vrot.lane.b32.xlu0 %v2410, 8
      %v2522 = vpop.permute.xlu0 %2521
      %v2539 = vsel %vm519, %v2363, %v2428
      %v2540 = vsel %vm519, %v2364, %v2430
      %v2541 = vsel %vm519, %v2365, %v2432
      %v2542 = vsel %vm519, %v2366, %v2434
      %v2543 = vsel %vm519, %v2367, %v2436
      %v2544 = vsel %vm519, %v2368, %v2438
      %v2545 = vsel %vm519, %v2369, %v2440
      %v2546 = vsel %vm519, %v2370, %v2442
      %v2547 = vsel %vm519, %v2371, %v2444
      %v2548 = vsel %vm519, %v2372, %v2446
      %v2549 = vsel %vm519, %v2373, %v2448
      %v2550 = vsel %vm519, %v2374, %v2450
      %v2551 = vsel %vm519, %v2375, %v2452
      %v2552 = vsel %vm519, %v2376, %v2454
      %v2553 = vsel %vm519, %v2377, %v2456
      %v2554 = vsel %vm519, %v2378, %v2458
      %v2555 = vsel %vm818, %v2539, %v2492
      %v2556 = vsel %vm818, %v2540, %v2494
      %v2557 = vsel %vm818, %v2541, %v2496
      %v2558 = vsel %vm818, %v2542, %v2498
      %v2559 = vsel %vm818, %v2543, %v2500
      %v2560 = vsel %vm818, %v2544, %v2502
      %v2561 = vsel %vm818, %v2545, %v2504
      %v2562 = vsel %vm818, %v2546, %v2506
      %v2563 = vsel %vm818, %v2547, %v2508
      %v2564 = vsel %vm818, %v2548, %v2510
      %v2565 = vsel %vm818, %v2549, %v2512
      %v2566 = vsel %vm818, %v2550, %v2514
      %v2567 = vsel %vm818, %v2551, %v2516
      %v2568 = vsel %vm818, %v2552, %v2518
      %v2569 = vsel %vm818, %v2553, %v2520
      %v2570 = vsel %vm818, %v2554, %v2522
      %s2571 = scalar_lea.vmem %s5, 16
      %v2572 = vld [vmem:[%s2571] sm:$0xff]
      %v2573 = vld [vmem:[%s2571 + $0x8] sm:$0xf]
      %v2575 = vsel %vm1105, %v2555, 0
      %v2578 = vsel %vm1105, %v2556, 0
      %v2581 = vsel %vm1105, %v2557, 0
      %v2584 = vsel %vm1105, %v2558, 0
      %v2587 = vsel %vm1105, %v2559, 0
      %v2590 = vsel %vm1105, %v2560, 0
      %v2593 = vsel %vm1105, %v2561, 0
      %v2596 = vsel %vm1105, %v2562, 0
      %v2599 = vsel %vm1105, %v2563, 0
      %v2602 = vsel %vm1105, %v2564, 0
      %v2605 = vsel %vm1105, %v2565, 0
      %v2608 = vsel %vm1105, %v2566, 0
      %v2611 = vsel %vm1105, %v2567, 0
      %v2614 = vsel %vm1105, %v2568, 0
      %v2617 = vsel %vm1105, %v2569, 0
      %v2620 = vsel %vm1105, %v2570, 0
      %v2623 = vsel %vm1166, %v2573, 0
      %2625 = vmatprep.subr.mxu0 0.0
      %2626 = vmatpush1.msra.mxu0 0.0
      %2627 = vmatprep.subr.mxu0 0.0
      %2628 = vmatpush1.msra.mxu0 0.0
      %2629 = vmatprep.subr.mxu0 0.0
      %2630 = vmatpush1.msra.mxu0 0.0
      %2631 = vmatprep.subr.mxu0 0.0
      %2632 = vmatpush1.msra.mxu0 0.0
      %2633 = vmatprep.subr.mxu0 0.0
      %2634 = vmatpush1.msra.mxu0 0.0
      %2635 = vmatprep.subr.mxu0 0.0
      %2636 = vmatpush1.msra.mxu0 0.0
      %2637 = vmatprep.subr.mxu0 0.0
      %2638 = vmatpush1.msra.mxu0 0.0
      %2639 = vmatprep.subr.mxu0 0.0
      %2640 = vmatpush1.msra.mxu0 0.0
      %2641 = vmatprep.subr.mxu0 0.0
      %2642 = vmatpush1.msra.mxu0 0.0
      %2643 = vmatprep.subr.mxu0 0.0
      %2644 = vmatpush1.msra.mxu0 0.0
      %2645 = vmatprep.subr.mxu0 0.0
      %2646 = vmatpush1.msra.mxu0 0.0
      %2647 = vmatprep.subr.mxu0 0.0
      %2648 = vmatpush1.msra.mxu0 0.0
      %2649 = vmatprep.subr.mxu0 0.0
      %2650 = vmatpush1.msra.mxu0 0.0
      %2651 = vmatprep.subr.mxu0 0.0
      %2652 = vmatpush1.msra.mxu0 0.0
      %2653 = vmatprep.subr.mxu0 0.0
      %2654 = vmatpush1.msra.mxu0 %v2623
      %2655 = vmatprep.subr.mxu0 0.0
      %2656 = vmatpush1.msra.mxu0 %v2572
      %2657 = vmatprep.subr.mxu0 0.0
      %2658 = vmatpush2.msra.mxu0 0.0
      %2659 = vmatprep.subr.mxu0 0.0
      %2660 = vmatpush2.msra.mxu0 0.0
      %2661 = vmatprep.subr.mxu0 0.0
      %2662 = vmatpush2.msra.mxu0 0.0
      %2663 = vmatprep.subr.mxu0 0.0
      %2664 = vmatpush2.msra.mxu0 0.0
      %2665 = vmatprep.subr.mxu0 0.0
      %2666 = vmatpush2.msra.mxu0 0.0
      %2667 = vmatprep.subr.mxu0 0.0
      %2668 = vmatpush2.msra.mxu0 0.0
      %2669 = vmatprep.subr.mxu0 0.0
      %2670 = vmatpush2.msra.mxu0 0.0
      %2671 = vmatprep.subr.mxu0 0.0
      %2672 = vmatpush2.msra.mxu0 0.0
      %2673 = vmatprep.subr.mxu0 0.0
      %2674 = vmatpush2.msra.mxu0 0.0
      %2675 = vmatprep.subr.mxu0 0.0
      %2676 = vmatpush2.msra.mxu0 0.0
      %2677 = vmatprep.subr.mxu0 0.0
      %2678 = vmatpush2.msra.mxu0 0.0
      %2679 = vmatprep.subr.mxu0 0.0
      %2680 = vmatpush2.msra.mxu0 0.0
      %2681 = vmatprep.subr.mxu0 0.0
      %2682 = vmatpush2.msra.mxu0 0.0
      %2683 = vmatprep.subr.mxu0 0.0
      %2684 = vmatpush2.msra.mxu0 0.0
      %2685 = vmatprep.subr.mxu0 0.0
      %2686 = vmatpush2.msra.mxu0 0.0
      %2687 = vmatprep.subr.mxu0 0.0
      %2688 = vmatpush2.msra.mxu0 0.0
      %2689 = vmatprep.mubr.f32.mxu0 0.0
      %2690 = vmatmul.mubr.f32.gmra.mxu0 %v2575
      %v2691 = vpop.f32.mrf.mxu0
      %v2692 = vadd.f32 0.0, %v2691
      %v2693 = vpop.f32.mrf.mxu0
      %2694 = vmatprep.mubr.f32.mxu0 0.0
      %2695 = vmatmul.mubr.f32.gmra.mxu0 %v2578
      %v2696 = vpop.f32.mrf.mxu0
      %v2697 = vadd.f32 0.0, %v2696
      %v2698 = vpop.f32.mrf.mxu0
      %2699 = vmatprep.mubr.f32.mxu0 0.0
      %2700 = vmatmul.mubr.f32.gmra.mxu0 %v2581
      %v2701 = vpop.f32.mrf.mxu0
      %v2702 = vadd.f32 0.0, %v2701
      %v2703 = vpop.f32.mrf.mxu0
      %2704 = vmatprep.mubr.f32.mxu0 0.0
      %2705 = vmatmul.mubr.f32.gmra.mxu0 %v2584
      %v2706 = vpop.f32.mrf.mxu0
      %v2707 = vadd.f32 0.0, %v2706
      %v2708 = vpop.f32.mrf.mxu0
      %2709 = vmatprep.mubr.f32.mxu0 0.0
      %2710 = vmatmul.mubr.f32.gmra.mxu0 %v2587
      %v2711 = vpop.f32.mrf.mxu0
      %v2712 = vadd.f32 0.0, %v2711
      %v2713 = vpop.f32.mrf.mxu0
      %2714 = vmatprep.mubr.f32.mxu0 0.0
      %2715 = vmatmul.mubr.f32.gmra.mxu0 %v2590
      %v2716 = vpop.f32.mrf.mxu0
      %v2717 = vadd.f32 0.0, %v2716
      %v2718 = vpop.f32.mrf.mxu0
      %2719 = vmatprep.mubr.f32.mxu0 0.0
      %2720 = vmatmul.mubr.f32.gmra.mxu0 %v2593
      %v2721 = vpop.f32.mrf.mxu0
      %v2722 = vadd.f32 0.0, %v2721
      %v2723 = vpop.f32.mrf.mxu0
      %2724 = vmatprep.mubr.f32.mxu0 0.0
      %2725 = vmatmul.mubr.f32.gmra.mxu0 %v2596
      %v2726 = vpop.f32.mrf.mxu0
      %v2727 = vadd.f32 0.0, %v2726
      %v2728 = vpop.f32.mrf.mxu0
      %2729 = vmatprep.mubr.f32.mxu0 0.0
      %2730 = vmatmul.mubr.f32.gmra.mxu0 %v2599
      %v2731 = vpop.f32.mrf.mxu0
      %v2732 = vadd.f32 0.0, %v2731
      %v2733 = vpop.f32.mrf.mxu0
      %2734 = vmatprep.mubr.f32.mxu0 0.0
      %2735 = vmatmul.mubr.f32.gmra.mxu0 %v2602
      %v2736 = vpop.f32.mrf.mxu0
      %v2737 = vadd.f32 0.0, %v2736
      %v2738 = vpop.f32.mrf.mxu0
      %2739 = vmatprep.mubr.f32.mxu0 0.0
      %2740 = vmatmul.mubr.f32.gmra.mxu0 %v2605
      %v2741 = vpop.f32.mrf.mxu0
      %v2742 = vadd.f32 0.0, %v2741
      %v2743 = vpop.f32.mrf.mxu0
      %2744 = vmatprep.mubr.f32.mxu0 0.0
      %2745 = vmatmul.mubr.f32.gmra.mxu0 %v2608
      %v2746 = vpop.f32.mrf.mxu0
      %v2747 = vadd.f32 0.0, %v2746
      %v2748 = vpop.f32.mrf.mxu0
      %2749 = vmatprep.mubr.f32.mxu0 0.0
      %2750 = vmatmul.mubr.f32.gmra.mxu0 %v2611
      %v2751 = vpop.f32.mrf.mxu0
      %v2752 = vadd.f32 0.0, %v2751
      %v2753 = vpop.f32.mrf.mxu0
      %2754 = vmatprep.mubr.f32.mxu0 0.0
      %2755 = vmatmul.mubr.f32.gmra.mxu0 %v2614
      %v2756 = vpop.f32.mrf.mxu0
      %v2757 = vadd.f32 0.0, %v2756
      %v2758 = vpop.f32.mrf.mxu0
      %2759 = vmatprep.mubr.f32.mxu0 0.0
      %2760 = vmatmul.mubr.f32.gmra.mxu0 %v2617
      %v2761 = vpop.f32.mrf.mxu0
      %v2762 = vadd.f32 0.0, %v2761
      %v2763 = vpop.f32.mrf.mxu0
      %2764 = vmatprep.mubr.f32.mxu0 0.0
      %2765 = vmatmul.mubr.f32.gmra.mxu0 %v2620
      %v2766 = vpop.f32.mrf.mxu0
      %v2767 = vadd.f32 0.0, %v2766
      %v2768 = vpop.f32.mrf.mxu0
      %2769 = vdwg.mxu0
      %v2771 = vsel %vm1105, %v2344, 0
      %v2774 = vsel %vm1105, %v2345, 0
      %v2777 = vsel %vm1105, %v2346, 0
      %v2780 = vsel %vm1105, %v2347, 0
      %v2783 = vsel %vm1105, %v2348, 0
      %v2786 = vsel %vm1105, %v2349, 0
      %v2789 = vsel %vm1105, %v2350, 0
      %v2792 = vsel %vm1105, %v2351, 0
      %v2795 = vsel %vm1105, %v2352, 0
      %v2798 = vsel %vm1105, %v2353, 0
      %v2801 = vsel %vm1105, %v2354, 0
      %v2804 = vsel %vm1105, %v2355, 0
      %v2807 = vsel %vm1105, %v2356, 0
      %v2810 = vsel %vm1105, %v2357, 0
      %v2813 = vsel %vm1105, %v2358, 0
      %v2816 = vsel %vm1105, %v2359, 0
      %v2819 = vsel %vm1166, %v2361, 0
      %2821 = vmatprep.subr.mxu0 0.0
      %2822 = vmatpush1.msra.mxu0 0.0
      %2823 = vmatprep.subr.mxu0 0.0
      %2824 = vmatpush1.msra.mxu0 0.0
      %2825 = vmatprep.subr.mxu0 0.0
      %2826 = vmatpush1.msra.mxu0 0.0
      %2827 = vmatprep.subr.mxu0 0.0
      %2828 = vmatpush1.msra.mxu0 0.0
      %2829 = vmatprep.subr.mxu0 0.0
      %2830 = vmatpush1.msra.mxu0 0.0
      %2831 = vmatprep.subr.mxu0 0.0
      %2832 = vmatpush1.msra.mxu0 0.0
      %2833 = vmatprep.subr.mxu0 0.0
      %2834 = vmatpush1.msra.mxu0 0.0
      %2835 = vmatprep.subr.mxu0 0.0
      %2836 = vmatpush1.msra.mxu0 0.0
      %2837 = vmatprep.subr.mxu0 0.0
      %2838 = vmatpush1.msra.mxu0 0.0
      %2839 = vmatprep.subr.mxu0 0.0
      %2840 = vmatpush1.msra.mxu0 0.0
      %2841 = vmatprep.subr.mxu0 0.0
      %2842 = vmatpush1.msra.mxu0 0.0
      %2843 = vmatprep.subr.mxu0 0.0
      %2844 = vmatpush1.msra.mxu0 0.0
      %2845 = vmatprep.subr.mxu0 0.0
      %2846 = vmatpush1.msra.mxu0 0.0
      %2847 = vmatprep.subr.mxu0 0.0
      %2848 = vmatpush1.msra.mxu0 0.0
      %2849 = vmatprep.subr.mxu0 0.0
      %2850 = vmatpush1.msra.mxu0 %v2819
      %2851 = vmatprep.subr.mxu0 0.0
      %2852 = vmatpush1.msra.mxu0 %v2360
      %2853 = vmatprep.subr.mxu0 0.0
      %2854 = vmatpush2.msra.mxu0 0.0
      %2855 = vmatprep.subr.mxu0 0.0
      %2856 = vmatpush2.msra.mxu0 0.0
      %2857 = vmatprep.subr.mxu0 0.0
      %2858 = vmatpush2.msra.mxu0 0.0
      %2859 = vmatprep.subr.mxu0 0.0
      %2860 = vmatpush2.msra.mxu0 0.0
      %2861 = vmatprep.subr.mxu0 0.0
      %2862 = vmatpush2.msra.mxu0 0.0
      %2863 = vmatprep.subr.mxu0 0.0
      %2864 = vmatpush2.msra.mxu0 0.0
      %2865 = vmatprep.subr.mxu0 0.0
      %2866 = vmatpush2.msra.mxu0 0.0
      %2867 = vmatprep.subr.mxu0 0.0
      %2868 = vmatpush2.msra.mxu0 0.0
      %2869 = vmatprep.subr.mxu0 0.0
      %2870 = vmatpush2.msra.mxu0 0.0
      %2871 = vmatprep.subr.mxu0 0.0
      %2872 = vmatpush2.msra.mxu0 0.0
      %2873 = vmatprep.subr.mxu0 0.0
      %2874 = vmatpush2.msra.mxu0 0.0
      %2875 = vmatprep.subr.mxu0 0.0
      %2876 = vmatpush2.msra.mxu0 0.0
      %2877 = vmatprep.subr.mxu0 0.0
      %2878 = vmatpush2.msra.mxu0 0.0
      %2879 = vmatprep.subr.mxu0 0.0
      %2880 = vmatpush2.msra.mxu0 0.0
      %2881 = vmatprep.subr.mxu0 0.0
      %2882 = vmatpush2.msra.mxu0 0.0
      %2883 = vmatprep.subr.mxu0 0.0
      %2884 = vmatpush2.msra.mxu0 0.0
      %2885 = vmatprep.mubr.f32.mxu0 0.0
      %2886 = vmatmul.mubr.f32.gmra.mxu0 %v2771
      %v2887 = vpop.f32.mrf.mxu0
      %v2888 = vadd.f32 %v2692, %v2887
      %v2889 = vpop.f32.mrf.mxu0
      %2890 = vmatprep.mubr.f32.mxu0 0.0
      %2891 = vmatmul.mubr.f32.gmra.mxu0 %v2774
      %v2892 = vpop.f32.mrf.mxu0
      %v2893 = vadd.f32 %v2697, %v2892
      %v2894 = vpop.f32.mrf.mxu0
      %2895 = vmatprep.mubr.f32.mxu0 0.0
      %2896 = vmatmul.mubr.f32.gmra.mxu0 %v2777
      %v2897 = vpop.f32.mrf.mxu0
      %v2898 = vadd.f32 %v2702, %v2897
      %v2899 = vpop.f32.mrf.mxu0
      %2900 = vmatprep.mubr.f32.mxu0 0.0
      %2901 = vmatmul.mubr.f32.gmra.mxu0 %v2780
      %v2902 = vpop.f32.mrf.mxu0
      %v2903 = vadd.f32 %v2707, %v2902
      %v2904 = vpop.f32.mrf.mxu0
      %2905 = vmatprep.mubr.f32.mxu0 0.0
      %2906 = vmatmul.mubr.f32.gmra.mxu0 %v2783
      %v2907 = vpop.f32.mrf.mxu0
      %v2908 = vadd.f32 %v2712, %v2907
      %v2909 = vpop.f32.mrf.mxu0
      %2910 = vmatprep.mubr.f32.mxu0 0.0
      %2911 = vmatmul.mubr.f32.gmra.mxu0 %v2786
      %v2912 = vpop.f32.mrf.mxu0
      %v2913 = vadd.f32 %v2717, %v2912
      %v2914 = vpop.f32.mrf.mxu0
      %2915 = vmatprep.mubr.f32.mxu0 0.0
      %2916 = vmatmul.mubr.f32.gmra.mxu0 %v2789
      %v2917 = vpop.f32.mrf.mxu0
      %v2918 = vadd.f32 %v2722, %v2917
      %v2919 = vpop.f32.mrf.mxu0
      %2920 = vmatprep.mubr.f32.mxu0 0.0
      %2921 = vmatmul.mubr.f32.gmra.mxu0 %v2792
      %v2922 = vpop.f32.mrf.mxu0
      %v2923 = vadd.f32 %v2727, %v2922
      %v2924 = vpop.f32.mrf.mxu0
      %2925 = vmatprep.mubr.f32.mxu0 0.0
      %2926 = vmatmul.mubr.f32.gmra.mxu0 %v2795
      %v2927 = vpop.f32.mrf.mxu0
      %v2928 = vadd.f32 %v2732, %v2927
      %v2929 = vpop.f32.mrf.mxu0
      %2930 = vmatprep.mubr.f32.mxu0 0.0
      %2931 = vmatmul.mubr.f32.gmra.mxu0 %v2798
      %v2932 = vpop.f32.mrf.mxu0
      %v2933 = vadd.f32 %v2737, %v2932
      %v2934 = vpop.f32.mrf.mxu0
      %2935 = vmatprep.mubr.f32.mxu0 0.0
      %2936 = vmatmul.mubr.f32.gmra.mxu0 %v2801
      %v2937 = vpop.f32.mrf.mxu0
      %v2938 = vadd.f32 %v2742, %v2937
      %v2939 = vpop.f32.mrf.mxu0
      %2940 = vmatprep.mubr.f32.mxu0 0.0
      %2941 = vmatmul.mubr.f32.gmra.mxu0 %v2804
      %v2942 = vpop.f32.mrf.mxu0
      %v2943 = vadd.f32 %v2747, %v2942
      %v2944 = vpop.f32.mrf.mxu0
      %2945 = vmatprep.mubr.f32.mxu0 0.0
      %2946 = vmatmul.mubr.f32.gmra.mxu0 %v2807
      %v2947 = vpop.f32.mrf.mxu0
      %v2948 = vadd.f32 %v2752, %v2947
      %v2949 = vpop.f32.mrf.mxu0
      %2950 = vmatprep.mubr.f32.mxu0 0.0
      %2951 = vmatmul.mubr.f32.gmra.mxu0 %v2810
      %v2952 = vpop.f32.mrf.mxu0
      %v2953 = vadd.f32 %v2757, %v2952
      %v2954 = vpop.f32.mrf.mxu0
      %2955 = vmatprep.mubr.f32.mxu0 0.0
      %2956 = vmatmul.mubr.f32.gmra.mxu0 %v2813
      %v2957 = vpop.f32.mrf.mxu0
      %v2958 = vadd.f32 %v2762, %v2957
      %v2959 = vpop.f32.mrf.mxu0
      %2960 = vmatprep.mubr.f32.mxu0 0.0
      %2961 = vmatmul.mubr.f32.gmra.mxu0 %v2816
      %v2962 = vpop.f32.mrf.mxu0
      %v2963 = vadd.f32 %v2767, %v2962
      %v2964 = vpop.f32.mrf.mxu0
      %2965 = vdwg.mxu0
      %s2966 = scalar_lea.vmem [#allocation3], 64
      %v2967 = vld [vmem:[%s2966 + $0x7] sm:$0xff]
      %v2968 = vld [vmem:[%s2966 + $0xf] sm:$0xff]
      %v2969 = vld [vmem:[%s2966 + $0x27] sm:$0xff]
      %v2970 = vld [vmem:[%s2966 + $0x2f] sm:$0xff]
      %v2971 = vld [vmem:[%s2966 + $0x47] sm:$0xff]
      %v2972 = vld [vmem:[%s2966 + $0x4f] sm:$0xff]
      %v2973 = vld [vmem:[%s2966 + $0x67] sm:$0xff]
      %v2974 = vld [vmem:[%s2966 + $0x6f] sm:$0xff]
      %v2975 = vld [vmem:[%s2966 + $0x87] sm:$0xff]
      %v2976 = vld [vmem:[%s2966 + $0x8f] sm:$0xff]
      %v2977 = vld [vmem:[%s2966 + $0xa7] sm:$0xff]
      %v2978 = vld [vmem:[%s2966 + $0xaf] sm:$0xff]
      %v2979 = vld [vmem:[%s2966 + $0xc7] sm:$0xff]
      %v2980 = vld [vmem:[%s2966 + $0xcf] sm:$0xff]
      %v2981 = vld [vmem:[%s2966 + $0xe7] sm:$0xff]
      %v2982 = vld [vmem:[%s2966 + $0xef] sm:$0xff]
      %v2983 = vld [vmem:[%s2966 + $0x8] sm:$0xff]
      %v2984 = vld [vmem:[%s2966 + $0x10] sm:$0xff]
      %v2985 = vld [vmem:[%s2966 + $0x28] sm:$0xff]
      %v2986 = vld [vmem:[%s2966 + $0x30] sm:$0xff]
      %v2987 = vld [vmem:[%s2966 + $0x48] sm:$0xff]
      %v2988 = vld [vmem:[%s2966 + $0x50] sm:$0xff]
      %v2989 = vld [vmem:[%s2966 + $0x68] sm:$0xff]
      %v2990 = vld [vmem:[%s2966 + $0x70] sm:$0xff]
      %v2991 = vld [vmem:[%s2966 + $0x88] sm:$0xff]
      %v2992 = vld [vmem:[%s2966 + $0x90] sm:$0xff]
      %v2993 = vld [vmem:[%s2966 + $0xa8] sm:$0xff]
      %v2994 = vld [vmem:[%s2966 + $0xb0] sm:$0xff]
      %v2995 = vld [vmem:[%s2966 + $0xc8] sm:$0xff]
      %v2996 = vld [vmem:[%s2966 + $0xd0] sm:$0xff]
      %v2997 = vld [vmem:[%s2966 + $0xe8] sm:$0xff]
      %v2998 = vld [vmem:[%s2966 + $0xf0] sm:$0xff]
      %v2999 = vld [vmem:[%s2966 + $0x9] sm:$0xff]
      %v3000 = vld [vmem:[%s2966 + $0x11] sm:$0xff]
      %v3001 = vld [vmem:[%s2966 + $0x29] sm:$0xff]
      %v3002 = vld [vmem:[%s2966 + $0x31] sm:$0xff]
      %v3003 = vld [vmem:[%s2966 + $0x49] sm:$0xff]
      %v3004 = vld [vmem:[%s2966 + $0x51] sm:$0xff]
      %v3005 = vld [vmem:[%s2966 + $0x69] sm:$0xff]
      %v3006 = vld [vmem:[%s2966 + $0x71] sm:$0xff]
      %v3007 = vld [vmem:[%s2966 + $0x89] sm:$0xff]
      %v3008 = vld [vmem:[%s2966 + $0x91] sm:$0xff]
      %v3009 = vld [vmem:[%s2966 + $0xa9] sm:$0xff]
      %v3010 = vld [vmem:[%s2966 + $0xb1] sm:$0xff]
      %v3011 = vld [vmem:[%s2966 + $0xc9] sm:$0xff]
      %v3012 = vld [vmem:[%s2966 + $0xd1] sm:$0xff]
      %v3013 = vld [vmem:[%s2966 + $0xe9] sm:$0xff]
      %v3014 = vld [vmem:[%s2966 + $0xf1] sm:$0xff]
      %3031 = vrot.lane.b32.xlu0 %v2983, 4
      %v3032 = vpop.permute.xlu0 %3031
      %3033 = vrot.lane.b32.xlu0 %v2984, 4
      %v3034 = vpop.permute.xlu0 %3033
      %3035 = vrot.lane.b32.xlu0 %v2985, 4
      %v3036 = vpop.permute.xlu0 %3035
      %3037 = vrot.lane.b32.xlu0 %v2986, 4
      %v3038 = vpop.permute.xlu0 %3037
      %3039 = vrot.lane.b32.xlu0 %v2987, 4
      %v3040 = vpop.permute.xlu0 %3039
      %3041 = vrot.lane.b32.xlu0 %v2988, 4
      %v3042 = vpop.permute.xlu0 %3041
      %3043 = vrot.lane.b32.xlu0 %v2989, 4
      %v3044 = vpop.permute.xlu0 %3043
      %3045 = vrot.lane.b32.xlu0 %v2990, 4
      %v3046 = vpop.permute.xlu0 %3045
      %3047 = vrot.lane.b32.xlu0 %v2991, 4
      %v3048 = vpop.permute.xlu0 %3047
      %3049 = vrot.lane.b32.xlu0 %v2992, 4
      %v3050 = vpop.permute.xlu0 %3049
      %3051 = vrot.lane.b32.xlu0 %v2993, 4
      %v3052 = vpop.permute.xlu0 %3051
      %3053 = vrot.lane.b32.xlu0 %v2994, 4
      %v3054 = vpop.permute.xlu0 %3053
      %3055 = vrot.lane.b32.xlu0 %v2995, 4
      %v3056 = vpop.permute.xlu0 %3055
      %3057 = vrot.lane.b32.xlu0 %v2996, 4
      %v3058 = vpop.permute.xlu0 %3057
      %3059 = vrot.lane.b32.xlu0 %v2997, 4
      %v3060 = vpop.permute.xlu0 %3059
      %3061 = vrot.lane.b32.xlu0 %v2998, 4
      %v3062 = vpop.permute.xlu0 %3061
      %3095 = vrot.lane.b32.xlu0 %v2999, 8
      %v3096 = vpop.permute.xlu0 %3095
      %3097 = vrot.lane.b32.xlu0 %v3000, 8
      %v3098 = vpop.permute.xlu0 %3097
      %3099 = vrot.lane.b32.xlu0 %v3001, 8
      %v3100 = vpop.permute.xlu0 %3099
      %3101 = vrot.lane.b32.xlu0 %v3002, 8
      %v3102 = vpop.permute.xlu0 %3101
      %3103 = vrot.lane.b32.xlu0 %v3003, 8
      %v3104 = vpop.permute.xlu0 %3103
      %3105 = vrot.lane.b32.xlu0 %v3004, 8
      %v3106 = vpop.permute.xlu0 %3105
      %3107 = vrot.lane.b32.xlu0 %v3005, 8
      %v3108 = vpop.permute.xlu0 %3107
      %3109 = vrot.lane.b32.xlu0 %v3006, 8
      %v3110 = vpop.permute.xlu0 %3109
      %3111 = vrot.lane.b32.xlu0 %v3007, 8
      %v3112 = vpop.permute.xlu0 %3111
      %3113 = vrot.lane.b32.xlu0 %v3008, 8
      %v3114 = vpop.permute.xlu0 %3113
      %3115 = vrot.lane.b32.xlu0 %v3009, 8
      %v3116 = vpop.permute.xlu0 %3115
      %3117 = vrot.lane.b32.xlu0 %v3010, 8
      %v3118 = vpop.permute.xlu0 %3117
      %3119 = vrot.lane.b32.xlu0 %v3011, 8
      %v3120 = vpop.permute.xlu0 %3119
      %3121 = vrot.lane.b32.xlu0 %v3012, 8
      %v3122 = vpop.permute.xlu0 %3121
      %3123 = vrot.lane.b32.xlu0 %v3013, 8
      %v3124 = vpop.permute.xlu0 %3123
      %3125 = vrot.lane.b32.xlu0 %v3014, 8
      %v3126 = vpop.permute.xlu0 %3125
      %v3143 = vsel %vm519, %v2967, %v3032
      %v3144 = vsel %vm519, %v2968, %v3034
      %v3145 = vsel %vm519, %v2969, %v3036
      %v3146 = vsel %vm519, %v2970, %v3038
      %v3147 = vsel %vm519, %v2971, %v3040
      %v3148 = vsel %vm519, %v2972, %v3042
      %v3149 = vsel %vm519, %v2973, %v3044
      %v3150 = vsel %vm519, %v2974, %v3046
      %v3151 = vsel %vm519, %v2975, %v3048
      %v3152 = vsel %vm519, %v2976, %v3050
      %v3153 = vsel %vm519, %v2977, %v3052
      %v3154 = vsel %vm519, %v2978, %v3054
      %v3155 = vsel %vm519, %v2979, %v3056
      %v3156 = vsel %vm519, %v2980, %v3058
      %v3157 = vsel %vm519, %v2981, %v3060
      %v3158 = vsel %vm519, %v2982, %v3062
      %v3159 = vsel %vm818, %v3143, %v3096
      %v3160 = vsel %vm818, %v3144, %v3098
      %v3161 = vsel %vm818, %v3145, %v3100
      %v3162 = vsel %vm818, %v3146, %v3102
      %v3163 = vsel %vm818, %v3147, %v3104
      %v3164 = vsel %vm818, %v3148, %v3106
      %v3165 = vsel %vm818, %v3149, %v3108
      %v3166 = vsel %vm818, %v3150, %v3110
      %v3167 = vsel %vm818, %v3151, %v3112
      %v3168 = vsel %vm818, %v3152, %v3114
      %v3169 = vsel %vm818, %v3153, %v3116
      %v3170 = vsel %vm818, %v3154, %v3118
      %v3171 = vsel %vm818, %v3155, %v3120
      %v3172 = vsel %vm818, %v3156, %v3122
      %v3173 = vsel %vm818, %v3157, %v3124
      %v3174 = vsel %vm818, %v3158, %v3126
      %s3175 = scalar_lea.vmem %s5, 32
      %v3176 = vld [vmem:[%s3175] sm:$0xff]
      %v3177 = vld [vmem:[%s3175 + $0x8] sm:$0xf]
      %v3179 = vsel %vm1105, %v3159, 0
      %v3182 = vsel %vm1105, %v3160, 0
      %v3185 = vsel %vm1105, %v3161, 0
      %v3188 = vsel %vm1105, %v3162, 0
      %v3191 = vsel %vm1105, %v3163, 0
      %v3194 = vsel %vm1105, %v3164, 0
      %v3197 = vsel %vm1105, %v3165, 0
      %v3200 = vsel %vm1105, %v3166, 0
      %v3203 = vsel %vm1105, %v3167, 0
      %v3206 = vsel %vm1105, %v3168, 0
      %v3209 = vsel %vm1105, %v3169, 0
      %v3212 = vsel %vm1105, %v3170, 0
      %v3215 = vsel %vm1105, %v3171, 0
      %v3218 = vsel %vm1105, %v3172, 0
      %v3221 = vsel %vm1105, %v3173, 0
      %v3224 = vsel %vm1105, %v3174, 0
      %v3227 = vsel %vm1166, %v3177, 0
      %3229 = vmatprep.subr.mxu0 0.0
      %3230 = vmatpush1.msra.mxu0 0.0
      %3231 = vmatprep.subr.mxu0 0.0
      %3232 = vmatpush1.msra.mxu0 0.0
      %3233 = vmatprep.subr.mxu0 0.0
      %3234 = vmatpush1.msra.mxu0 0.0
      %3235 = vmatprep.subr.mxu0 0.0
      %3236 = vmatpush1.msra.mxu0 0.0
      %3237 = vmatprep.subr.mxu0 0.0
      %3238 = vmatpush1.msra.mxu0 0.0
      %3239 = vmatprep.subr.mxu0 0.0
      %3240 = vmatpush1.msra.mxu0 0.0
      %3241 = vmatprep.subr.mxu0 0.0
      %3242 = vmatpush1.msra.mxu0 0.0
      %3243 = vmatprep.subr.mxu0 0.0
      %3244 = vmatpush1.msra.mxu0 0.0
      %3245 = vmatprep.subr.mxu0 0.0
      %3246 = vmatpush1.msra.mxu0 0.0
      %3247 = vmatprep.subr.mxu0 0.0
      %3248 = vmatpush1.msra.mxu0 0.0
      %3249 = vmatprep.subr.mxu0 0.0
      %3250 = vmatpush1.msra.mxu0 0.0
      %3251 = vmatprep.subr.mxu0 0.0
      %3252 = vmatpush1.msra.mxu0 0.0
      %3253 = vmatprep.subr.mxu0 0.0
      %3254 = vmatpush1.msra.mxu0 0.0
      %3255 = vmatprep.subr.mxu0 0.0
      %3256 = vmatpush1.msra.mxu0 0.0
      %3257 = vmatprep.subr.mxu0 0.0
      %3258 = vmatpush1.msra.mxu0 %v3227
      %3259 = vmatprep.subr.mxu0 0.0
      %3260 = vmatpush1.msra.mxu0 %v3176
      %3261 = vmatprep.subr.mxu0 0.0
      %3262 = vmatpush2.msra.mxu0 0.0
      %3263 = vmatprep.subr.mxu0 0.0
      %3264 = vmatpush2.msra.mxu0 0.0
      %3265 = vmatprep.subr.mxu0 0.0
      %3266 = vmatpush2.msra.mxu0 0.0
      %3267 = vmatprep.subr.mxu0 0.0
      %3268 = vmatpush2.msra.mxu0 0.0
      %3269 = vmatprep.subr.mxu0 0.0
      %3270 = vmatpush2.msra.mxu0 0.0
      %3271 = vmatprep.subr.mxu0 0.0
      %3272 = vmatpush2.msra.mxu0 0.0
      %3273 = vmatprep.subr.mxu0 0.0
      %3274 = vmatpush2.msra.mxu0 0.0
      %3275 = vmatprep.subr.mxu0 0.0
      %3276 = vmatpush2.msra.mxu0 0.0
      %3277 = vmatprep.subr.mxu0 0.0
      %3278 = vmatpush2.msra.mxu0 0.0
      %3279 = vmatprep.subr.mxu0 0.0
      %3280 = vmatpush2.msra.mxu0 0.0
      %3281 = vmatprep.subr.mxu0 0.0
      %3282 = vmatpush2.msra.mxu0 0.0
      %3283 = vmatprep.subr.mxu0 0.0
      %3284 = vmatpush2.msra.mxu0 0.0
      %3285 = vmatprep.subr.mxu0 0.0
      %3286 = vmatpush2.msra.mxu0 0.0
      %3287 = vmatprep.subr.mxu0 0.0
      %3288 = vmatpush2.msra.mxu0 0.0
      %3289 = vmatprep.subr.mxu0 0.0
      %3290 = vmatpush2.msra.mxu0 0.0
      %3291 = vmatprep.subr.mxu0 0.0
      %3292 = vmatpush2.msra.mxu0 0.0
      %3293 = vmatprep.mubr.f32.mxu0 0.0
      %3294 = vmatmul.mubr.f32.gmra.mxu0 %v3179
      %v3295 = vpop.f32.mrf.mxu0
      %v3296 = vadd.f32 0.0, %v3295
      %v3297 = vpop.f32.mrf.mxu0
      %3298 = vmatprep.mubr.f32.mxu0 0.0
      %3299 = vmatmul.mubr.f32.gmra.mxu0 %v3182
      %v3300 = vpop.f32.mrf.mxu0
      %v3301 = vadd.f32 0.0, %v3300
      %v3302 = vpop.f32.mrf.mxu0
      %3303 = vmatprep.mubr.f32.mxu0 0.0
      %3304 = vmatmul.mubr.f32.gmra.mxu0 %v3185
      %v3305 = vpop.f32.mrf.mxu0
      %v3306 = vadd.f32 0.0, %v3305
      %v3307 = vpop.f32.mrf.mxu0
      %3308 = vmatprep.mubr.f32.mxu0 0.0
      %3309 = vmatmul.mubr.f32.gmra.mxu0 %v3188
      %v3310 = vpop.f32.mrf.mxu0
      %v3311 = vadd.f32 0.0, %v3310
      %v3312 = vpop.f32.mrf.mxu0
      %3313 = vmatprep.mubr.f32.mxu0 0.0
      %3314 = vmatmul.mubr.f32.gmra.mxu0 %v3191
      %v3315 = vpop.f32.mrf.mxu0
      %v3316 = vadd.f32 0.0, %v3315
      %v3317 = vpop.f32.mrf.mxu0
      %3318 = vmatprep.mubr.f32.mxu0 0.0
      %3319 = vmatmul.mubr.f32.gmra.mxu0 %v3194
      %v3320 = vpop.f32.mrf.mxu0
      %v3321 = vadd.f32 0.0, %v3320
      %v3322 = vpop.f32.mrf.mxu0
      %3323 = vmatprep.mubr.f32.mxu0 0.0
      %3324 = vmatmul.mubr.f32.gmra.mxu0 %v3197
      %v3325 = vpop.f32.mrf.mxu0
      %v3326 = vadd.f32 0.0, %v3325
      %v3327 = vpop.f32.mrf.mxu0
      %3328 = vmatprep.mubr.f32.mxu0 0.0
      %3329 = vmatmul.mubr.f32.gmra.mxu0 %v3200
      %v3330 = vpop.f32.mrf.mxu0
      %v3331 = vadd.f32 0.0, %v3330
      %v3332 = vpop.f32.mrf.mxu0
      %3333 = vmatprep.mubr.f32.mxu0 0.0
      %3334 = vmatmul.mubr.f32.gmra.mxu0 %v3203
      %v3335 = vpop.f32.mrf.mxu0
      %v3336 = vadd.f32 0.0, %v3335
      %v3337 = vpop.f32.mrf.mxu0
      %3338 = vmatprep.mubr.f32.mxu0 0.0
      %3339 = vmatmul.mubr.f32.gmra.mxu0 %v3206
      %v3340 = vpop.f32.mrf.mxu0
      %v3341 = vadd.f32 0.0, %v3340
      %v3342 = vpop.f32.mrf.mxu0
      %3343 = vmatprep.mubr.f32.mxu0 0.0
      %3344 = vmatmul.mubr.f32.gmra.mxu0 %v3209
      %v3345 = vpop.f32.mrf.mxu0
      %v3346 = vadd.f32 0.0, %v3345
      %v3347 = vpop.f32.mrf.mxu0
      %3348 = vmatprep.mubr.f32.mxu0 0.0
      %3349 = vmatmul.mubr.f32.gmra.mxu0 %v3212
      %v3350 = vpop.f32.mrf.mxu0
      %v3351 = vadd.f32 0.0, %v3350
      %v3352 = vpop.f32.mrf.mxu0
      %3353 = vmatprep.mubr.f32.mxu0 0.0
      %3354 = vmatmul.mubr.f32.gmra.mxu0 %v3215
      %v3355 = vpop.f32.mrf.mxu0
      %v3356 = vadd.f32 0.0, %v3355
      %v3357 = vpop.f32.mrf.mxu0
      %3358 = vmatprep.mubr.f32.mxu0 0.0
      %3359 = vmatmul.mubr.f32.gmra.mxu0 %v3218
      %v3360 = vpop.f32.mrf.mxu0
      %v3361 = vadd.f32 0.0, %v3360
      %v3362 = vpop.f32.mrf.mxu0
      %3363 = vmatprep.mubr.f32.mxu0 0.0
      %3364 = vmatmul.mubr.f32.gmra.mxu0 %v3221
      %v3365 = vpop.f32.mrf.mxu0
      %v3366 = vadd.f32 0.0, %v3365
      %v3367 = vpop.f32.mrf.mxu0
      %3368 = vmatprep.mubr.f32.mxu0 0.0
      %3369 = vmatmul.mubr.f32.gmra.mxu0 %v3224
      %v3370 = vpop.f32.mrf.mxu0
      %v3371 = vadd.f32 0.0, %v3370
      %v3372 = vpop.f32.mrf.mxu0
      %3373 = vdwg.mxu0
      %v3374 = vadd.f32 %v2888, %v3296
      %v3375 = vadd.f32 %v2893, %v3301
      %v3376 = vadd.f32 %v2898, %v3306
      %v3377 = vadd.f32 %v2903, %v3311
      %v3378 = vadd.f32 %v2908, %v3316
      %v3379 = vadd.f32 %v2913, %v3321
      %v3380 = vadd.f32 %v2918, %v3326
      %v3381 = vadd.f32 %v2923, %v3331
      %v3382 = vadd.f32 %v2928, %v3336
      %v3383 = vadd.f32 %v2933, %v3341
      %v3384 = vadd.f32 %v2938, %v3346
      %v3385 = vadd.f32 %v2943, %v3351
      %v3386 = vadd.f32 %v2948, %v3356
      %v3387 = vadd.f32 %v2953, %v3361
      %v3388 = vadd.f32 %v2958, %v3366
      %v3389 = vadd.f32 %v2963, %v3371
      %v3390 = vld [vmem:[%s406] sm:$0xff]
      %v3391 = vld [vmem:[%s406 + $0x8] sm:$0xff]
      %v3392 = vld [vmem:[%s406 + $0x10] sm:$0xff]
      %v3393 = vld [vmem:[%s406 + $0x18] sm:$0xff]
      %v3394 = vld [vmem:[%s406 + $0x20] sm:$0xff]
      %v3395 = vld [vmem:[%s406 + $0x28] sm:$0xff]
      %v3396 = vld [vmem:[%s406 + $0x30] sm:$0xff]
      %v3397 = vld [vmem:[%s406 + $0x38] sm:$0xff]
      %v3398 = vld [vmem:[%s406 + $0x40] sm:$0xff]
      %v3399 = vld [vmem:[%s406 + $0x48] sm:$0xff]
      %v3400 = vld [vmem:[%s406 + $0x50] sm:$0xff]
      %v3401 = vld [vmem:[%s406 + $0x58] sm:$0xff]
      %v3402 = vld [vmem:[%s406 + $0x60] sm:$0xff]
      %v3403 = vld [vmem:[%s406 + $0x68] sm:$0xff]
      %v3404 = vld [vmem:[%s406 + $0x70] sm:$0xff]
      %v3405 = vld [vmem:[%s406 + $0x78] sm:$0xff]
      %v3406 = vld [vmem:[%s6] sm:$0x1]
      %v3408 = vlaneseq
      %v3409 = vshrl.u32 %v3408, 7
      %v3410 = vsub.s32 0, %v3409
      %v3411 = vrot.slane %v3406, %v3410
      %v3413 = vadd.f32 %v3374, %v3411
      %v3414 = vadd.f32 %v3375, %v3411
      %v3415 = vadd.f32 %v3376, %v3411
      %v3416 = vadd.f32 %v3377, %v3411
      %v3417 = vadd.f32 %v3378, %v3411
      %v3418 = vadd.f32 %v3379, %v3411
      %v3419 = vadd.f32 %v3380, %v3411
      %v3420 = vadd.f32 %v3381, %v3411
      %v3421 = vadd.f32 %v3382, %v3411
      %v3422 = vadd.f32 %v3383, %v3411
      %v3423 = vadd.f32 %v3384, %v3411
      %v3424 = vadd.f32 %v3385, %v3411
      %v3425 = vadd.f32 %v3386, %v3411
      %v3426 = vadd.f32 %v3387, %v3411
      %v3427 = vadd.f32 %v3388, %v3411
      %v3428 = vadd.f32 %v3389, %v3411
      %v3429 = vadd.f32 %v3413, %v3390
      %v3430 = vadd.f32 %v3414, %v3391
      %v3431 = vadd.f32 %v3415, %v3392
      %v3432 = vadd.f32 %v3416, %v3393
      %v3433 = vadd.f32 %v3417, %v3394
      %v3434 = vadd.f32 %v3418, %v3395
      %v3435 = vadd.f32 %v3419, %v3396
      %v3436 = vadd.f32 %v3420, %v3397
      %v3437 = vadd.f32 %v3421, %v3398
      %v3438 = vadd.f32 %v3422, %v3399
      %v3439 = vadd.f32 %v3423, %v3400
      %v3440 = vadd.f32 %v3424, %v3401
      %v3441 = vadd.f32 %v3425, %v3402
      %v3442 = vadd.f32 %v3426, %v3403
      %v3443 = vadd.f32 %v3427, %v3404
      %v3444 = vadd.f32 %v3428, %v3405
      %v3445 = vmax.f32 %v3429, 0.0
      %v3446 = vmax.f32 %v3430, 0.0
      %v3447 = vmax.f32 %v3431, 0.0
      %v3448 = vmax.f32 %v3432, 0.0
      %v3449 = vmax.f32 %v3433, 0.0
      %v3450 = vmax.f32 %v3434, 0.0
      %v3451 = vmax.f32 %v3435, 0.0
      %v3452 = vmax.f32 %v3436, 0.0
      %v3453 = vmax.f32 %v3437, 0.0
      %v3454 = vmax.f32 %v3438, 0.0
      %v3455 = vmax.f32 %v3439, 0.0
      %v3456 = vmax.f32 %v3440, 0.0
      %v3457 = vmax.f32 %v3441, 0.0
      %v3458 = vmax.f32 %v3442, 0.0
      %v3459 = vmax.f32 %v3443, 0.0
      %v3460 = vmax.f32 %v3444, 0.0
      %3461 = vst.msk [vmem:[%s455] sm:$0xff] %vm519, %v3445
      %3462 = vst.msk [vmem:[%s455 + $0x8] sm:$0xff] %vm519, %v3446
      %3463 = vst.msk [vmem:[%s455 + $0x10] sm:$0xff] %vm519, %v3447
      %3464 = vst.msk [vmem:[%s455 + $0x18] sm:$0xff] %vm519, %v3448
      %3465 = vst.msk [vmem:[%s455 + $0x20] sm:$0xff] %vm519, %v3449
      %3466 = vst.msk [vmem:[%s455 + $0x28] sm:$0xff] %vm519, %v3450
      %3467 = vst.msk [vmem:[%s455 + $0x30] sm:$0xff] %vm519, %v3451
      %3468 = vst.msk [vmem:[%s455 + $0x38] sm:$0xff] %vm519, %v3452
      %3469 = vst.msk [vmem:[%s455 + $0x40] sm:$0xff] %vm519, %v3453
      %3470 = vst.msk [vmem:[%s455 + $0x48] sm:$0xff] %vm519, %v3454
      %3471 = vst.msk [vmem:[%s455 + $0x50] sm:$0xff] %vm519, %v3455
      %3472 = vst.msk [vmem:[%s455 + $0x58] sm:$0xff] %vm519, %v3456
      %3473 = vst.msk [vmem:[%s455 + $0x60] sm:$0xff] %vm519, %v3457
      %3474 = vst.msk [vmem:[%s455 + $0x68] sm:$0xff] %vm519, %v3458
      %3475 = vst.msk [vmem:[%s455 + $0x70] sm:$0xff] %vm519, %v3459
      %3476 = vst.msk [vmem:[%s455 + $0x78] sm:$0xff] %vm519, %v3460
      %s3477 = smul.u32 8, %s23
      %p3478 = scmp.lt.s32.totalorder %s22, 1
      %s3479 = scalar_select %p3478, %s22, 1
      %p3480 = scmp.lt.s32.totalorder %s3477, 15
      %s3481 = scalar_select %p3480, %s3477, 15
      %s3482 = smul.addr %s3481, 2
      %s3483 = smul.addr %s3479, 32
      %s3484 = sadd.s32 %s3482, %s3483
      %s3485 = smul.addr %s3484, 8
      %s3486 = scalar_lea.vmem %s7, %s3485
      // Predicated region
      $region73: #{tpu_custom_call.1} parent=47 // pred_check
        %p3487 = pneg %p234
      $region74: #{tpu_custom_call.1} parent=47 // pred_check_branch
        %3489 = sbr.rel (%p3487) target = $region76
      $region75: #{tpu_custom_call.1} parent=47 // pred_region
        %s3490 = smul.u32 8, %s23
      $region76: #{tpu_custom_call.1} parent=47 // pred_fallthru
        _
    $region48: #{tpu_custom_call.1} parent=5 // pred_fallthru
      _
    %p3491 = scmp.le.s32.totalorder 2, %s13
    // Predicated region
    $region77: #{tpu_custom_call.1} parent=5 // pred_check
      %p3492 = pneg %p3491
    $region78: #{tpu_custom_call.1} parent=5 // pred_check_branch
      %3494 = sbr.rel (%p3492) target = $region80
    $region79: #{tpu_custom_call.1} parent=5 // pred_region
      %s3495 = ssub.s32 %s13, 2
      // Predicated region
      $region81: #{tpu_custom_call.1} parent=79 // pred_check
        %p3496 = pneg %p240
      $region82: #{tpu_custom_call.1} parent=79 // pred_check_branch
        %3498 = sbr.rel (%p3496) target = $region84
      $region83: #{tpu_custom_call.1} parent=79 // pred_region
        %s3499 = smul.u32 8, %s25
        %p3500 = scmp.lt.s32.totalorder %s24, 1
        %s3501 = scalar_select %p3500, %s24, 1
        %p3502 = scmp.lt.s32.totalorder %s3499, 15
        %s3503 = scalar_select %p3502, %s3499, 15
        %s3504 = smul.addr %s3503, 2
        %s3505 = smul.addr %s3501, 32
        %s3506 = sadd.s32 %s3504, %s3505
        %s3507 = smul.addr %s3506, 8
        %s3508 = scalar_lea.vmem %s7, %s3507
      $region84: #{tpu_custom_call.1} parent=79 // pred_fallthru
        _
    $region80: #{tpu_custom_call.1} parent=5 // pred_fallthru
      _
  $region6: #{tpu_custom_call.1} parent=0 // loop_footer
    %s17 = sadd.s32 1, %s13
  $region7: #{tpu_custom_call.1} parent=0 // loop_footer_branch
    %12 = sbr.rel target = $region3
  $region8: #{tpu_custom_call.1} parent=0 // loop_exit
    _

</llo_original>
